<compile_context>
chip_gen: v6e
topology: v6e:2x2x1
jax: 0.10.0
libtpu: 0.0.40
codegen_flags: <defaults>
</compile_context>

<pallas_src>
import jax
import jax.numpy as jnp
from jax.experimental import pallas as pl
from jax.experimental.pallas import tpu as pltpu

G = 128  # padded per-gate lane width (one full lane tile)


# ----------------------------------------------------------------------------
# Fused kernel: num_layers x GRU (time-major, lane-padded fused gates) + final fc.
# ----------------------------------------------------------------------------
def _make_fused_gru_kernel(num_layers, seq, b_pad):
    def kernel(x_ref, w_ih_ref, b_ih_ref, w_hh_ref, b_hn_ref,
               w_fc_ref, b_fc_ref, out_ref, gi_sc, seq_sc, hout_sc):
        for l in range(num_layers):
            # Layer input as a time-major (seq*b_pad, G) bf16 slab (VMEM-resident).
            inp = x_ref[...] if l == 0 else seq_sc[...]
            w_ih = w_ih_ref[l]                  # (G, 3G) bf16
            w_hh = w_hh_ref[l]                  # (G, 3G) bf16
            b_ih = b_ih_ref[l:l + 1, :]         # (1, 3G) f32; r/z have b_hh folded in

            # (1) Hoisted input projection: ONE MXU matmul for all timesteps and
            #     all 3 gates (each gate in its own 128-lane tile), b_ih folded in.
            gi_sc[...] = (
                jnp.dot(inp, w_ih, preferred_element_type=jnp.float32) + b_ih
            )

            # Hoist the n-gate recurrent-bias broadcast out of the time loop.
            b_hn = jnp.broadcast_to(b_hn_ref[l:l + 1, :], (b_pad, G))   # (b_pad, G)

            last_layer = l == num_layers - 1

            # (2) Serial recurrence: one fused (b_pad,G)@(G,3G) bf16 matmul per step.
            #     seq is static & small -> fully unrolled at trace time.
            h = jnp.zeros((b_pad, G), jnp.float32)
            for t in range(seq):
                row = t * b_pad                              # static, 8-aligned
                gi_t = gi_sc[row:row + b_pad, :]             # (b_pad, 3G) f32
                gh = jnp.dot(h.astype(jnp.bfloat16), w_hh,
                             preferred_element_type=jnp.float32)   # (b_pad, 3G)
                # sigmoid via tanh -> 1 EUP push per gate; r/z gate tiles are
                # whole-vreg slices (no cross-lane moves).
                rz = 0.5 * jnp.tanh(0.5 * (gi_t[:, 0:2 * G] + gh[:, 0:2 * G])) + 0.5
                r = rz[:, 0:G]
                z = rz[:, G:2 * G]
                # PyTorch GRU: n = tanh(W_in x + b_in + r * (W_hn h + b_hn))
                n = jnp.tanh(gi_t[:, 2 * G:3 * G] + r * (gh[:, 2 * G:3 * G] + b_hn))
                h = n + z * (h - n)                          # == (1-z)*n + z*h
                if not last_layer:
                    # Sequence output feeds the next layer; keep it in VMEM (bf16).
                    seq_sc[row:row + b_pad, :] = h.astype(jnp.bfloat16)

            hout_sc[l * b_pad:(l + 1) * b_pad, :] = h.astype(jnp.bfloat16)

        # (3) Final fc on the stacked per-layer final hidden states, fused in-kernel.
        out_ref[...] = (
            jnp.dot(hout_sc[...], w_fc_ref[...], preferred_element_type=jnp.float32)
            + b_fc_ref[...]
        )

    return kernel


# ----------------------------------------------------------------------------
# Wrapper: nn.GRU(num_layers, batch_first=True) -> fc(h_out.view(-1, H))
# ----------------------------------------------------------------------------
def gru_forward(x, layer_params, w_fc, b_fc):
    # x: (batch, seq, input_size), like the PyTorch module (batch_first=True)
    batch, seq, in_dim = x.shape
    num_layers = len(layer_params)
    H = layer_params[0][2].shape[0]          # w_hh: (H, 3H)
    O = w_fc.shape[-1]
    assert H <= G and in_dim <= G
    b_pad = max(8, ((batch + 7) // 8) * 8)   # fill sublanes; 8-aligned row slices

    # ---- Pack parameters: gate g in lanes [g*G, g*G+H); fold b_hh r/z into b_ih;
    #      stack layers into a few arrays; cast matmul operands to bf16.
    w_ih_l, w_hh_l, b_ih_l, b_hn_l = [], [], [], []
    for (w_ih, b_ih, w_hh, b_hh) in layer_params:
        k = w_ih.shape[0]
        w_ih_p = jnp.zeros((G, 3 * G), jnp.float32)
        w_hh_p = jnp.zeros((G, 3 * G), jnp.float32)
        b_ih_p = jnp.zeros((3 * G,), jnp.float32)
        for g in range(3):
            w_ih_p = w_ih_p.at[:k, g * G:g * G + H].set(w_ih[:, g * H:(g + 1) * H])
            w_hh_p = w_hh_p.at[:H, g * G:g * G + H].set(w_hh[:, g * H:(g + 1) * H])
            bg = b_ih[0, g * H:(g + 1) * H]
            if g < 2:                          # fold recurrent bias for r and z
                bg = bg + b_hh[0, g * H:(g + 1) * H]
            b_ih_p = b_ih_p.at[g * G:g * G + H].set(bg)
        b_hn_p = jnp.zeros((G,), jnp.float32).at[:H].set(b_hh[0, 2 * H:3 * H])
        w_ih_l.append(w_ih_p)
        w_hh_l.append(w_hh_p)
        b_ih_l.append(b_ih_p)
        b_hn_l.append(b_hn_p)
    w_ih_s = jnp.stack(w_ih_l).astype(jnp.bfloat16)      # (L, G, 3G)
    w_hh_s = jnp.stack(w_hh_l).astype(jnp.bfloat16)      # (L, G, 3G)
    b_ih_s = jnp.stack(b_ih_l)                           # (L, 3G) f32
    b_hn_s = jnp.stack(b_hn_l)                           # (L, G)  f32
    w_fc_p = (jnp.zeros((G, O), jnp.float32).at[:H, :].set(w_fc)
              ).astype(jnp.bfloat16)                     # (G, O)  bf16

    # ---- Time-major, batch- and lane-padded bf16 input slab.
    x_tm = jnp.transpose(x, (1, 0, 2))                   # (seq, batch, in_dim)
    x_tm = jnp.pad(x_tm, ((0, 0), (0, b_pad - batch), (0, G - in_dim)))
    x_flat = x_tm.reshape(seq * b_pad, G).astype(jnp.bfloat16)

    kernel = _make_fused_gru_kernel(num_layers, seq, b_pad)
    out_pad = pl.pallas_call(
        kernel,
        out_shape=jax.ShapeDtypeStruct((num_layers * b_pad, O), jnp.float32),
        scratch_shapes=[
            pltpu.VMEM((seq * b_pad, 3 * G), jnp.float32),       # GI, all timesteps
            pltpu.VMEM((seq * b_pad, G), jnp.bfloat16),          # inter-layer sequence
            pltpu.VMEM((num_layers * b_pad, G), jnp.bfloat16),   # stacked final h
        ],
    )(x_flat, w_ih_s, b_ih_s, w_hh_s, b_hn_s, w_fc_p, b_fc)

    # Drop padded batch rows: (num_layers*b_pad, O) -> (num_layers*batch, O)
    out = out_pad.reshape(num_layers, b_pad, O)[:, :batch, :]
    return out.reshape(num_layers * batch, O)


gru_module_forward = jax.jit(gru_forward)


# ----------------------------------------------------------------------------
# Pure-JAX f32 reference (same packed (in, 3H) gate layout, r|z|n order)
# ----------------------------------------------------------------------------
def ref_forward(x, layer_params, w_fc, b_fc):
    B, S, _ = x.shape
    inp = x
    h_finals = []
    for (w_ih, b_ih, w_hh, b_hh) in layer_params:
        H = w_hh.shape[0]
        h = jnp.zeros((B, H), jnp.float32)
        ys = []
        for t in range(S):
            x_t = inp[:, t, :]
            gi = x_t @ w_ih + b_ih
            gh = h @ w_hh + b_hh
            r = jax.nn.sigmoid(gi[:, 0:H] + gh[:, 0:H])
            z = jax.nn.sigmoid(gi[:, H:2 * H] + gh[:, H:2 * H])
            n = jnp.tanh(gi[:, 2 * H:3 * H] + r * gh[:, 2 * H:3 * H])
            h = (1.0 - z) * n + z * h
            ys.append(h)
        inp = jnp.stack(ys, axis=1)
        h_finals.append(h)
    h_out = jnp.concatenate(h_finals, axis=0)   # layer-major, matches h_out.view(-1,H)
    return h_out @ w_fc + b_fc


# ----------------------------------------------------------------------------
# Deterministic parameter construction (PyTorch-style U(-1/sqrt(H), 1/sqrt(H)))
# Gate weights packed as (in_dim, 3H) with gate order (r, z, n) along the last dim.
# ----------------------------------------------------------------------------
def init_params(key, input_size, hidden_size, output_size, num_layers):
    stdv = 1.0 / float(hidden_size) ** 0.5
    layer_params = []
    for layer in range(num_layers):
        in_dim = input_size if layer == 0 else hidden_size
        key, k1, k2, k3, k4 = jax.random.split(key, 5)
        w_ih = jax.random.uniform(k1, (in_dim, 3 * hidden_size), jnp.float32, -stdv, stdv)
        b_ih = jax.random.uniform(k2, (1, 3 * hidden_size), jnp.float32, -stdv, stdv)
        w_hh = jax.random.uniform(k3, (hidden_size, 3 * hidden_size), jnp.float32, -stdv, stdv)
        b_hh = jax.random.uniform(k4, (1, 3 * hidden_size), jnp.float32, -stdv, stdv)
        layer_params.append((w_ih, b_ih, w_hh, b_hh))
    key, k5, k6 = jax.random.split(key, 3)
    w_fc = jax.random.uniform(k5, (hidden_size, output_size), jnp.float32, -stdv, stdv)
    b_fc = jax.random.uniform(k6, (1, output_size), jnp.float32, -stdv, stdv)
    return layer_params, w_fc, b_fc


if __name__ == "__main__":
    input_size, hidden_size, output_size, num_layers = 4, 32, 8, 2
    batch, seq = 2, 8

    key = jax.random.PRNGKey(0)
    key, xk = jax.random.split(key)
    x = jax.random.normal(xk, (batch, seq, input_size), jnp.float32)

    layer_params, w_fc, b_fc = init_params(
        key, input_size, hidden_size, output_size, num_layers
    )

    out = gru_module_forward(x, tuple(layer_params), w_fc, b_fc)
    out = jax.block_until_ready(out)

    ref = ref_forward(x, layer_params, w_fc, b_fc)
    assert out.shape == (num_layers * batch, output_size), out.shape
    # bf16 MXU operands (f32 accumulation) -> loosened tolerance vs the f32 reference.
    max_err = float(jnp.max(jnp.abs(out - ref)))
    assert jnp.allclose(out, ref, rtol=3e-2, atol=3e-2), f"max abs err {max_err}"
    print("KERNEL_OK")
</pallas_src>

<mosaic_0001>
module attributes {stable_mosaic.version = 11 : i64} {
  func.func @kernel(%arg0: memref<64x128xbf16, #tpu.memory_space<vmem>>, %arg1: memref<2x128x384xbf16, #tpu.memory_space<vmem>>, %arg2: memref<2x384xf32, #tpu.memory_space<vmem>>, %arg3: memref<2x128x384xbf16, #tpu.memory_space<vmem>>, %arg4: memref<2x128xf32, #tpu.memory_space<vmem>>, %arg5: memref<128x8xbf16, #tpu.memory_space<vmem>>, %arg6: memref<1x8xf32, #tpu.memory_space<vmem>>, %arg7: memref<16x8xf32, #tpu.memory_space<vmem>>, %arg8: memref<64x384xf32, #tpu.memory_space<vmem>>, %arg9: memref<64x128xbf16, #tpu.memory_space<vmem>>, %arg10: memref<16x128xbf16, #tpu.memory_space<vmem>>) attributes {dimension_semantics = [], scalar_prefetch = 0 : i64, scratch_operands = 3 : i64, tpu.core_type = #tpu.core_type<tc>} {
    %c0 = arith.constant 0 : index
    %c0_0 = arith.constant 0 : index
    %0 = vector.load %arg0[%c0, %c0_0] : memref<64x128xbf16, #tpu.memory_space<vmem>>, vector<64x128xbf16>
    %c0_1 = arith.constant 0 : index
    %c0_2 = arith.constant 0 : index
    %c0_3 = arith.constant 0 : index
    %1 = vector.load %arg1[%c0_1, %c0_2, %c0_3] : memref<2x128x384xbf16, #tpu.memory_space<vmem>>, vector<1x128x384xbf16>
    %2 = vector.shape_cast %1 : vector<1x128x384xbf16> to vector<128x384xbf16>
    %c0_4 = arith.constant 0 : index
    %c0_5 = arith.constant 0 : index
    %c0_6 = arith.constant 0 : index
    %3 = vector.load %arg3[%c0_4, %c0_5, %c0_6] : memref<2x128x384xbf16, #tpu.memory_space<vmem>>, vector<1x128x384xbf16>
    %4 = vector.shape_cast %3 : vector<1x128x384xbf16> to vector<128x384xbf16>
    %c0_7 = arith.constant 0 : index
    %c0_8 = arith.constant 0 : index
    %5 = vector.load %arg2[%c0_7, %c0_8] : memref<2x384xf32, #tpu.memory_space<vmem>>, vector<1x384xf32>
    %cst = arith.constant dense<0.000000e+00> : vector<64x384xf32>
    %6 = tpu.matmul %0, %2, %cst {dimension_numbers = #tpu.dot_dimension_numbers<[1], [0], [0], [1], [0, 0, 1, 1], [], []>} : vector<64x128xbf16>, vector<128x384xbf16>, vector<64x384xf32> -> vector<64x384xf32>
    %7 = vector.broadcast %5 : vector<1x384xf32> to vector<64x384xf32>
    %8 = arith.addf %6, %7 : vector<64x384xf32>
    %c0_9 = arith.constant 0 : index
    %c0_10 = arith.constant 0 : index
    %9 = vector.load %arg8[%c0_9, %c0_10] : memref<64x384xf32, #tpu.memory_space<vmem>>, vector<64x384xf32>
    tpu.vector_store %arg8[%c0_9, %c0_10], %8 {strides = array<i32>} : memref<64x384xf32, #tpu.memory_space<vmem>>, vector<64x384xf32>,
    %c0_11 = arith.constant 0 : index
    %c0_12 = arith.constant 0 : index
    %10 = vector.load %arg4[%c0_11, %c0_12] : memref<2x128xf32, #tpu.memory_space<vmem>>, vector<1x128xf32>
    %11 = vector.shape_cast %10 : vector<1x128xf32> to vector<1x128xf32>
    %12 = vector.broadcast %11 : vector<1x128xf32> to vector<8x128xf32>
    %cst_13 = arith.constant 0.000000e+00 : f32
    %13 = vector.broadcast %cst_13 : f32 to vector<8x128xf32>
    %c0_14 = arith.constant 0 : index
    %c0_15 = arith.constant 0 : index
    %14 = vector.load %arg8[%c0_14, %c0_15] : memref<64x384xf32, #tpu.memory_space<vmem>>, vector<8x384xf32>
    %15 = arith.truncf %13 : vector<8x128xf32> to vector<8x128xbf16>
    %cst_16 = arith.constant dense<0.000000e+00> : vector<8x384xf32>
    %16 = tpu.matmul %15, %4, %cst_16 {dimension_numbers = #tpu.dot_dimension_numbers<[1], [0], [0], [1], [0, 0, 1, 1], [], []>} : vector<8x128xbf16>, vector<128x384xbf16>, vector<8x384xf32> -> vector<8x384xf32>
    %17 = vector.extract_strided_slice %14 {offsets = [0, 0], sizes = [8, 256], strides = [1, 1]} : vector<8x384xf32> to vector<8x256xf32>
    %18 = vector.extract_strided_slice %16 {offsets = [0, 0], sizes = [8, 256], strides = [1, 1]} : vector<8x384xf32> to vector<8x256xf32>
    %19 = arith.addf %17, %18 : vector<8x256xf32>
    %cst_17 = arith.constant 5.000000e-01 : f32
    %20 = vector.broadcast %cst_17 : f32 to vector<8x256xf32>
    %21 = arith.mulf %20, %19 : vector<8x256xf32>
    %22 = math.tanh %21 : vector<8x256xf32>
    %cst_18 = arith.constant 5.000000e-01 : f32
    %23 = vector.broadcast %cst_18 : f32 to vector<8x256xf32>
    %24 = arith.mulf %23, %22 : vector<8x256xf32>
    %cst_19 = arith.constant 5.000000e-01 : f32
    %25 = vector.broadcast %cst_19 : f32 to vector<8x256xf32>
    %26 = arith.addf %24, %25 : vector<8x256xf32>
    %27 = vector.extract_strided_slice %26 {offsets = [0, 0], sizes = [8, 128], strides = [1, 1]} : vector<8x256xf32> to vector<8x128xf32>
    %28 = vector.extract_strided_slice %26 {offsets = [0, 128], sizes = [8, 128], strides = [1, 1]} : vector<8x256xf32> to vector<8x128xf32>
    %29 = vector.extract_strided_slice %14 {offsets = [0, 256], sizes = [8, 128], strides = [1, 1]} : vector<8x384xf32> to vector<8x128xf32>
    %30 = vector.extract_strided_slice %16 {offsets = [0, 256], sizes = [8, 128], strides = [1, 1]} : vector<8x384xf32> to vector<8x128xf32>
    %31 = arith.addf %30, %12 : vector<8x128xf32>
    %32 = arith.mulf %27, %31 : vector<8x128xf32>
    %33 = arith.addf %29, %32 : vector<8x128xf32>
    %34 = math.tanh %33 : vector<8x128xf32>
    %35 = arith.subf %13, %34 : vector<8x128xf32>
    %36 = arith.mulf %28, %35 : vector<8x128xf32>
    %37 = arith.addf %34, %36 : vector<8x128xf32>
    %38 = arith.truncf %37 : vector<8x128xf32> to vector<8x128xbf16>
    %c0_20 = arith.constant 0 : index
    %c0_21 = arith.constant 0 : index
    %39 = vector.load %arg9[%c0_20, %c0_21] : memref<64x128xbf16, #tpu.memory_space<vmem>>, vector<8x128xbf16>
    tpu.vector_store %arg9[%c0_20, %c0_21], %38 {strides = array<i32>} : memref<64x128xbf16, #tpu.memory_space<vmem>>, vector<8x128xbf16>,
    %c8 = arith.constant 8 : index
    %c0_22 = arith.constant 0 : index
    %40 = vector.load %arg8[%c8, %c0_22] : memref<64x384xf32, #tpu.memory_space<vmem>>, vector<8x384xf32>
    %41 = arith.truncf %37 : vector<8x128xf32> to vector<8x128xbf16>
    %cst_23 = arith.constant dense<0.000000e+00> : vector<8x384xf32>
    %42 = tpu.matmul %41, %4, %cst_23 {dimension_numbers = #tpu.dot_dimension_numbers<[1], [0], [0], [1], [0, 0, 1, 1], [], []>} : vector<8x128xbf16>, vector<128x384xbf16>, vector<8x384xf32> -> vector<8x384xf32>
    %43 = vector.extract_strided_slice %40 {offsets = [0, 0], sizes = [8, 256], strides = [1, 1]} : vector<8x384xf32> to vector<8x256xf32>
    %44 = vector.extract_strided_slice %42 {offsets = [0, 0], sizes = [8, 256], strides = [1, 1]} : vector<8x384xf32> to vector<8x256xf32>
    %45 = arith.addf %43, %44 : vector<8x256xf32>
    %cst_24 = arith.constant 5.000000e-01 : f32
    %46 = vector.broadcast %cst_24 : f32 to vector<8x256xf32>
    %47 = arith.mulf %46, %45 : vector<8x256xf32>
    %48 = math.tanh %47 : vector<8x256xf32>
    %cst_25 = arith.constant 5.000000e-01 : f32
    %49 = vector.broadcast %cst_25 : f32 to vector<8x256xf32>
    %50 = arith.mulf %49, %48 : vector<8x256xf32>
    %cst_26 = arith.constant 5.000000e-01 : f32
    %51 = vector.broadcast %cst_26 : f32 to vector<8x256xf32>
    %52 = arith.addf %50, %51 : vector<8x256xf32>
    %53 = vector.extract_strided_slice %52 {offsets = [0, 0], sizes = [8, 128], strides = [1, 1]} : vector<8x256xf32> to vector<8x128xf32>
    %54 = vector.extract_strided_slice %52 {offsets = [0, 128], sizes = [8, 128], strides = [1, 1]} : vector<8x256xf32> to vector<8x128xf32>
    %55 = vector.extract_strided_slice %40 {offsets = [0, 256], sizes = [8, 128], strides = [1, 1]} : vector<8x384xf32> to vector<8x128xf32>
    %56 = vector.extract_strided_slice %42 {offsets = [0, 256], sizes = [8, 128], strides = [1, 1]} : vector<8x384xf32> to vector<8x128xf32>
    %57 = arith.addf %56, %12 : vector<8x128xf32>
    %58 = arith.mulf %53, %57 : vector<8x128xf32>
    %59 = arith.addf %55, %58 : vector<8x128xf32>
    %60 = math.tanh %59 : vector<8x128xf32>
    %61 = arith.subf %37, %60 : vector<8x128xf32>
    %62 = arith.mulf %54, %61 : vector<8x128xf32>
    %63 = arith.addf %60, %62 : vector<8x128xf32>
    %64 = arith.truncf %63 : vector<8x128xf32> to vector<8x128xbf16>
    %c8_27 = arith.constant 8 : index
    %c0_28 = arith.constant 0 : index
    %65 = vector.load %arg9[%c8_27, %c0_28] : memref<64x128xbf16, #tpu.memory_space<vmem>>, vector<8x128xbf16>
    tpu.vector_store %arg9[%c8_27, %c0_28], %64 {strides = array<i32>} : memref<64x128xbf16, #tpu.memory_space<vmem>>, vector<8x128xbf16>,
    %c16 = arith.constant 16 : index
    %c0_29 = arith.constant 0 : index
    %66 = vector.load %arg8[%c16, %c0_29] : memref<64x384xf32, #tpu.memory_space<vmem>>, vector<8x384xf32>
    %67 = arith.truncf %63 : vector<8x128xf32> to vector<8x128xbf16>
    %cst_30 = arith.constant dense<0.000000e+00> : vector<8x384xf32>
    %68 = tpu.matmul %67, %4, %cst_30 {dimension_numbers = #tpu.dot_dimension_numbers<[1], [0], [0], [1], [0, 0, 1, 1], [], []>} : vector<8x128xbf16>, vector<128x384xbf16>, vector<8x384xf32> -> vector<8x384xf32>
    %69 = vector.extract_strided_slice %66 {offsets = [0, 0], sizes = [8, 256], strides = [1, 1]} : vector<8x384xf32> to vector<8x256xf32>
    %70 = vector.extract_strided_slice %68 {offsets = [0, 0], sizes = [8, 256], strides = [1, 1]} : vector<8x384xf32> to vector<8x256xf32>
    %71 = arith.addf %69, %70 : vector<8x256xf32>
    %cst_31 = arith.constant 5.000000e-01 : f32
    %72 = vector.broadcast %cst_31 : f32 to vector<8x256xf32>
    %73 = arith.mulf %72, %71 : vector<8x256xf32>
    %74 = math.tanh %73 : vector<8x256xf32>
    %cst_32 = arith.constant 5.000000e-01 : f32
    %75 = vector.broadcast %cst_32 : f32 to vector<8x256xf32>
    %76 = arith.mulf %75, %74 : vector<8x256xf32>
    %cst_33 = arith.constant 5.000000e-01 : f32
    %77 = vector.broadcast %cst_33 : f32 to vector<8x256xf32>
    %78 = arith.addf %76, %77 : vector<8x256xf32>
    %79 = vector.extract_strided_slice %78 {offsets = [0, 0], sizes = [8, 128], strides = [1, 1]} : vector<8x256xf32> to vector<8x128xf32>
    %80 = vector.extract_strided_slice %78 {offsets = [0, 128], sizes = [8, 128], strides = [1, 1]} : vector<8x256xf32> to vector<8x128xf32>
    %81 = vector.extract_strided_slice %66 {offsets = [0, 256], sizes = [8, 128], strides = [1, 1]} : vector<8x384xf32> to vector<8x128xf32>
    %82 = vector.extract_strided_slice %68 {offsets = [0, 256], sizes = [8, 128], strides = [1, 1]} : vector<8x384xf32> to vector<8x128xf32>
    %83 = arith.addf %82, %12 : vector<8x128xf32>
    %84 = arith.mulf %79, %83 : vector<8x128xf32>
    %85 = arith.addf %81, %84 : vector<8x128xf32>
    %86 = math.tanh %85 : vector<8x128xf32>
    %87 = arith.subf %63, %86 : vector<8x128xf32>
    %88 = arith.mulf %80, %87 : vector<8x128xf32>
    %89 = arith.addf %86, %88 : vector<8x128xf32>
    %90 = arith.truncf %89 : vector<8x128xf32> to vector<8x128xbf16>
    %c16_34 = arith.constant 16 : index
    %c0_35 = arith.constant 0 : index
    %91 = vector.load %arg9[%c16_34, %c0_35] : memref<64x128xbf16, #tpu.memory_space<vmem>>, vector<8x128xbf16>
    tpu.vector_store %arg9[%c16_34, %c0_35], %90 {strides = array<i32>} : memref<64x128xbf16, #tpu.memory_space<vmem>>, vector<8x128xbf16>,
    %c24 = arith.constant 24 : index
    %c0_36 = arith.constant 0 : index
    %92 = vector.load %arg8[%c24, %c0_36] : memref<64x384xf32, #tpu.memory_space<vmem>>, vector<8x384xf32>
    %93 = arith.truncf %89 : vector<8x128xf32> to vector<8x128xbf16>
    %cst_37 = arith.constant dense<0.000000e+00> : vector<8x384xf32>
    %94 = tpu.matmul %93, %4, %cst_37 {dimension_numbers = #tpu.dot_dimension_numbers<[1], [0], [0], [1], [0, 0, 1, 1], [], []>} : vector<8x128xbf16>, vector<128x384xbf16>, vector<8x384xf32> -> vector<8x384xf32>
    %95 = vector.extract_strided_slice %92 {offsets = [0, 0], sizes = [8, 256], strides = [1, 1]} : vector<8x384xf32> to vector<8x256xf32>
    %96 = vector.extract_strided_slice %94 {offsets = [0, 0], sizes = [8, 256], strides = [1, 1]} : vector<8x384xf32> to vector<8x256xf32>
    %97 = arith.addf %95, %96 : vector<8x256xf32>
    %cst_38 = arith.constant 5.000000e-01 : f32
    %98 = vector.broadcast %cst_38 : f32 to vector<8x256xf32>
    %99 = arith.mulf %98, %97 : vector<8x256xf32>
    %100 = math.tanh %99 : vector<8x256xf32>
    %cst_39 = arith.constant 5.000000e-01 : f32
    %101 = vector.broadcast %cst_39 : f32 to vector<8x256xf32>
    %102 = arith.mulf %101, %100 : vector<8x256xf32>
    %cst_40 = arith.constant 5.000000e-01 : f32
    %103 = vector.broadcast %cst_40 : f32 to vector<8x256xf32>
    %104 = arith.addf %102, %103 : vector<8x256xf32>
    %105 = vector.extract_strided_slice %104 {offsets = [0, 0], sizes = [8, 128], strides = [1, 1]} : vector<8x256xf32> to vector<8x128xf32>
    %106 = vector.extract_strided_slice %104 {offsets = [0, 128], sizes = [8, 128], strides = [1, 1]} : vector<8x256xf32> to vector<8x128xf32>
    %107 = vector.extract_strided_slice %92 {offsets = [0, 256], sizes = [8, 128], strides = [1, 1]} : vector<8x384xf32> to vector<8x128xf32>
    %108 = vector.extract_strided_slice %94 {offsets = [0, 256], sizes = [8, 128], strides = [1, 1]} : vector<8x384xf32> to vector<8x128xf32>
    %109 = arith.addf %108, %12 : vector<8x128xf32>
    %110 = arith.mulf %105, %109 : vector<8x128xf32>
    %111 = arith.addf %107, %110 : vector<8x128xf32>
    %112 = math.tanh %111 : vector<8x128xf32>
    %113 = arith.subf %89, %112 : vector<8x128xf32>
    %114 = arith.mulf %106, %113 : vector<8x128xf32>
    %115 = arith.addf %112, %114 : vector<8x128xf32>
    %116 = arith.truncf %115 : vector<8x128xf32> to vector<8x128xbf16>
    %c24_41 = arith.constant 24 : index
    %c0_42 = arith.constant 0 : index
    %117 = vector.load %arg9[%c24_41, %c0_42] : memref<64x128xbf16, #tpu.memory_space<vmem>>, vector<8x128xbf16>
    tpu.vector_store %arg9[%c24_41, %c0_42], %116 {strides = array<i32>} : memref<64x128xbf16, #tpu.memory_space<vmem>>, vector<8x128xbf16>,
    %c32 = arith.constant 32 : index
    %c0_43 = arith.constant 0 : index
    %118 = vector.load %arg8[%c32, %c0_43] : memref<64x384xf32, #tpu.memory_space<vmem>>, vector<8x384xf32>
    %119 = arith.truncf %115 : vector<8x128xf32> to vector<8x128xbf16>
    %cst_44 = arith.constant dense<0.000000e+00> : vector<8x384xf32>
    %120 = tpu.matmul %119, %4, %cst_44 {dimension_numbers = #tpu.dot_dimension_numbers<[1], [0], [0], [1], [0, 0, 1, 1], [], []>} : vector<8x128xbf16>, vector<128x384xbf16>, vector<8x384xf32> -> vector<8x384xf32>
    %121 = vector.extract_strided_slice %118 {offsets = [0, 0], sizes = [8, 256], strides = [1, 1]} : vector<8x384xf32> to vector<8x256xf32>
    %122 = vector.extract_strided_slice %120 {offsets = [0, 0], sizes = [8, 256], strides = [1, 1]} : vector<8x384xf32> to vector<8x256xf32>
    %123 = arith.addf %121, %122 : vector<8x256xf32>
    %cst_45 = arith.constant 5.000000e-01 : f32
    %124 = vector.broadcast %cst_45 : f32 to vector<8x256xf32>
    %125 = arith.mulf %124, %123 : vector<8x256xf32>
    %126 = math.tanh %125 : vector<8x256xf32>
    %cst_46 = arith.constant 5.000000e-01 : f32
    %127 = vector.broadcast %cst_46 : f32 to vector<8x256xf32>
    %128 = arith.mulf %127, %126 : vector<8x256xf32>
    %cst_47 = arith.constant 5.000000e-01 : f32
    %129 = vector.broadcast %cst_47 : f32 to vector<8x256xf32>
    %130 = arith.addf %128, %129 : vector<8x256xf32>
    %131 = vector.extract_strided_slice %130 {offsets = [0, 0], sizes = [8, 128], strides = [1, 1]} : vector<8x256xf32> to vector<8x128xf32>
    %132 = vector.extract_strided_slice %130 {offsets = [0, 128], sizes = [8, 128], strides = [1, 1]} : vector<8x256xf32> to vector<8x128xf32>
    %133 = vector.extract_strided_slice %118 {offsets = [0, 256], sizes = [8, 128], strides = [1, 1]} : vector<8x384xf32> to vector<8x128xf32>
    %134 = vector.extract_strided_slice %120 {offsets = [0, 256], sizes = [8, 128], strides = [1, 1]} : vector<8x384xf32> to vector<8x128xf32>
    %135 = arith.addf %134, %12 : vector<8x128xf32>
    %136 = arith.mulf %131, %135 : vector<8x128xf32>
    %137 = arith.addf %133, %136 : vector<8x128xf32>
    %138 = math.tanh %137 : vector<8x128xf32>
    %139 = arith.subf %115, %138 : vector<8x128xf32>
    %140 = arith.mulf %132, %139 : vector<8x128xf32>
    %141 = arith.addf %138, %140 : vector<8x128xf32>
    %142 = arith.truncf %141 : vector<8x128xf32> to vector<8x128xbf16>
    %c32_48 = arith.constant 32 : index
    %c0_49 = arith.constant 0 : index
    %143 = vector.load %arg9[%c32_48, %c0_49] : memref<64x128xbf16, #tpu.memory_space<vmem>>, vector<8x128xbf16>
    tpu.vector_store %arg9[%c32_48, %c0_49], %142 {strides = array<i32>} : memref<64x128xbf16, #tpu.memory_space<vmem>>, vector<8x128xbf16>,
    %c40 = arith.constant 40 : index
    %c0_50 = arith.constant 0 : index
    %144 = vector.load %arg8[%c40, %c0_50] : memref<64x384xf32, #tpu.memory_space<vmem>>, vector<8x384xf32>
    %145 = arith.truncf %141 : vector<8x128xf32> to vector<8x128xbf16>
    %cst_51 = arith.constant dense<0.000000e+00> : vector<8x384xf32>
    %146 = tpu.matmul %145, %4, %cst_51 {dimension_numbers = #tpu.dot_dimension_numbers<[1], [0], [0], [1], [0, 0, 1, 1], [], []>} : vector<8x128xbf16>, vector<128x384xbf16>, vector<8x384xf32> -> vector<8x384xf32>
    %147 = vector.extract_strided_slice %144 {offsets = [0, 0], sizes = [8, 256], strides = [1, 1]} : vector<8x384xf32> to vector<8x256xf32>
    %148 = vector.extract_strided_slice %146 {offsets = [0, 0], sizes = [8, 256], strides = [1, 1]} : vector<8x384xf32> to vector<8x256xf32>
    %149 = arith.addf %147, %148 : vector<8x256xf32>
    %cst_52 = arith.constant 5.000000e-01 : f32
    %150 = vector.broadcast %cst_52 : f32 to vector<8x256xf32>
    %151 = arith.mulf %150, %149 : vector<8x256xf32>
    %152 = math.tanh %151 : vector<8x256xf32>
    %cst_53 = arith.constant 5.000000e-01 : f32
    %153 = vector.broadcast %cst_53 : f32 to vector<8x256xf32>
    %154 = arith.mulf %153, %152 : vector<8x256xf32>
    %cst_54 = arith.constant 5.000000e-01 : f32
    %155 = vector.broadcast %cst_54 : f32 to vector<8x256xf32>
    %156 = arith.addf %154, %155 : vector<8x256xf32>
    %157 = vector.extract_strided_slice %156 {offsets = [0, 0], sizes = [8, 128], strides = [1, 1]} : vector<8x256xf32> to vector<8x128xf32>
    %158 = vector.extract_strided_slice %156 {offsets = [0, 128], sizes = [8, 128], strides = [1, 1]} : vector<8x256xf32> to vector<8x128xf32>
    %159 = vector.extract_strided_slice %144 {offsets = [0, 256], sizes = [8, 128], strides = [1, 1]} : vector<8x384xf32> to vector<8x128xf32>
    %160 = vector.extract_strided_slice %146 {offsets = [0, 256], sizes = [8, 128], strides = [1, 1]} : vector<8x384xf32> to vector<8x128xf32>
    %161 = arith.addf %160, %12 : vector<8x128xf32>
    %162 = arith.mulf %157, %161 : vector<8x128xf32>
    %163 = arith.addf %159, %162 : vector<8x128xf32>
    %164 = math.tanh %163 : vector<8x128xf32>
    %165 = arith.subf %141, %164 : vector<8x128xf32>
    %166 = arith.mulf %158, %165 : vector<8x128xf32>
    %167 = arith.addf %164, %166 : vector<8x128xf32>
    %168 = arith.truncf %167 : vector<8x128xf32> to vector<8x128xbf16>
    %c40_55 = arith.constant 40 : index
    %c0_56 = arith.constant 0 : index
    %169 = vector.load %arg9[%c40_55, %c0_56] : memref<64x128xbf16, #tpu.memory_space<vmem>>, vector<8x128xbf16>
    tpu.vector_store %arg9[%c40_55, %c0_56], %168 {strides = array<i32>} : memref<64x128xbf16, #tpu.memory_space<vmem>>, vector<8x128xbf16>,
    %c48 = arith.constant 48 : index
    %c0_57 = arith.constant 0 : index
    %170 = vector.load %arg8[%c48, %c0_57] : memref<64x384xf32, #tpu.memory_space<vmem>>, vector<8x384xf32>
    %171 = arith.truncf %167 : vector<8x128xf32> to vector<8x128xbf16>
    %cst_58 = arith.constant dense<0.000000e+00> : vector<8x384xf32>
    %172 = tpu.matmul %171, %4, %cst_58 {dimension_numbers = #tpu.dot_dimension_numbers<[1], [0], [0], [1], [0, 0, 1, 1], [], []>} : vector<8x128xbf16>, vector<128x384xbf16>, vector<8x384xf32> -> vector<8x384xf32>
    %173 = vector.extract_strided_slice %170 {offsets = [0, 0], sizes = [8, 256], strides = [1, 1]} : vector<8x384xf32> to vector<8x256xf32>
    %174 = vector.extract_strided_slice %172 {offsets = [0, 0], sizes = [8, 256], strides = [1, 1]} : vector<8x384xf32> to vector<8x256xf32>
    %175 = arith.addf %173, %174 : vector<8x256xf32>
    %cst_59 = arith.constant 5.000000e-01 : f32
    %176 = vector.broadcast %cst_59 : f32 to vector<8x256xf32>
    %177 = arith.mulf %176, %175 : vector<8x256xf32>
    %178 = math.tanh %177 : vector<8x256xf32>
    %cst_60 = arith.constant 5.000000e-01 : f32
    %179 = vector.broadcast %cst_60 : f32 to vector<8x256xf32>
    %180 = arith.mulf %179, %178 : vector<8x256xf32>
    %cst_61 = arith.constant 5.000000e-01 : f32
    %181 = vector.broadcast %cst_61 : f32 to vector<8x256xf32>
    %182 = arith.addf %180, %181 : vector<8x256xf32>
    %183 = vector.extract_strided_slice %182 {offsets = [0, 0], sizes = [8, 128], strides = [1, 1]} : vector<8x256xf32> to vector<8x128xf32>
    %184 = vector.extract_strided_slice %182 {offsets = [0, 128], sizes = [8, 128], strides = [1, 1]} : vector<8x256xf32> to vector<8x128xf32>
    %185 = vector.extract_strided_slice %170 {offsets = [0, 256], sizes = [8, 128], strides = [1, 1]} : vector<8x384xf32> to vector<8x128xf32>
    %186 = vector.extract_strided_slice %172 {offsets = [0, 256], sizes = [8, 128], strides = [1, 1]} : vector<8x384xf32> to vector<8x128xf32>
    %187 = arith.addf %186, %12 : vector<8x128xf32>
    %188 = arith.mulf %183, %187 : vector<8x128xf32>
    %189 = arith.addf %185, %188 : vector<8x128xf32>
    %190 = math.tanh %189 : vector<8x128xf32>
    %191 = arith.subf %167, %190 : vector<8x128xf32>
    %192 = arith.mulf %184, %191 : vector<8x128xf32>
    %193 = arith.addf %190, %192 : vector<8x128xf32>
    %194 = arith.truncf %193 : vector<8x128xf32> to vector<8x128xbf16>
    %c48_62 = arith.constant 48 : index
    %c0_63 = arith.constant 0 : index
    %195 = vector.load %arg9[%c48_62, %c0_63] : memref<64x128xbf16, #tpu.memory_space<vmem>>, vector<8x128xbf16>
    tpu.vector_store %arg9[%c48_62, %c0_63], %194 {strides = array<i32>} : memref<64x128xbf16, #tpu.memory_space<vmem>>, vector<8x128xbf16>,
    %c56 = arith.constant 56 : index
    %c0_64 = arith.constant 0 : index
    %196 = vector.load %arg8[%c56, %c0_64] : memref<64x384xf32, #tpu.memory_space<vmem>>, vector<8x384xf32>
    %197 = arith.truncf %193 : vector<8x128xf32> to vector<8x128xbf16>
    %cst_65 = arith.constant dense<0.000000e+00> : vector<8x384xf32>
    %198 = tpu.matmul %197, %4, %cst_65 {dimension_numbers = #tpu.dot_dimension_numbers<[1], [0], [0], [1], [0, 0, 1, 1], [], []>} : vector<8x128xbf16>, vector<128x384xbf16>, vector<8x384xf32> -> vector<8x384xf32>
    %199 = vector.extract_strided_slice %196 {offsets = [0, 0], sizes = [8, 256], strides = [1, 1]} : vector<8x384xf32> to vector<8x256xf32>
    %200 = vector.extract_strided_slice %198 {offsets = [0, 0], sizes = [8, 256], strides = [1, 1]} : vector<8x384xf32> to vector<8x256xf32>
    %201 = arith.addf %199, %200 : vector<8x256xf32>
    %cst_66 = arith.constant 5.000000e-01 : f32
    %202 = vector.broadcast %cst_66 : f32 to vector<8x256xf32>
    %203 = arith.mulf %202, %201 : vector<8x256xf32>
    %204 = math.tanh %203 : vector<8x256xf32>
    %cst_67 = arith.constant 5.000000e-01 : f32
    %205 = vector.broadcast %cst_67 : f32 to vector<8x256xf32>
    %206 = arith.mulf %205, %204 : vector<8x256xf32>
    %cst_68 = arith.constant 5.000000e-01 : f32
    %207 = vector.broadcast %cst_68 : f32 to vector<8x256xf32>
    %208 = arith.addf %206, %207 : vector<8x256xf32>
    %209 = vector.extract_strided_slice %208 {offsets = [0, 0], sizes = [8, 128], strides = [1, 1]} : vector<8x256xf32> to vector<8x128xf32>
    %210 = vector.extract_strided_slice %208 {offsets = [0, 128], sizes = [8, 128], strides = [1, 1]} : vector<8x256xf32> to vector<8x128xf32>
    %211 = vector.extract_strided_slice %196 {offsets = [0, 256], sizes = [8, 128], strides = [1, 1]} : vector<8x384xf32> to vector<8x128xf32>
    %212 = vector.extract_strided_slice %198 {offsets = [0, 256], sizes = [8, 128], strides = [1, 1]} : vector<8x384xf32> to vector<8x128xf32>
    %213 = arith.addf %212, %12 : vector<8x128xf32>
    %214 = arith.mulf %209, %213 : vector<8x128xf32>
    %215 = arith.addf %211, %214 : vector<8x128xf32>
    %216 = math.tanh %215 : vector<8x128xf32>
    %217 = arith.subf %193, %216 : vector<8x128xf32>
    %218 = arith.mulf %210, %217 : vector<8x128xf32>
    %219 = arith.addf %216, %218 : vector<8x128xf32>
    %220 = arith.truncf %219 : vector<8x128xf32> to vector<8x128xbf16>
    %c56_69 = arith.constant 56 : index
    %c0_70 = arith.constant 0 : index
    %221 = vector.load %arg9[%c56_69, %c0_70] : memref<64x128xbf16, #tpu.memory_space<vmem>>, vector<8x128xbf16>
    tpu.vector_store %arg9[%c56_69, %c0_70], %220 {strides = array<i32>} : memref<64x128xbf16, #tpu.memory_space<vmem>>, vector<8x128xbf16>,
    %222 = arith.truncf %219 : vector<8x128xf32> to vector<8x128xbf16>
    %c0_71 = arith.constant 0 : index
    %c0_72 = arith.constant 0 : index
    %223 = vector.load %arg10[%c0_71, %c0_72] : memref<16x128xbf16, #tpu.memory_space<vmem>>, vector<8x128xbf16>
    tpu.vector_store %arg10[%c0_71, %c0_72], %222 {strides = array<i32>} : memref<16x128xbf16, #tpu.memory_space<vmem>>, vector<8x128xbf16>,
    %c0_73 = arith.constant 0 : index
    %c0_74 = arith.constant 0 : index
    %224 = vector.load %arg9[%c0_73, %c0_74] : memref<64x128xbf16, #tpu.memory_space<vmem>>, vector<64x128xbf16>
    %c1 = arith.constant 1 : index
    %c0_75 = arith.constant 0 : index
    %c0_76 = arith.constant 0 : index
    %225 = vector.load %arg1[%c1, %c0_75, %c0_76] : memref<2x128x384xbf16, #tpu.memory_space<vmem>>, vector<1x128x384xbf16>
    %226 = vector.shape_cast %225 : vector<1x128x384xbf16> to vector<128x384xbf16>
    %c1_77 = arith.constant 1 : index
    %c0_78 = arith.constant 0 : index
    %c0_79 = arith.constant 0 : index
    %227 = vector.load %arg3[%c1_77, %c0_78, %c0_79] : memref<2x128x384xbf16, #tpu.memory_space<vmem>>, vector<1x128x384xbf16>
    %228 = vector.shape_cast %227 : vector<1x128x384xbf16> to vector<128x384xbf16>
    %c1_80 = arith.constant 1 : index
    %c0_81 = arith.constant 0 : index
    %229 = vector.load %arg2[%c1_80, %c0_81] : memref<2x384xf32, #tpu.memory_space<vmem>>, vector<1x384xf32>
    %cst_82 = arith.constant dense<0.000000e+00> : vector<64x384xf32>
    %230 = tpu.matmul %224, %226, %cst_82 {dimension_numbers = #tpu.dot_dimension_numbers<[1], [0], [0], [1], [0, 0, 1, 1], [], []>} : vector<64x128xbf16>, vector<128x384xbf16>, vector<64x384xf32> -> vector<64x384xf32>
    %231 = vector.broadcast %229 : vector<1x384xf32> to vector<64x384xf32>
    %232 = arith.addf %230, %231 : vector<64x384xf32>
    %c0_83 = arith.constant 0 : index
    %c0_84 = arith.constant 0 : index
    %233 = vector.load %arg8[%c0_83, %c0_84] : memref<64x384xf32, #tpu.memory_space<vmem>>, vector<64x384xf32>
    tpu.vector_store %arg8[%c0_83, %c0_84], %232 {strides = array<i32>} : memref<64x384xf32, #tpu.memory_space<vmem>>, vector<64x384xf32>,
    %c1_85 = arith.constant 1 : index
    %c0_86 = arith.constant 0 : index
    %234 = vector.load %arg4[%c1_85, %c0_86] : memref<2x128xf32, #tpu.memory_space<vmem>>, vector<1x128xf32>
    %235 = vector.shape_cast %234 : vector<1x128xf32> to vector<1x128xf32>
    %236 = vector.broadcast %235 : vector<1x128xf32> to vector<8x128xf32>
    %cst_87 = arith.constant 0.000000e+00 : f32
    %237 = vector.broadcast %cst_87 : f32 to vector<8x128xf32>
    %c0_88 = arith.constant 0 : index
    %c0_89 = arith.constant 0 : index
    %238 = vector.load %arg8[%c0_88, %c0_89] : memref<64x384xf32, #tpu.memory_space<vmem>>, vector<8x384xf32>
    %239 = arith.truncf %237 : vector<8x128xf32> to vector<8x128xbf16>
    %cst_90 = arith.constant dense<0.000000e+00> : vector<8x384xf32>
    %240 = tpu.matmul %239, %228, %cst_90 {dimension_numbers = #tpu.dot_dimension_numbers<[1], [0], [0], [1], [0, 0, 1, 1], [], []>} : vector<8x128xbf16>, vector<128x384xbf16>, vector<8x384xf32> -> vector<8x384xf32>
    %241 = vector.extract_strided_slice %238 {offsets = [0, 0], sizes = [8, 256], strides = [1, 1]} : vector<8x384xf32> to vector<8x256xf32>
    %242 = vector.extract_strided_slice %240 {offsets = [0, 0], sizes = [8, 256], strides = [1, 1]} : vector<8x384xf32> to vector<8x256xf32>
    %243 = arith.addf %241, %242 : vector<8x256xf32>
    %cst_91 = arith.constant 5.000000e-01 : f32
    %244 = vector.broadcast %cst_91 : f32 to vector<8x256xf32>
    %245 = arith.mulf %244, %243 : vector<8x256xf32>
    %246 = math.tanh %245 : vector<8x256xf32>
    %cst_92 = arith.constant 5.000000e-01 : f32
    %247 = vector.broadcast %cst_92 : f32 to vector<8x256xf32>
    %248 = arith.mulf %247, %246 : vector<8x256xf32>
    %cst_93 = arith.constant 5.000000e-01 : f32
    %249 = vector.broadcast %cst_93 : f32 to vector<8x256xf32>
    %250 = arith.addf %248, %249 : vector<8x256xf32>
    %251 = vector.extract_strided_slice %250 {offsets = [0, 0], sizes = [8, 128], strides = [1, 1]} : vector<8x256xf32> to vector<8x128xf32>
    %252 = vector.extract_strided_slice %250 {offsets = [0, 128], sizes = [8, 128], strides = [1, 1]} : vector<8x256xf32> to vector<8x128xf32>
    %253 = vector.extract_strided_slice %238 {offsets = [0, 256], sizes = [8, 128], strides = [1, 1]} : vector<8x384xf32> to vector<8x128xf32>
    %254 = vector.extract_strided_slice %240 {offsets = [0, 256], sizes = [8, 128], strides = [1, 1]} : vector<8x384xf32> to vector<8x128xf32>
    %255 = arith.addf %254, %236 : vector<8x128xf32>
    %256 = arith.mulf %251, %255 : vector<8x128xf32>
    %257 = arith.addf %253, %256 : vector<8x128xf32>
    %258 = math.tanh %257 : vector<8x128xf32>
    %259 = arith.subf %237, %258 : vector<8x128xf32>
    %260 = arith.mulf %252, %259 : vector<8x128xf32>
    %261 = arith.addf %258, %260 : vector<8x128xf32>
    %c8_94 = arith.constant 8 : index
    %c0_95 = arith.constant 0 : index
    %262 = vector.load %arg8[%c8_94, %c0_95] : memref<64x384xf32, #tpu.memory_space<vmem>>, vector<8x384xf32>
    %263 = arith.truncf %261 : vector<8x128xf32> to vector<8x128xbf16>
    %cst_96 = arith.constant dense<0.000000e+00> : vector<8x384xf32>
    %264 = tpu.matmul %263, %228, %cst_96 {dimension_numbers = #tpu.dot_dimension_numbers<[1], [0], [0], [1], [0, 0, 1, 1], [], []>} : vector<8x128xbf16>, vector<128x384xbf16>, vector<8x384xf32> -> vector<8x384xf32>
    %265 = vector.extract_strided_slice %262 {offsets = [0, 0], sizes = [8, 256], strides = [1, 1]} : vector<8x384xf32> to vector<8x256xf32>
    %266 = vector.extract_strided_slice %264 {offsets = [0, 0], sizes = [8, 256], strides = [1, 1]} : vector<8x384xf32> to vector<8x256xf32>
    %267 = arith.addf %265, %266 : vector<8x256xf32>
    %cst_97 = arith.constant 5.000000e-01 : f32
    %268 = vector.broadcast %cst_97 : f32 to vector<8x256xf32>
    %269 = arith.mulf %268, %267 : vector<8x256xf32>
    %270 = math.tanh %269 : vector<8x256xf32>
    %cst_98 = arith.constant 5.000000e-01 : f32
    %271 = vector.broadcast %cst_98 : f32 to vector<8x256xf32>
    %272 = arith.mulf %271, %270 : vector<8x256xf32>
    %cst_99 = arith.constant 5.000000e-01 : f32
    %273 = vector.broadcast %cst_99 : f32 to vector<8x256xf32>
    %274 = arith.addf %272, %273 : vector<8x256xf32>
    %275 = vector.extract_strided_slice %274 {offsets = [0, 0], sizes = [8, 128], strides = [1, 1]} : vector<8x256xf32> to vector<8x128xf32>
    %276 = vector.extract_strided_slice %274 {offsets = [0, 128], sizes = [8, 128], strides = [1, 1]} : vector<8x256xf32> to vector<8x128xf32>
    %277 = vector.extract_strided_slice %262 {offsets = [0, 256], sizes = [8, 128], strides = [1, 1]} : vector<8x384xf32> to vector<8x128xf32>
    %278 = vector.extract_strided_slice %264 {offsets = [0, 256], sizes = [8, 128], strides = [1, 1]} : vector<8x384xf32> to vector<8x128xf32>
    %279 = arith.addf %278, %236 : vector<8x128xf32>
    %280 = arith.mulf %275, %279 : vector<8x128xf32>
    %281 = arith.addf %277, %280 : vector<8x128xf32>
    %282 = math.tanh %281 : vector<8x128xf32>
    %283 = arith.subf %261, %282 : vector<8x128xf32>
    %284 = arith.mulf %276, %283 : vector<8x128xf32>
    %285 = arith.addf %282, %284 : vector<8x128xf32>
    %c16_100 = arith.constant 16 : index
    %c0_101 = arith.constant 0 : index
    %286 = vector.load %arg8[%c16_100, %c0_101] : memref<64x384xf32, #tpu.memory_space<vmem>>, vector<8x384xf32>
    %287 = arith.truncf %285 : vector<8x128xf32> to vector<8x128xbf16>
    %cst_102 = arith.constant dense<0.000000e+00> : vector<8x384xf32>
    %288 = tpu.matmul %287, %228, %cst_102 {dimension_numbers = #tpu.dot_dimension_numbers<[1], [0], [0], [1], [0, 0, 1, 1], [], []>} : vector<8x128xbf16>, vector<128x384xbf16>, vector<8x384xf32> -> vector<8x384xf32>
    %289 = vector.extract_strided_slice %286 {offsets = [0, 0], sizes = [8, 256], strides = [1, 1]} : vector<8x384xf32> to vector<8x256xf32>
    %290 = vector.extract_strided_slice %288 {offsets = [0, 0], sizes = [8, 256], strides = [1, 1]} : vector<8x384xf32> to vector<8x256xf32>
    %291 = arith.addf %289, %290 : vector<8x256xf32>
    %cst_103 = arith.constant 5.000000e-01 : f32
    %292 = vector.broadcast %cst_103 : f32 to vector<8x256xf32>
    %293 = arith.mulf %292, %291 : vector<8x256xf32>
    %294 = math.tanh %293 : vector<8x256xf32>
    %cst_104 = arith.constant 5.000000e-01 : f32
    %295 = vector.broadcast %cst_104 : f32 to vector<8x256xf32>
    %296 = arith.mulf %295, %294 : vector<8x256xf32>
    %cst_105 = arith.constant 5.000000e-01 : f32
    %297 = vector.broadcast %cst_105 : f32 to vector<8x256xf32>
    %298 = arith.addf %296, %297 : vector<8x256xf32>
    %299 = vector.extract_strided_slice %298 {offsets = [0, 0], sizes = [8, 128], strides = [1, 1]} : vector<8x256xf32> to vector<8x128xf32>
    %300 = vector.extract_strided_slice %298 {offsets = [0, 128], sizes = [8, 128], strides = [1, 1]} : vector<8x256xf32> to vector<8x128xf32>
    %301 = vector.extract_strided_slice %286 {offsets = [0, 256], sizes = [8, 128], strides = [1, 1]} : vector<8x384xf32> to vector<8x128xf32>
    %302 = vector.extract_strided_slice %288 {offsets = [0, 256], sizes = [8, 128], strides = [1, 1]} : vector<8x384xf32> to vector<8x128xf32>
    %303 = arith.addf %302, %236 : vector<8x128xf32>
    %304 = arith.mulf %299, %303 : vector<8x128xf32>
    %305 = arith.addf %301, %304 : vector<8x128xf32>
    %306 = math.tanh %305 : vector<8x128xf32>
    %307 = arith.subf %285, %306 : vector<8x128xf32>
    %308 = arith.mulf %300, %307 : vector<8x128xf32>
    %309 = arith.addf %306, %308 : vector<8x128xf32>
    %c24_106 = arith.constant 24 : index
    %c0_107 = arith.constant 0 : index
    %310 = vector.load %arg8[%c24_106, %c0_107] : memref<64x384xf32, #tpu.memory_space<vmem>>, vector<8x384xf32>
    %311 = arith.truncf %309 : vector<8x128xf32> to vector<8x128xbf16>
    %cst_108 = arith.constant dense<0.000000e+00> : vector<8x384xf32>
    %312 = tpu.matmul %311, %228, %cst_108 {dimension_numbers = #tpu.dot_dimension_numbers<[1], [0], [0], [1], [0, 0, 1, 1], [], []>} : vector<8x128xbf16>, vector<128x384xbf16>, vector<8x384xf32> -> vector<8x384xf32>
    %313 = vector.extract_strided_slice %310 {offsets = [0, 0], sizes = [8, 256], strides = [1, 1]} : vector<8x384xf32> to vector<8x256xf32>
    %314 = vector.extract_strided_slice %312 {offsets = [0, 0], sizes = [8, 256], strides = [1, 1]} : vector<8x384xf32> to vector<8x256xf32>
    %315 = arith.addf %313, %314 : vector<8x256xf32>
    %cst_109 = arith.constant 5.000000e-01 : f32
    %316 = vector.broadcast %cst_109 : f32 to vector<8x256xf32>
    %317 = arith.mulf %316, %315 : vector<8x256xf32>
    %318 = math.tanh %317 : vector<8x256xf32>
    %cst_110 = arith.constant 5.000000e-01 : f32
    %319 = vector.broadcast %cst_110 : f32 to vector<8x256xf32>
    %320 = arith.mulf %319, %318 : vector<8x256xf32>
    %cst_111 = arith.constant 5.000000e-01 : f32
    %321 = vector.broadcast %cst_111 : f32 to vector<8x256xf32>
    %322 = arith.addf %320, %321 : vector<8x256xf32>
    %323 = vector.extract_strided_slice %322 {offsets = [0, 0], sizes = [8, 128], strides = [1, 1]} : vector<8x256xf32> to vector<8x128xf32>
    %324 = vector.extract_strided_slice %322 {offsets = [0, 128], sizes = [8, 128], strides = [1, 1]} : vector<8x256xf32> to vector<8x128xf32>
    %325 = vector.extract_strided_slice %310 {offsets = [0, 256], sizes = [8, 128], strides = [1, 1]} : vector<8x384xf32> to vector<8x128xf32>
    %326 = vector.extract_strided_slice %312 {offsets = [0, 256], sizes = [8, 128], strides = [1, 1]} : vector<8x384xf32> to vector<8x128xf32>
    %327 = arith.addf %326, %236 : vector<8x128xf32>
    %328 = arith.mulf %323, %327 : vector<8x128xf32>
    %329 = arith.addf %325, %328 : vector<8x128xf32>
    %330 = math.tanh %329 : vector<8x128xf32>
    %331 = arith.subf %309, %330 : vector<8x128xf32>
    %332 = arith.mulf %324, %331 : vector<8x128xf32>
    %333 = arith.addf %330, %332 : vector<8x128xf32>
    %c32_112 = arith.constant 32 : index
    %c0_113 = arith.constant 0 : index
    %334 = vector.load %arg8[%c32_112, %c0_113] : memref<64x384xf32, #tpu.memory_space<vmem>>, vector<8x384xf32>
    %335 = arith.truncf %333 : vector<8x128xf32> to vector<8x128xbf16>
    %cst_114 = arith.constant dense<0.000000e+00> : vector<8x384xf32>
    %336 = tpu.matmul %335, %228, %cst_114 {dimension_numbers = #tpu.dot_dimension_numbers<[1], [0], [0], [1], [0, 0, 1, 1], [], []>} : vector<8x128xbf16>, vector<128x384xbf16>, vector<8x384xf32> -> vector<8x384xf32>
    %337 = vector.extract_strided_slice %334 {offsets = [0, 0], sizes = [8, 256], strides = [1, 1]} : vector<8x384xf32> to vector<8x256xf32>
    %338 = vector.extract_strided_slice %336 {offsets = [0, 0], sizes = [8, 256], strides = [1, 1]} : vector<8x384xf32> to vector<8x256xf32>
    %339 = arith.addf %337, %338 : vector<8x256xf32>
    %cst_115 = arith.constant 5.000000e-01 : f32
    %340 = vector.broadcast %cst_115 : f32 to vector<8x256xf32>
    %341 = arith.mulf %340, %339 : vector<8x256xf32>
    %342 = math.tanh %341 : vector<8x256xf32>
    %cst_116 = arith.constant 5.000000e-01 : f32
    %343 = vector.broadcast %cst_116 : f32 to vector<8x256xf32>
    %344 = arith.mulf %343, %342 : vector<8x256xf32>
    %cst_117 = arith.constant 5.000000e-01 : f32
    %345 = vector.broadcast %cst_117 : f32 to vector<8x256xf32>
    %346 = arith.addf %344, %345 : vector<8x256xf32>
    %347 = vector.extract_strided_slice %346 {offsets = [0, 0], sizes = [8, 128], strides = [1, 1]} : vector<8x256xf32> to vector<8x128xf32>
    %348 = vector.extract_strided_slice %346 {offsets = [0, 128], sizes = [8, 128], strides = [1, 1]} : vector<8x256xf32> to vector<8x128xf32>
    %349 = vector.extract_strided_slice %334 {offsets = [0, 256], sizes = [8, 128], strides = [1, 1]} : vector<8x384xf32> to vector<8x128xf32>
    %350 = vector.extract_strided_slice %336 {offsets = [0, 256], sizes = [8, 128], strides = [1, 1]} : vector<8x384xf32> to vector<8x128xf32>
    %351 = arith.addf %350, %236 : vector<8x128xf32>
    %352 = arith.mulf %347, %351 : vector<8x128xf32>
    %353 = arith.addf %349, %352 : vector<8x128xf32>
    %354 = math.tanh %353 : vector<8x128xf32>
    %355 = arith.subf %333, %354 : vector<8x128xf32>
    %356 = arith.mulf %348, %355 : vector<8x128xf32>
    %357 = arith.addf %354, %356 : vector<8x128xf32>
    %c40_118 = arith.constant 40 : index
    %c0_119 = arith.constant 0 : index
    %358 = vector.load %arg8[%c40_118, %c0_119] : memref<64x384xf32, #tpu.memory_space<vmem>>, vector<8x384xf32>
    %359 = arith.truncf %357 : vector<8x128xf32> to vector<8x128xbf16>
    %cst_120 = arith.constant dense<0.000000e+00> : vector<8x384xf32>
    %360 = tpu.matmul %359, %228, %cst_120 {dimension_numbers = #tpu.dot_dimension_numbers<[1], [0], [0], [1], [0, 0, 1, 1], [], []>} : vector<8x128xbf16>, vector<128x384xbf16>, vector<8x384xf32> -> vector<8x384xf32>
    %361 = vector.extract_strided_slice %358 {offsets = [0, 0], sizes = [8, 256], strides = [1, 1]} : vector<8x384xf32> to vector<8x256xf32>
    %362 = vector.extract_strided_slice %360 {offsets = [0, 0], sizes = [8, 256], strides = [1, 1]} : vector<8x384xf32> to vector<8x256xf32>
    %363 = arith.addf %361, %362 : vector<8x256xf32>
    %cst_121 = arith.constant 5.000000e-01 : f32
    %364 = vector.broadcast %cst_121 : f32 to vector<8x256xf32>
    %365 = arith.mulf %364, %363 : vector<8x256xf32>
    %366 = math.tanh %365 : vector<8x256xf32>
    %cst_122 = arith.constant 5.000000e-01 : f32
    %367 = vector.broadcast %cst_122 : f32 to vector<8x256xf32>
    %368 = arith.mulf %367, %366 : vector<8x256xf32>
    %cst_123 = arith.constant 5.000000e-01 : f32
    %369 = vector.broadcast %cst_123 : f32 to vector<8x256xf32>
    %370 = arith.addf %368, %369 : vector<8x256xf32>
    %371 = vector.extract_strided_slice %370 {offsets = [0, 0], sizes = [8, 128], strides = [1, 1]} : vector<8x256xf32> to vector<8x128xf32>
    %372 = vector.extract_strided_slice %370 {offsets = [0, 128], sizes = [8, 128], strides = [1, 1]} : vector<8x256xf32> to vector<8x128xf32>
    %373 = vector.extract_strided_slice %358 {offsets = [0, 256], sizes = [8, 128], strides = [1, 1]} : vector<8x384xf32> to vector<8x128xf32>
    %374 = vector.extract_strided_slice %360 {offsets = [0, 256], sizes = [8, 128], strides = [1, 1]} : vector<8x384xf32> to vector<8x128xf32>
    %375 = arith.addf %374, %236 : vector<8x128xf32>
    %376 = arith.mulf %371, %375 : vector<8x128xf32>
    %377 = arith.addf %373, %376 : vector<8x128xf32>
    %378 = math.tanh %377 : vector<8x128xf32>
    %379 = arith.subf %357, %378 : vector<8x128xf32>
    %380 = arith.mulf %372, %379 : vector<8x128xf32>
    %381 = arith.addf %378, %380 : vector<8x128xf32>
    %c48_124 = arith.constant 48 : index
    %c0_125 = arith.constant 0 : index
    %382 = vector.load %arg8[%c48_124, %c0_125] : memref<64x384xf32, #tpu.memory_space<vmem>>, vector<8x384xf32>
    %383 = arith.truncf %381 : vector<8x128xf32> to vector<8x128xbf16>
    %cst_126 = arith.constant dense<0.000000e+00> : vector<8x384xf32>
    %384 = tpu.matmul %383, %228, %cst_126 {dimension_numbers = #tpu.dot_dimension_numbers<[1], [0], [0], [1], [0, 0, 1, 1], [], []>} : vector<8x128xbf16>, vector<128x384xbf16>, vector<8x384xf32> -> vector<8x384xf32>
    %385 = vector.extract_strided_slice %382 {offsets = [0, 0], sizes = [8, 256], strides = [1, 1]} : vector<8x384xf32> to vector<8x256xf32>
    %386 = vector.extract_strided_slice %384 {offsets = [0, 0], sizes = [8, 256], strides = [1, 1]} : vector<8x384xf32> to vector<8x256xf32>
    %387 = arith.addf %385, %386 : vector<8x256xf32>
    %cst_127 = arith.constant 5.000000e-01 : f32
    %388 = vector.broadcast %cst_127 : f32 to vector<8x256xf32>
    %389 = arith.mulf %388, %387 : vector<8x256xf32>
    %390 = math.tanh %389 : vector<8x256xf32>
    %cst_128 = arith.constant 5.000000e-01 : f32
    %391 = vector.broadcast %cst_128 : f32 to vector<8x256xf32>
    %392 = arith.mulf %391, %390 : vector<8x256xf32>
    %cst_129 = arith.constant 5.000000e-01 : f32
    %393 = vector.broadcast %cst_129 : f32 to vector<8x256xf32>
    %394 = arith.addf %392, %393 : vector<8x256xf32>
    %395 = vector.extract_strided_slice %394 {offsets = [0, 0], sizes = [8, 128], strides = [1, 1]} : vector<8x256xf32> to vector<8x128xf32>
    %396 = vector.extract_strided_slice %394 {offsets = [0, 128], sizes = [8, 128], strides = [1, 1]} : vector<8x256xf32> to vector<8x128xf32>
    %397 = vector.extract_strided_slice %382 {offsets = [0, 256], sizes = [8, 128], strides = [1, 1]} : vector<8x384xf32> to vector<8x128xf32>
    %398 = vector.extract_strided_slice %384 {offsets = [0, 256], sizes = [8, 128], strides = [1, 1]} : vector<8x384xf32> to vector<8x128xf32>
    %399 = arith.addf %398, %236 : vector<8x128xf32>
    %400 = arith.mulf %395, %399 : vector<8x128xf32>
    %401 = arith.addf %397, %400 : vector<8x128xf32>
    %402 = math.tanh %401 : vector<8x128xf32>
    %403 = arith.subf %381, %402 : vector<8x128xf32>
    %404 = arith.mulf %396, %403 : vector<8x128xf32>
    %405 = arith.addf %402, %404 : vector<8x128xf32>
    %c56_130 = arith.constant 56 : index
    %c0_131 = arith.constant 0 : index
    %406 = vector.load %arg8[%c56_130, %c0_131] : memref<64x384xf32, #tpu.memory_space<vmem>>, vector<8x384xf32>
    %407 = arith.truncf %405 : vector<8x128xf32> to vector<8x128xbf16>
    %cst_132 = arith.constant dense<0.000000e+00> : vector<8x384xf32>
    %408 = tpu.matmul %407, %228, %cst_132 {dimension_numbers = #tpu.dot_dimension_numbers<[1], [0], [0], [1], [0, 0, 1, 1], [], []>} : vector<8x128xbf16>, vector<128x384xbf16>, vector<8x384xf32> -> vector<8x384xf32>
    %409 = vector.extract_strided_slice %406 {offsets = [0, 0], sizes = [8, 256], strides = [1, 1]} : vector<8x384xf32> to vector<8x256xf32>
    %410 = vector.extract_strided_slice %408 {offsets = [0, 0], sizes = [8, 256], strides = [1, 1]} : vector<8x384xf32> to vector<8x256xf32>
    %411 = arith.addf %409, %410 : vector<8x256xf32>
    %cst_133 = arith.constant 5.000000e-01 : f32
    %412 = vector.broadcast %cst_133 : f32 to vector<8x256xf32>
    %413 = arith.mulf %412, %411 : vector<8x256xf32>
    %414 = math.tanh %413 : vector<8x256xf32>
    %cst_134 = arith.constant 5.000000e-01 : f32
    %415 = vector.broadcast %cst_134 : f32 to vector<8x256xf32>
    %416 = arith.mulf %415, %414 : vector<8x256xf32>
    %cst_135 = arith.constant 5.000000e-01 : f32
    %417 = vector.broadcast %cst_135 : f32 to vector<8x256xf32>
    %418 = arith.addf %416, %417 : vector<8x256xf32>
    %419 = vector.extract_strided_slice %418 {offsets = [0, 0], sizes = [8, 128], strides = [1, 1]} : vector<8x256xf32> to vector<8x128xf32>
    %420 = vector.extract_strided_slice %418 {offsets = [0, 128], sizes = [8, 128], strides = [1, 1]} : vector<8x256xf32> to vector<8x128xf32>
    %421 = vector.extract_strided_slice %406 {offsets = [0, 256], sizes = [8, 128], strides = [1, 1]} : vector<8x384xf32> to vector<8x128xf32>
    %422 = vector.extract_strided_slice %408 {offsets = [0, 256], sizes = [8, 128], strides = [1, 1]} : vector<8x384xf32> to vector<8x128xf32>
    %423 = arith.addf %422, %236 : vector<8x128xf32>
    %424 = arith.mulf %419, %423 : vector<8x128xf32>
    %425 = arith.addf %421, %424 : vector<8x128xf32>
    %426 = math.tanh %425 : vector<8x128xf32>
    %427 = arith.subf %405, %426 : vector<8x128xf32>
    %428 = arith.mulf %420, %427 : vector<8x128xf32>
    %429 = arith.addf %426, %428 : vector<8x128xf32>
    %430 = arith.truncf %429 : vector<8x128xf32> to vector<8x128xbf16>
    %c8_136 = arith.constant 8 : index
    %c0_137 = arith.constant 0 : index
    %431 = vector.load %arg10[%c8_136, %c0_137] : memref<16x128xbf16, #tpu.memory_space<vmem>>, vector<8x128xbf16>
    tpu.vector_store %arg10[%c8_136, %c0_137], %430 {strides = array<i32>} : memref<16x128xbf16, #tpu.memory_space<vmem>>, vector<8x128xbf16>,
    %c0_138 = arith.constant 0 : index
    %c0_139 = arith.constant 0 : index
    %432 = vector.load %arg10[%c0_138, %c0_139] : memref<16x128xbf16, #tpu.memory_space<vmem>>, vector<16x128xbf16>
    %c0_140 = arith.constant 0 : index
    %c0_141 = arith.constant 0 : index
    %433 = vector.load %arg5[%c0_140, %c0_141] : memref<128x8xbf16, #tpu.memory_space<vmem>>, vector<128x8xbf16>
    %cst_142 = arith.constant dense<0.000000e+00> : vector<16x8xf32>
    %434 = tpu.matmul %432, %433, %cst_142 {dimension_numbers = #tpu.dot_dimension_numbers<[1], [0], [0], [1], [0, 0, 1, 1], [], []>} : vector<16x128xbf16>, vector<128x8xbf16>, vector<16x8xf32> -> vector<16x8xf32>
    %c0_143 = arith.constant 0 : index
    %c0_144 = arith.constant 0 : index
    %435 = vector.load %arg6[%c0_143, %c0_144] : memref<1x8xf32, #tpu.memory_space<vmem>>, vector<1x8xf32>
    %436 = vector.broadcast %435 : vector<1x8xf32> to vector<16x8xf32>
    %437 = arith.addf %434, %436 : vector<16x8xf32>
    %c0_145 = arith.constant 0 : index
    %c0_146 = arith.constant 0 : index
    %438 = vector.load %arg7[%c0_145, %c0_146] : memref<16x8xf32, #tpu.memory_space<vmem>>, vector<16x8xf32>
    tpu.vector_store %arg7[%c0_145, %c0_146], %437 {strides = array<i32>} : memref<16x8xf32, #tpu.memory_space<vmem>>, vector<16x8xf32>,
    return
  }
}

</mosaic_0001>

<llo_original>
// kernel: gru_forward.1
$region0: #{gru_forward.1}
  #allocation0 [shape = 'u32[]', space=smem, size = 0x4, offset = 0x4, fixed_abs, tag = 'smem constant byte address 0x4 - core index']
  #allocation1 [shape = 'u32[144,128]{1,0:T(1,128)}', space=vmem, size = 0x12000, scoped, tag = 'internal scratch']
  #allocation2 [shape = 'f32[64,384]{1,0:T(8,128)}', space=vmem, size = 0x18000, scoped, tag = 'scratch operand']
  #allocation3 [shape = 'bf16[64,128]{1,0:T(8,128)(2,1)}', space=vmem, size = 0x4000, scoped, tag = 'scratch operand']
  #allocation4 [shape = 'bf16[16,128]{1,0:T(8,128)(2,1)}', space=vmem, size = 0x1000, scoped, tag = 'scratch operand']
  %s0 = inlined_call_operand.vmem [shape: bf16[64,128], index: 0, kind: input, shape index: {}]
  %s1 = inlined_call_operand.vmem [shape: bf16[2,128,384], index: 1, kind: input, shape index: {}]
  %s2 = inlined_call_operand.vmem [shape: f32[2,384], index: 2, kind: input, shape index: {}]
  %s3 = inlined_call_operand.vmem [shape: bf16[2,128,384], index: 3, kind: input, shape index: {}]
  %s4 = inlined_call_operand.vmem [shape: f32[2,128], index: 4, kind: input, shape index: {}]
  %s5 = inlined_call_operand.vmem [shape: bf16[128,8], index: 5, kind: input, shape index: {}]
  %s6 = inlined_call_operand.vmem [shape: f32[1,8], index: 6, kind: input, shape index: {}]
  %s7 = inlined_call_operand.vmem [shape: f32[16,8], index: 7, kind: output, shape index: {}]
  %s8 = sld [smem:[#allocation0]]
  $region38: #{gru_forward.1} parent=0
    _
  %s10 = ssub.s32 1, %s8
  %s11 = scalar_select 0, %s10, %s8
  // Predicated region
  $region2: #{gru_forward.1} parent=0 // pred_check
    _
  $region3: #{gru_forward.1} parent=0 // pred_check_branch
    %13 = sbr.rel (0) target = $region5
  $region4: #{gru_forward.1} parent=0 // pred_region
    _
  $region5: #{gru_forward.1} parent=0 // pred_fallthru
    _
  // Predicated region
  $region6: #{gru_forward.1} parent=0 // pred_check
    _
  $region7: #{gru_forward.1} parent=0 // pred_check_branch
    %15 = sbr.rel (0) target = $region9
  $region8: #{gru_forward.1} parent=0 // pred_region
    _
  $region9: #{gru_forward.1} parent=0 // pred_fallthru
    _
  // Predicated region
  $region10: #{gru_forward.1} parent=0 // pred_check
    _
  $region11: #{gru_forward.1} parent=0 // pred_check_branch
    %17 = sbr.rel (0) target = $region13
  $region12: #{gru_forward.1} parent=0 // pred_region
    _
  $region13: #{gru_forward.1} parent=0 // pred_fallthru
    _
  // Predicated region
  $region14: #{gru_forward.1} parent=0 // pred_check
    _
  $region15: #{gru_forward.1} parent=0 // pred_check_branch
    %19 = sbr.rel (0) target = $region17
  $region16: #{gru_forward.1} parent=0 // pred_region
    _
  $region17: #{gru_forward.1} parent=0 // pred_fallthru
    _
  // Predicated region
  $region18: #{gru_forward.1} parent=0 // pred_check
    _
  $region19: #{gru_forward.1} parent=0 // pred_check_branch
    %21 = sbr.rel (0) target = $region21
  $region20: #{gru_forward.1} parent=0 // pred_region
    _
  $region21: #{gru_forward.1} parent=0 // pred_fallthru
    _
  // Predicated region
  $region22: #{gru_forward.1} parent=0 // pred_check
    _
  $region23: #{gru_forward.1} parent=0 // pred_check_branch
    %23 = sbr.rel (0) target = $region25
  $region24: #{gru_forward.1} parent=0 // pred_region
    _
  $region25: #{gru_forward.1} parent=0 // pred_fallthru
    _
  // Predicated region
  $region26: #{gru_forward.1} parent=0 // pred_check
    _
  $region27: #{gru_forward.1} parent=0 // pred_check_branch
    %25 = sbr.rel (0) target = $region29
  $region28: #{gru_forward.1} parent=0 // pred_region
    _
  $region29: #{gru_forward.1} parent=0 // pred_fallthru
    _
  %v27 = vld [vmem:[%s0] sm:$0xf]
  %v28 = vld [vmem:[%s0 + $0x4] sm:$0xf]
  %v29 = vld [vmem:[%s0 + $0x8] sm:$0xf]
  %v30 = vld [vmem:[%s0 + $0xc] sm:$0xf]
  %v31 = vld [vmem:[%s0 + $0x10] sm:$0xf]
  %v32 = vld [vmem:[%s0 + $0x14] sm:$0xf]
  %v33 = vld [vmem:[%s0 + $0x18] sm:$0xf]
  %v34 = vld [vmem:[%s0 + $0x1c] sm:$0xf]
  %v35 = vld [vmem:[%s1] sm:$0xff]
  %v36 = vld [vmem:[%s1 + $0x8] sm:$0xf]
  %v37 = vld [vmem:[%s1 + $0xc] sm:$0xff]
  %v38 = vld [vmem:[%s1 + $0x14] sm:$0xf]
  %v39 = vld [vmem:[%s1 + $0x18] sm:$0xff]
  %v40 = vld [vmem:[%s1 + $0x20] sm:$0xf]
  %v41 = vld [vmem:[%s1 + $0x24] sm:$0xff]
  %v42 = vld [vmem:[%s1 + $0x2c] sm:$0xf]
  %v43 = vld [vmem:[%s1 + $0x30] sm:$0xff]
  %v44 = vld [vmem:[%s1 + $0x38] sm:$0xf]
  %v45 = vld [vmem:[%s1 + $0x3c] sm:$0xff]
  %v46 = vld [vmem:[%s1 + $0x44] sm:$0xf]
  %v47 = vld [vmem:[%s1 + $0x48] sm:$0xff]
  %v48 = vld [vmem:[%s1 + $0x50] sm:$0xf]
  %v49 = vld [vmem:[%s1 + $0x54] sm:$0xff]
  %v50 = vld [vmem:[%s1 + $0x5c] sm:$0xf]
  %v51 = vld [vmem:[%s1 + $0x60] sm:$0xff]
  %v52 = vld [vmem:[%s1 + $0x68] sm:$0xf]
  %v53 = vld [vmem:[%s1 + $0x6c] sm:$0xff]
  %v54 = vld [vmem:[%s1 + $0x74] sm:$0xf]
  %v55 = vld [vmem:[%s1 + $0x78] sm:$0xff]
  %v56 = vld [vmem:[%s1 + $0x80] sm:$0xf]
  %v57 = vld [vmem:[%s1 + $0x84] sm:$0xff]
  %v58 = vld [vmem:[%s1 + $0x8c] sm:$0xf]
  %v59 = vld [vmem:[%s1 + $0x90] sm:$0xff]
  %v60 = vld [vmem:[%s1 + $0x98] sm:$0xf]
  %v61 = vld [vmem:[%s1 + $0x9c] sm:$0xff]
  %v62 = vld [vmem:[%s1 + $0xa4] sm:$0xf]
  %v63 = vld [vmem:[%s1 + $0xa8] sm:$0xff]
  %v64 = vld [vmem:[%s1 + $0xb0] sm:$0xf]
  %v65 = vld [vmem:[%s1 + $0xb4] sm:$0xff]
  %v66 = vld [vmem:[%s1 + $0xbc] sm:$0xf]
  %v67 = vld [vmem:[%s3] sm:$0xff]
  %v68 = vld [vmem:[%s3 + $0x8] sm:$0xf]
  %v69 = vld [vmem:[%s3 + $0xc] sm:$0xff]
  %v70 = vld [vmem:[%s3 + $0x14] sm:$0xf]
  %v71 = vld [vmem:[%s3 + $0x18] sm:$0xff]
  %v72 = vld [vmem:[%s3 + $0x20] sm:$0xf]
  %v73 = vld [vmem:[%s3 + $0x24] sm:$0xff]
  %v74 = vld [vmem:[%s3 + $0x2c] sm:$0xf]
  %v75 = vld [vmem:[%s3 + $0x30] sm:$0xff]
  %v76 = vld [vmem:[%s3 + $0x38] sm:$0xf]
  %v77 = vld [vmem:[%s3 + $0x3c] sm:$0xff]
  %v78 = vld [vmem:[%s3 + $0x44] sm:$0xf]
  %v79 = vld [vmem:[%s3 + $0x48] sm:$0xff]
  %v80 = vld [vmem:[%s3 + $0x50] sm:$0xf]
  %v81 = vld [vmem:[%s3 + $0x54] sm:$0xff]
  %v82 = vld [vmem:[%s3 + $0x5c] sm:$0xf]
  %v83 = vld [vmem:[%s3 + $0x60] sm:$0xff]
  %v84 = vld [vmem:[%s3 + $0x68] sm:$0xf]
  %v85 = vld [vmem:[%s3 + $0x6c] sm:$0xff]
  %v86 = vld [vmem:[%s3 + $0x74] sm:$0xf]
  %v87 = vld [vmem:[%s3 + $0x78] sm:$0xff]
  %v88 = vld [vmem:[%s3 + $0x80] sm:$0xf]
  %v89 = vld [vmem:[%s3 + $0x84] sm:$0xff]
  %v90 = vld [vmem:[%s3 + $0x8c] sm:$0xf]
  %v91 = vld [vmem:[%s3 + $0x90] sm:$0xff]
  %v92 = vld [vmem:[%s3 + $0x98] sm:$0xf]
  %v93 = vld [vmem:[%s3 + $0x9c] sm:$0xff]
  %v94 = vld [vmem:[%s3 + $0xa4] sm:$0xf]
  %v95 = vld [vmem:[%s3 + $0xa8] sm:$0xff]
  %v96 = vld [vmem:[%s3 + $0xb0] sm:$0xf]
  %v97 = vld [vmem:[%s3 + $0xb4] sm:$0xff]
  %v98 = vld [vmem:[%s3 + $0xbc] sm:$0xf]
  %v99 = vld [vmem:[%s2] ss:$2 sm:$0x7]
  %v101 = vlaneseq
  %v102 = vshrl.u32 %v101, 7
  %v103 = vsub.s32 0, %v102
  %v104 = vrot.slane %v99, %v103
  %v105 = vlaneseq
  %v106 = vshrl.u32 %v105, 7
  %v107 = vsub.s32 1, %v106
  %v108 = vrot.slane %v99, %v107
  %v109 = vlaneseq
  %v110 = vshrl.u32 %v109, 7
  %v111 = vsub.s32 2, %v110
  %v112 = vrot.slane %v99, %v111
  %v124 = vunpack.c.l.b16 %v27
  %v125 = vunpack.c.l.b16 %v28
  %v126 = vunpack.c.l.b16 %v29
  %v127 = vunpack.c.l.b16 %v30
  %v128 = vunpack.c.l.b16 %v31
  %v129 = vunpack.c.l.b16 %v32
  %v130 = vunpack.c.l.b16 %v33
  %v131 = vunpack.c.l.b16 %v34
  %v132 = vpack.c.b16 %v125, %v124
  %v133 = vpack.c.b16 %v127, %v126
  %v134 = vpack.c.b16 %v129, %v128
  %v135 = vpack.c.b16 %v131, %v130
  %v172 = vunpack.c.l.b16 %v35
  %v173 = vunpack.c.h.b16 %v35
  %v174 = vunpack.c.l.b16 %v36
  %v175 = vunpack.c.l.b16 %v37
  %v176 = vunpack.c.h.b16 %v37
  %v177 = vunpack.c.l.b16 %v38
  %v178 = vunpack.c.l.b16 %v39
  %v179 = vunpack.c.h.b16 %v39
  %v180 = vunpack.c.l.b16 %v40
  %v181 = vunpack.c.l.b16 %v41
  %v182 = vunpack.c.h.b16 %v41
  %v183 = vunpack.c.l.b16 %v42
  %v184 = vunpack.c.l.b16 %v43
  %v185 = vunpack.c.h.b16 %v43
  %v186 = vunpack.c.l.b16 %v44
  %v187 = vunpack.c.l.b16 %v45
  %v188 = vunpack.c.h.b16 %v45
  %v189 = vunpack.c.l.b16 %v46
  %v190 = vunpack.c.l.b16 %v47
  %v191 = vunpack.c.h.b16 %v47
  %v192 = vunpack.c.l.b16 %v48
  %v193 = vunpack.c.l.b16 %v49
  %v194 = vunpack.c.h.b16 %v49
  %v195 = vunpack.c.l.b16 %v50
  %v196 = vunpack.c.l.b16 %v51
  %v197 = vunpack.c.h.b16 %v51
  %v198 = vunpack.c.l.b16 %v52
  %v199 = vunpack.c.l.b16 %v53
  %v200 = vunpack.c.h.b16 %v53
  %v201 = vunpack.c.l.b16 %v54
  %v202 = vunpack.c.l.b16 %v55
  %v203 = vunpack.c.h.b16 %v55
  %v204 = vunpack.c.l.b16 %v56
  %v205 = vunpack.c.l.b16 %v57
  %v206 = vunpack.c.h.b16 %v57
  %v207 = vunpack.c.l.b16 %v58
  %v208 = vunpack.c.l.b16 %v59
  %v209 = vunpack.c.h.b16 %v59
  %v210 = vunpack.c.l.b16 %v60
  %v211 = vunpack.c.l.b16 %v61
  %v212 = vunpack.c.h.b16 %v61
  %v213 = vunpack.c.l.b16 %v62
  %v214 = vunpack.c.l.b16 %v63
  %v215 = vunpack.c.h.b16 %v63
  %v216 = vunpack.c.l.b16 %v64
  %v217 = vunpack.c.l.b16 %v65
  %v218 = vunpack.c.h.b16 %v65
  %v219 = vunpack.c.l.b16 %v66
  %v220 = vpack.c.b16 %v175, %v172
  %v221 = vpack.c.b16 %v176, %v173
  %v222 = vpack.c.b16 %v177, %v174
  %v223 = vpack.c.b16 %v181, %v178
  %v224 = vpack.c.b16 %v182, %v179
  %v225 = vpack.c.b16 %v183, %v180
  %v226 = vpack.c.b16 %v187, %v184
  %v227 = vpack.c.b16 %v188, %v185
  %v228 = vpack.c.b16 %v189, %v186
  %v229 = vpack.c.b16 %v193, %v190
  %v230 = vpack.c.b16 %v194, %v191
  %v231 = vpack.c.b16 %v195, %v192
  %v232 = vpack.c.b16 %v199, %v196
  %v233 = vpack.c.b16 %v200, %v197
  %v234 = vpack.c.b16 %v201, %v198
  %v235 = vpack.c.b16 %v205, %v202
  %v236 = vpack.c.b16 %v206, %v203
  %v237 = vpack.c.b16 %v207, %v204
  %v238 = vpack.c.b16 %v211, %v208
  %v239 = vpack.c.b16 %v212, %v209
  %v240 = vpack.c.b16 %v213, %v210
  %v241 = vpack.c.b16 %v217, %v214
  %v242 = vpack.c.b16 %v218, %v215
  %v243 = vpack.c.b16 %v219, %v216
  %268 = vmatprep.subr.bf16.mxu0 %v242
  %269 = vmatpush1.bf16.msra.mxu0 %v241
  %270 = vmatprep.subr.bf16.mxu0 %v239
  %271 = vmatpush1.bf16.msra.mxu0 %v238
  %272 = vmatprep.subr.bf16.mxu0 %v236
  %273 = vmatpush1.bf16.msra.mxu0 %v235
  %274 = vmatprep.subr.bf16.mxu0 %v233
  %275 = vmatpush1.bf16.msra.mxu0 %v232
  %276 = vmatprep.subr.bf16.mxu0 %v230
  %277 = vmatpush1.bf16.msra.mxu0 %v229
  %278 = vmatprep.subr.bf16.mxu0 %v227
  %279 = vmatpush1.bf16.msra.mxu0 %v226
  %280 = vmatprep.subr.bf16.mxu0 %v224
  %281 = vmatpush1.bf16.msra.mxu0 %v223
  %282 = vmatprep.subr.bf16.mxu0 %v221
  %283 = vmatpush1.bf16.msra.mxu0 %v220
  %284 = vmatprep.subr.bf16.mxu0 0
  %285 = vmatpush2.bf16.msra.mxu0 0
  %286 = vmatprep.subr.bf16.mxu0 0
  %287 = vmatpush2.bf16.msra.mxu0 0
  %288 = vmatprep.subr.bf16.mxu0 0
  %289 = vmatpush2.bf16.msra.mxu0 0
  %290 = vmatprep.subr.bf16.mxu0 0
  %291 = vmatpush2.bf16.msra.mxu0 0
  %292 = vmatprep.subr.bf16.mxu0 0
  %293 = vmatpush2.bf16.msra.mxu0 0
  %294 = vmatprep.subr.bf16.mxu0 0
  %295 = vmatpush2.bf16.msra.mxu0 0
  %296 = vmatprep.subr.bf16.mxu0 0
  %297 = vmatpush2.bf16.msra.mxu0 0
  %298 = vmatprep.subr.bf16.mxu0 0
  %299 = vmatpush2.bf16.msra.mxu0 0
  %300 = vmatprep.mubr.bf16.mxu0 0
  %301 = vmatmul.mubr.bf16.gmra.mxu0 %v132
  %v302 = vpop.f32.mrf.mxu0
  %v303 = vadd.f32 %v104, %v302
  %v304 = vpop.f32.mrf.mxu0
  %v305 = vadd.f32 %v108, %v304
  %v306 = vpop.f32.mrf.mxu0
  %v307 = vadd.f32 %v104, %v306
  %v308 = vpop.f32.mrf.mxu0
  %v309 = vadd.f32 %v108, %v308
  %310 = vmatprep.mubr.bf16.mxu0 0
  %311 = vmatmul.mubr.bf16.gmra.mxu0 %v133
  %v312 = vpop.f32.mrf.mxu0
  %v313 = vadd.f32 %v104, %v312
  %v314 = vpop.f32.mrf.mxu0
  %v315 = vadd.f32 %v108, %v314
  %v316 = vpop.f32.mrf.mxu0
  %v317 = vadd.f32 %v104, %v316
  %v318 = vpop.f32.mrf.mxu0
  %v319 = vadd.f32 %v108, %v318
  %320 = vmatprep.mubr.bf16.mxu0 0
  %321 = vmatmul.mubr.bf16.gmra.mxu0 %v134
  %v322 = vpop.f32.mrf.mxu0
  %v323 = vadd.f32 %v104, %v322
  %v324 = vpop.f32.mrf.mxu0
  %v325 = vadd.f32 %v108, %v324
  %v326 = vpop.f32.mrf.mxu0
  %v327 = vadd.f32 %v104, %v326
  %v328 = vpop.f32.mrf.mxu0
  %v329 = vadd.f32 %v108, %v328
  %330 = vmatprep.mubr.bf16.mxu0 0
  %331 = vmatmul.mubr.bf16.gmra.mxu0 %v135
  %v332 = vpop.f32.mrf.mxu0
  %v333 = vadd.f32 %v104, %v332
  %v334 = vpop.f32.mrf.mxu0
  %v335 = vadd.f32 %v108, %v334
  %v336 = vpop.f32.mrf.mxu0
  %v337 = vadd.f32 %v104, %v336
  %v338 = vpop.f32.mrf.mxu0
  %v339 = vadd.f32 %v108, %v338
  %340 = vdwg.mxu0
  %341 = vmatprep.subr.bf16.mxu0 0
  %342 = vmatpush1.bf16.msra.mxu0 %v243
  %343 = vmatprep.subr.bf16.mxu0 0
  %344 = vmatpush1.bf16.msra.mxu0 %v240
  %345 = vmatprep.subr.bf16.mxu0 0
  %346 = vmatpush1.bf16.msra.mxu0 %v237
  %347 = vmatprep.subr.bf16.mxu0 0
  %348 = vmatpush1.bf16.msra.mxu0 %v234
  %349 = vmatprep.subr.bf16.mxu0 0
  %350 = vmatpush1.bf16.msra.mxu0 %v231
  %351 = vmatprep.subr.bf16.mxu0 0
  %352 = vmatpush1.bf16.msra.mxu0 %v228
  %353 = vmatprep.subr.bf16.mxu0 0
  %354 = vmatpush1.bf16.msra.mxu0 %v225
  %355 = vmatprep.subr.bf16.mxu0 0
  %356 = vmatpush1.bf16.msra.mxu0 %v222
  %357 = vmatprep.subr.bf16.mxu0 0
  %358 = vmatpush2.bf16.msra.mxu0 0
  %359 = vmatprep.subr.bf16.mxu0 0
  %360 = vmatpush2.bf16.msra.mxu0 0
  %361 = vmatprep.subr.bf16.mxu0 0
  %362 = vmatpush2.bf16.msra.mxu0 0
  %363 = vmatprep.subr.bf16.mxu0 0
  %364 = vmatpush2.bf16.msra.mxu0 0
  %365 = vmatprep.subr.bf16.mxu0 0
  %366 = vmatpush2.bf16.msra.mxu0 0
  %367 = vmatprep.subr.bf16.mxu0 0
  %368 = vmatpush2.bf16.msra.mxu0 0
  %369 = vmatprep.subr.bf16.mxu0 0
  %370 = vmatpush2.bf16.msra.mxu0 0
  %371 = vmatprep.subr.bf16.mxu0 0
  %372 = vmatpush2.bf16.msra.mxu0 0
  %373 = vmatprep.mubr.bf16.mxu0 0
  %374 = vmatmul.mubr.bf16.gmra.mxu0 %v132
  %v375 = vpop.f32.mrf.mxu0
  %v376 = vadd.f32 %v112, %v375
  %v377 = vpop.f32.mrf.mxu0
  %v378 = vpop.f32.mrf.mxu0
  %v379 = vadd.f32 %v112, %v378
  %v380 = vpop.f32.mrf.mxu0
  %381 = vmatprep.mubr.bf16.mxu0 0
  %382 = vmatmul.mubr.bf16.gmra.mxu0 %v133
  %v383 = vpop.f32.mrf.mxu0
  %v384 = vadd.f32 %v112, %v383
  %v385 = vpop.f32.mrf.mxu0
  %v386 = vpop.f32.mrf.mxu0
  %v387 = vadd.f32 %v112, %v386
  %v388 = vpop.f32.mrf.mxu0
  %389 = vmatprep.mubr.bf16.mxu0 0
  %390 = vmatmul.mubr.bf16.gmra.mxu0 %v134
  %v391 = vpop.f32.mrf.mxu0
  %v392 = vadd.f32 %v112, %v391
  %v393 = vpop.f32.mrf.mxu0
  %v394 = vpop.f32.mrf.mxu0
  %v395 = vadd.f32 %v112, %v394
  %v396 = vpop.f32.mrf.mxu0
  %397 = vmatprep.mubr.bf16.mxu0 0
  %398 = vmatmul.mubr.bf16.gmra.mxu0 %v135
  %v399 = vpop.f32.mrf.mxu0
  %v400 = vadd.f32 %v112, %v399
  %v401 = vpop.f32.mrf.mxu0
  %v402 = vpop.f32.mrf.mxu0
  %v403 = vadd.f32 %v112, %v402
  %v404 = vpop.f32.mrf.mxu0
  %405 = vdwg.mxu0
  %406 = vst [vmem:[#allocation2] sm:$0xff] %v303
  %407 = vst [vmem:[#allocation2 + $0x8] sm:$0xff] %v305
  %408 = vst [vmem:[#allocation2 + $0x10] sm:$0xff] %v376
  %409 = vst [vmem:[#allocation2 + $0x18] sm:$0xff] %v307
  %410 = vst [vmem:[#allocation2 + $0x20] sm:$0xff] %v309
  %411 = vst [vmem:[#allocation2 + $0x28] sm:$0xff] %v379
  %412 = vst [vmem:[#allocation2 + $0x30] sm:$0xff] %v313
  %413 = vst [vmem:[#allocation2 + $0x38] sm:$0xff] %v315
  %414 = vst [vmem:[#allocation2 + $0x40] sm:$0xff] %v384
  %415 = vst [vmem:[#allocation2 + $0x48] sm:$0xff] %v317
  %416 = vst [vmem:[#allocation2 + $0x50] sm:$0xff] %v319
  %417 = vst [vmem:[#allocation2 + $0x58] sm:$0xff] %v387
  %418 = vst [vmem:[#allocation2 + $0x60] sm:$0xff] %v323
  %419 = vst [vmem:[#allocation2 + $0x68] sm:$0xff] %v325
  %420 = vst [vmem:[#allocation2 + $0x70] sm:$0xff] %v392
  %421 = vst [vmem:[#allocation2 + $0x78] sm:$0xff] %v327
  %422 = vst [vmem:[#allocation2 + $0x80] sm:$0xff] %v329
  %423 = vst [vmem:[#allocation2 + $0x88] sm:$0xff] %v395
  %424 = vst [vmem:[#allocation2 + $0x90] sm:$0xff] %v333
  %425 = vst [vmem:[#allocation2 + $0x98] sm:$0xff] %v335
  %426 = vst [vmem:[#allocation2 + $0xa0] sm:$0xff] %v400
  %427 = vst [vmem:[#allocation2 + $0xa8] sm:$0xff] %v337
  %428 = vst [vmem:[#allocation2 + $0xb0] sm:$0xff] %v339
  %429 = vst [vmem:[#allocation2 + $0xb8] sm:$0xff] %v403
  %v430 = vld [vmem:[%s4] sm:$0x1]
  %v431 = vlaneseq
  %v432 = vshrl.u32 %v431, 7
  %v433 = vsub.s32 0, %v432
  %v434 = vrot.slane %v430, %v433
  %v435 = vld [vmem:[#allocation2] sm:$0xff]
  %v436 = vld [vmem:[#allocation2 + $0x8] sm:$0xff]
  %v437 = vld [vmem:[#allocation2 + $0x10] sm:$0xff]
  %v470 = vunpack.c.l.b16 %v67
  %v471 = vunpack.c.h.b16 %v67
  %v472 = vunpack.c.l.b16 %v68
  %v473 = vunpack.c.l.b16 %v69
  %v474 = vunpack.c.h.b16 %v69
  %v475 = vunpack.c.l.b16 %v70
  %v476 = vunpack.c.l.b16 %v71
  %v477 = vunpack.c.h.b16 %v71
  %v478 = vunpack.c.l.b16 %v72
  %v479 = vunpack.c.l.b16 %v73
  %v480 = vunpack.c.h.b16 %v73
  %v481 = vunpack.c.l.b16 %v74
  %v482 = vunpack.c.l.b16 %v75
  %v483 = vunpack.c.h.b16 %v75
  %v484 = vunpack.c.l.b16 %v76
  %v485 = vunpack.c.l.b16 %v77
  %v486 = vunpack.c.h.b16 %v77
  %v487 = vunpack.c.l.b16 %v78
  %v488 = vunpack.c.l.b16 %v79
  %v489 = vunpack.c.h.b16 %v79
  %v490 = vunpack.c.l.b16 %v80
  %v491 = vunpack.c.l.b16 %v81
  %v492 = vunpack.c.h.b16 %v81
  %v493 = vunpack.c.l.b16 %v82
  %v494 = vunpack.c.l.b16 %v83
  %v495 = vunpack.c.h.b16 %v83
  %v496 = vunpack.c.l.b16 %v84
  %v497 = vunpack.c.l.b16 %v85
  %v498 = vunpack.c.h.b16 %v85
  %v499 = vunpack.c.l.b16 %v86
  %v500 = vunpack.c.l.b16 %v87
  %v501 = vunpack.c.h.b16 %v87
  %v502 = vunpack.c.l.b16 %v88
  %v503 = vunpack.c.l.b16 %v89
  %v504 = vunpack.c.h.b16 %v89
  %v505 = vunpack.c.l.b16 %v90
  %v506 = vunpack.c.l.b16 %v91
  %v507 = vunpack.c.h.b16 %v91
  %v508 = vunpack.c.l.b16 %v92
  %v509 = vunpack.c.l.b16 %v93
  %v510 = vunpack.c.h.b16 %v93
  %v511 = vunpack.c.l.b16 %v94
  %v512 = vunpack.c.l.b16 %v95
  %v513 = vunpack.c.h.b16 %v95
  %v514 = vunpack.c.l.b16 %v96
  %v515 = vunpack.c.l.b16 %v97
  %v516 = vunpack.c.h.b16 %v97
  %v517 = vunpack.c.l.b16 %v98
  %v518 = vpack.c.b16 %v473, %v470
  %v519 = vpack.c.b16 %v474, %v471
  %v520 = vpack.c.b16 %v475, %v472
  %v521 = vpack.c.b16 %v479, %v476
  %v522 = vpack.c.b16 %v480, %v477
  %v523 = vpack.c.b16 %v481, %v478
  %v524 = vpack.c.b16 %v485, %v482
  %v525 = vpack.c.b16 %v486, %v483
  %v526 = vpack.c.b16 %v487, %v484
  %v527 = vpack.c.b16 %v491, %v488
  %v528 = vpack.c.b16 %v492, %v489
  %v529 = vpack.c.b16 %v493, %v490
  %v530 = vpack.c.b16 %v497, %v494
  %v531 = vpack.c.b16 %v498, %v495
  %v532 = vpack.c.b16 %v499, %v496
  %v533 = vpack.c.b16 %v503, %v500
  %v534 = vpack.c.b16 %v504, %v501
  %v535 = vpack.c.b16 %v505, %v502
  %v536 = vpack.c.b16 %v509, %v506
  %v537 = vpack.c.b16 %v510, %v507
  %v538 = vpack.c.b16 %v511, %v508
  %v539 = vpack.c.b16 %v515, %v512
  %v540 = vpack.c.b16 %v516, %v513
  %v541 = vpack.c.b16 %v517, %v514
  %566 = vmatprep.subr.bf16.mxu0 %v540
  %567 = vmatpush1.bf16.msra.mxu0 %v539
  %568 = vmatprep.subr.bf16.mxu0 %v537
  %569 = vmatpush1.bf16.msra.mxu0 %v536
  %570 = vmatprep.subr.bf16.mxu0 %v534
  %571 = vmatpush1.bf16.msra.mxu0 %v533
  %572 = vmatprep.subr.bf16.mxu0 %v531
  %573 = vmatpush1.bf16.msra.mxu0 %v530
  %574 = vmatprep.subr.bf16.mxu0 %v528
  %575 = vmatpush1.bf16.msra.mxu0 %v527
  %576 = vmatprep.subr.bf16.mxu0 %v525
  %577 = vmatpush1.bf16.msra.mxu0 %v524
  %578 = vmatprep.subr.bf16.mxu0 %v522
  %579 = vmatpush1.bf16.msra.mxu0 %v521
  %580 = vmatprep.subr.bf16.mxu0 %v519
  %581 = vmatpush1.bf16.msra.mxu0 %v518
  %582 = vmatprep.subr.bf16.mxu0 0
  %583 = vmatpush2.bf16.msra.mxu0 0
  %584 = vmatprep.subr.bf16.mxu0 0
  %585 = vmatpush2.bf16.msra.mxu0 0
  %586 = vmatprep.subr.bf16.mxu0 0
  %587 = vmatpush2.bf16.msra.mxu0 0
  %588 = vmatprep.subr.bf16.mxu0 0
  %589 = vmatpush2.bf16.msra.mxu0 0
  %590 = vmatprep.subr.bf16.mxu0 0
  %591 = vmatpush2.bf16.msra.mxu0 0
  %592 = vmatprep.subr.bf16.mxu0 0
  %593 = vmatpush2.bf16.msra.mxu0 0
  %594 = vmatprep.subr.bf16.mxu0 0
  %595 = vmatpush2.bf16.msra.mxu0 0
  %596 = vmatprep.subr.bf16.mxu0 0
  %597 = vmatpush2.bf16.msra.mxu0 0
  %598 = vmatprep.mubr.bf16.mxu0 0
  %599 = vmatmul.mubr.bf16.gmra.mxu0 0
  %v600 = vpop.f32.mrf.mxu0
  %v601 = vadd.f32 0.0, %v600
  %v602 = vpop.f32.mrf.mxu0
  %v603 = vadd.f32 0.0, %v602
  %v604 = vpop.f32.mrf.mxu0
  %v605 = vpop.f32.mrf.mxu0
  %606 = vdwg.mxu0
  %607 = vmatprep.subr.bf16.mxu0 0
  %608 = vmatpush1.bf16.msra.mxu0 %v541
  %609 = vmatprep.subr.bf16.mxu0 0
  %610 = vmatpush1.bf16.msra.mxu0 %v538
  %611 = vmatprep.subr.bf16.mxu0 0
  %612 = vmatpush1.bf16.msra.mxu0 %v535
  %613 = vmatprep.subr.bf16.mxu0 0
  %614 = vmatpush1.bf16.msra.mxu0 %v532
  %615 = vmatprep.subr.bf16.mxu0 0
  %616 = vmatpush1.bf16.msra.mxu0 %v529
  %617 = vmatprep.subr.bf16.mxu0 0
  %618 = vmatpush1.bf16.msra.mxu0 %v526
  %619 = vmatprep.subr.bf16.mxu0 0
  %620 = vmatpush1.bf16.msra.mxu0 %v523
  %621 = vmatprep.subr.bf16.mxu0 0
  %622 = vmatpush1.bf16.msra.mxu0 %v520
  %623 = vmatprep.subr.bf16.mxu0 0
  %624 = vmatpush2.bf16.msra.mxu0 0
  %625 = vmatprep.subr.bf16.mxu0 0
  %626 = vmatpush2.bf16.msra.mxu0 0
  %627 = vmatprep.subr.bf16.mxu0 0
  %628 = vmatpush2.bf16.msra.mxu0 0
  %629 = vmatprep.subr.bf16.mxu0 0
  %630 = vmatpush2.bf16.msra.mxu0 0
  %631 = vmatprep.subr.bf16.mxu0 0
  %632 = vmatpush2.bf16.msra.mxu0 0
  %633 = vmatprep.subr.bf16.mxu0 0
  %634 = vmatpush2.bf16.msra.mxu0 0
  %635 = vmatprep.subr.bf16.mxu0 0
  %636 = vmatpush2.bf16.msra.mxu0 0
  %637 = vmatprep.subr.bf16.mxu0 0
  %638 = vmatpush2.bf16.msra.mxu0 0
  %639 = vmatprep.mubr.bf16.mxu0 0
  %640 = vmatmul.mubr.bf16.gmra.mxu0 0
  %v641 = vpop.f32.mrf.mxu0
  %v642 = vadd.f32 0.0, %v641
  %v643 = vpop.f32.mrf.mxu0
  %v644 = vpop.f32.mrf.mxu0
  %v645 = vpop.f32.mrf.mxu0
  %646 = vdwg.mxu0
  %v647 = vadd.f32 %v435, %v601
  %v648 = vadd.f32 %v436, %v603
  %v649 = vmul.f32 %v647, 0.5
  %v650 = vmul.f32 %v648, 0.5
  %v651 = vtanh.pop %v649
  %v652 = vtanh.pop %v650
  %v653 = vmul.f32 %v651, 0.5
  %v654 = vmul.f32 %v652, 0.5
  %v655 = vadd.f32 %v653, 0.5
  %v656 = vadd.f32 %v654, 0.5
  %v657 = vadd.f32 %v642, %v434
  %v658 = vmul.f32 %v655, %v657
  %v659 = vadd.f32 %v437, %v658
  %v660 = vtanh.pop %v659
  %v661 = vsub.f32 0.0, %v660
  %v662 = vmul.f32 %v656, %v661
  %v663 = vadd.f32 %v660, %v662
  %v664 = vpack.c.bf16 %v663, %v663
  %665 = vst [vmem:[#allocation3] sm:$0xf] %v664
  %v666 = vld [vmem:[#allocation2 + $0x18] sm:$0xff]
  %v667 = vld [vmem:[#allocation2 + $0x20] sm:$0xff]
  %v668 = vld [vmem:[#allocation2 + $0x28] sm:$0xff]
  %669 = vmatprep.subr.bf16.mxu0 %v540
  %670 = vmatpush1.bf16.msra.mxu0 %v539
  %671 = vmatprep.subr.bf16.mxu0 %v537
  %672 = vmatpush1.bf16.msra.mxu0 %v536
  %673 = vmatprep.subr.bf16.mxu0 %v534
  %674 = vmatpush1.bf16.msra.mxu0 %v533
  %675 = vmatprep.subr.bf16.mxu0 %v531
  %676 = vmatpush1.bf16.msra.mxu0 %v530
  %677 = vmatprep.subr.bf16.mxu0 %v528
  %678 = vmatpush1.bf16.msra.mxu0 %v527
  %679 = vmatprep.subr.bf16.mxu0 %v525
  %680 = vmatpush1.bf16.msra.mxu0 %v524
  %681 = vmatprep.subr.bf16.mxu0 %v522
  %682 = vmatpush1.bf16.msra.mxu0 %v521
  %683 = vmatprep.subr.bf16.mxu0 %v519
  %684 = vmatpush1.bf16.msra.mxu0 %v518
  %685 = vmatprep.subr.bf16.mxu0 0
  %686 = vmatpush2.bf16.msra.mxu0 0
  %687 = vmatprep.subr.bf16.mxu0 0
  %688 = vmatpush2.bf16.msra.mxu0 0
  %689 = vmatprep.subr.bf16.mxu0 0
  %690 = vmatpush2.bf16.msra.mxu0 0
  %691 = vmatprep.subr.bf16.mxu0 0
  %692 = vmatpush2.bf16.msra.mxu0 0
  %693 = vmatprep.subr.bf16.mxu0 0
  %694 = vmatpush2.bf16.msra.mxu0 0
  %695 = vmatprep.subr.bf16.mxu0 0
  %696 = vmatpush2.bf16.msra.mxu0 0
  %697 = vmatprep.subr.bf16.mxu0 0
  %698 = vmatpush2.bf16.msra.mxu0 0
  %699 = vmatprep.subr.bf16.mxu0 0
  %700 = vmatpush2.bf16.msra.mxu0 0
  %701 = vmatprep.mubr.bf16.mxu0 0
  %702 = vmatmul.mubr.bf16.gmra.mxu0 %v664
  %v703 = vpop.f32.mrf.mxu0
  %v704 = vadd.f32 0.0, %v703
  %v705 = vpop.f32.mrf.mxu0
  %v706 = vadd.f32 0.0, %v705
  %v707 = vpop.f32.mrf.mxu0
  %v708 = vpop.f32.mrf.mxu0
  %709 = vdwg.mxu0
  %710 = vmatprep.subr.bf16.mxu0 0
  %711 = vmatpush1.bf16.msra.mxu0 %v541
  %712 = vmatprep.subr.bf16.mxu0 0
  %713 = vmatpush1.bf16.msra.mxu0 %v538
  %714 = vmatprep.subr.bf16.mxu0 0
  %715 = vmatpush1.bf16.msra.mxu0 %v535
  %716 = vmatprep.subr.bf16.mxu0 0
  %717 = vmatpush1.bf16.msra.mxu0 %v532
  %718 = vmatprep.subr.bf16.mxu0 0
  %719 = vmatpush1.bf16.msra.mxu0 %v529
  %720 = vmatprep.subr.bf16.mxu0 0
  %721 = vmatpush1.bf16.msra.mxu0 %v526
  %722 = vmatprep.subr.bf16.mxu0 0
  %723 = vmatpush1.bf16.msra.mxu0 %v523
  %724 = vmatprep.subr.bf16.mxu0 0
  %725 = vmatpush1.bf16.msra.mxu0 %v520
  %726 = vmatprep.subr.bf16.mxu0 0
  %727 = vmatpush2.bf16.msra.mxu0 0
  %728 = vmatprep.subr.bf16.mxu0 0
  %729 = vmatpush2.bf16.msra.mxu0 0
  %730 = vmatprep.subr.bf16.mxu0 0
  %731 = vmatpush2.bf16.msra.mxu0 0
  %732 = vmatprep.subr.bf16.mxu0 0
  %733 = vmatpush2.bf16.msra.mxu0 0
  %734 = vmatprep.subr.bf16.mxu0 0
  %735 = vmatpush2.bf16.msra.mxu0 0
  %736 = vmatprep.subr.bf16.mxu0 0
  %737 = vmatpush2.bf16.msra.mxu0 0
  %738 = vmatprep.subr.bf16.mxu0 0
  %739 = vmatpush2.bf16.msra.mxu0 0
  %740 = vmatprep.subr.bf16.mxu0 0
  %741 = vmatpush2.bf16.msra.mxu0 0
  %742 = vmatprep.mubr.bf16.mxu0 0
  %743 = vmatmul.mubr.bf16.gmra.mxu0 %v664
  %v744 = vpop.f32.mrf.mxu0
  %v745 = vadd.f32 0.0, %v744
  %v746 = vpop.f32.mrf.mxu0
  %v747 = vpop.f32.mrf.mxu0
  %v748 = vpop.f32.mrf.mxu0
  %749 = vdwg.mxu0
  %v750 = vadd.f32 %v666, %v704
  %v751 = vadd.f32 %v667, %v706
  %v752 = vmul.f32 %v750, 0.5
  %v753 = vmul.f32 %v751, 0.5
  %v754 = vtanh.pop %v752
  %v755 = vtanh.pop %v753
  %v756 = vmul.f32 %v754, 0.5
  %v757 = vmul.f32 %v755, 0.5
  %v758 = vadd.f32 %v756, 0.5
  %v759 = vadd.f32 %v757, 0.5
  %v760 = vadd.f32 %v745, %v434
  %v761 = vmul.f32 %v758, %v760
  %v762 = vadd.f32 %v668, %v761
  %v763 = vtanh.pop %v762
  %v764 = vsub.f32 %v663, %v763
  %v765 = vmul.f32 %v759, %v764
  %v766 = vadd.f32 %v763, %v765
  %v767 = vpack.c.bf16 %v766, %v766
  %768 = vst [vmem:[#allocation3 + $0x4] sm:$0xf] %v767
  %v769 = vld [vmem:[#allocation2 + $0x30] sm:$0xff]
  %v770 = vld [vmem:[#allocation2 + $0x38] sm:$0xff]
  %v771 = vld [vmem:[#allocation2 + $0x40] sm:$0xff]
  %772 = vmatprep.subr.bf16.mxu0 %v540
  %773 = vmatpush1.bf16.msra.mxu0 %v539
  %774 = vmatprep.subr.bf16.mxu0 %v537
  %775 = vmatpush1.bf16.msra.mxu0 %v536
  %776 = vmatprep.subr.bf16.mxu0 %v534
  %777 = vmatpush1.bf16.msra.mxu0 %v533
  %778 = vmatprep.subr.bf16.mxu0 %v531
  %779 = vmatpush1.bf16.msra.mxu0 %v530
  %780 = vmatprep.subr.bf16.mxu0 %v528
  %781 = vmatpush1.bf16.msra.mxu0 %v527
  %782 = vmatprep.subr.bf16.mxu0 %v525
  %783 = vmatpush1.bf16.msra.mxu0 %v524
  %784 = vmatprep.subr.bf16.mxu0 %v522
  %785 = vmatpush1.bf16.msra.mxu0 %v521
  %786 = vmatprep.subr.bf16.mxu0 %v519
  %787 = vmatpush1.bf16.msra.mxu0 %v518
  %788 = vmatprep.subr.bf16.mxu0 0
  %789 = vmatpush2.bf16.msra.mxu0 0
  %790 = vmatprep.subr.bf16.mxu0 0
  %791 = vmatpush2.bf16.msra.mxu0 0
  %792 = vmatprep.subr.bf16.mxu0 0
  %793 = vmatpush2.bf16.msra.mxu0 0
  %794 = vmatprep.subr.bf16.mxu0 0
  %795 = vmatpush2.bf16.msra.mxu0 0
  %796 = vmatprep.subr.bf16.mxu0 0
  %797 = vmatpush2.bf16.msra.mxu0 0
  %798 = vmatprep.subr.bf16.mxu0 0
  %799 = vmatpush2.bf16.msra.mxu0 0
  %800 = vmatprep.subr.bf16.mxu0 0
  %801 = vmatpush2.bf16.msra.mxu0 0
  %802 = vmatprep.subr.bf16.mxu0 0
  %803 = vmatpush2.bf16.msra.mxu0 0
  %804 = vmatprep.mubr.bf16.mxu0 0
  %805 = vmatmul.mubr.bf16.gmra.mxu0 %v767
  %v806 = vpop.f32.mrf.mxu0
  %v807 = vadd.f32 0.0, %v806
  %v808 = vpop.f32.mrf.mxu0
  %v809 = vadd.f32 0.0, %v808
  %v810 = vpop.f32.mrf.mxu0
  %v811 = vpop.f32.mrf.mxu0
  %812 = vdwg.mxu0
  %813 = vmatprep.subr.bf16.mxu0 0
  %814 = vmatpush1.bf16.msra.mxu0 %v541
  %815 = vmatprep.subr.bf16.mxu0 0
  %816 = vmatpush1.bf16.msra.mxu0 %v538
  %817 = vmatprep.subr.bf16.mxu0 0
  %818 = vmatpush1.bf16.msra.mxu0 %v535
  %819 = vmatprep.subr.bf16.mxu0 0
  %820 = vmatpush1.bf16.msra.mxu0 %v532
  %821 = vmatprep.subr.bf16.mxu0 0
  %822 = vmatpush1.bf16.msra.mxu0 %v529
  %823 = vmatprep.subr.bf16.mxu0 0
  %824 = vmatpush1.bf16.msra.mxu0 %v526
  %825 = vmatprep.subr.bf16.mxu0 0
  %826 = vmatpush1.bf16.msra.mxu0 %v523
  %827 = vmatprep.subr.bf16.mxu0 0
  %828 = vmatpush1.bf16.msra.mxu0 %v520
  %829 = vmatprep.subr.bf16.mxu0 0
  %830 = vmatpush2.bf16.msra.mxu0 0
  %831 = vmatprep.subr.bf16.mxu0 0
  %832 = vmatpush2.bf16.msra.mxu0 0
  %833 = vmatprep.subr.bf16.mxu0 0
  %834 = vmatpush2.bf16.msra.mxu0 0
  %835 = vmatprep.subr.bf16.mxu0 0
  %836 = vmatpush2.bf16.msra.mxu0 0
  %837 = vmatprep.subr.bf16.mxu0 0
  %838 = vmatpush2.bf16.msra.mxu0 0
  %839 = vmatprep.subr.bf16.mxu0 0
  %840 = vmatpush2.bf16.msra.mxu0 0
  %841 = vmatprep.subr.bf16.mxu0 0
  %842 = vmatpush2.bf16.msra.mxu0 0
  %843 = vmatprep.subr.bf16.mxu0 0
  %844 = vmatpush2.bf16.msra.mxu0 0
  %845 = vmatprep.mubr.bf16.mxu0 0
  %846 = vmatmul.mubr.bf16.gmra.mxu0 %v767
  %v847 = vpop.f32.mrf.mxu0
  %v848 = vadd.f32 0.0, %v847
  %v849 = vpop.f32.mrf.mxu0
  %v850 = vpop.f32.mrf.mxu0
  %v851 = vpop.f32.mrf.mxu0
  %852 = vdwg.mxu0
  %v853 = vadd.f32 %v769, %v807
  %v854 = vadd.f32 %v770, %v809
  %v855 = vmul.f32 %v853, 0.5
  %v856 = vmul.f32 %v854, 0.5
  %v857 = vtanh.pop %v855
  %v858 = vtanh.pop %v856
  %v859 = vmul.f32 %v857, 0.5
  %v860 = vmul.f32 %v858, 0.5
  %v861 = vadd.f32 %v859, 0.5
  %v862 = vadd.f32 %v860, 0.5
  %v863 = vadd.f32 %v848, %v434
  %v864 = vmul.f32 %v861, %v863
  %v865 = vadd.f32 %v771, %v864
  %v866 = vtanh.pop %v865
  %v867 = vsub.f32 %v766, %v866
  %v868 = vmul.f32 %v862, %v867
  %v869 = vadd.f32 %v866, %v868
  %v870 = vpack.c.bf16 %v869, %v869
  %871 = vst [vmem:[#allocation3 + $0x8] sm:$0xf] %v870
  %v872 = vld [vmem:[#allocation2 + $0x48] sm:$0xff]
  %v873 = vld [vmem:[#allocation2 + $0x50] sm:$0xff]
  %v874 = vld [vmem:[#allocation2 + $0x58] sm:$0xff]
  %875 = vmatprep.subr.bf16.mxu0 %v540
  %876 = vmatpush1.bf16.msra.mxu0 %v539
  %877 = vmatprep.subr.bf16.mxu0 %v537
  %878 = vmatpush1.bf16.msra.mxu0 %v536
  %879 = vmatprep.subr.bf16.mxu0 %v534
  %880 = vmatpush1.bf16.msra.mxu0 %v533
  %881 = vmatprep.subr.bf16.mxu0 %v531
  %882 = vmatpush1.bf16.msra.mxu0 %v530
  %883 = vmatprep.subr.bf16.mxu0 %v528
  %884 = vmatpush1.bf16.msra.mxu0 %v527
  %885 = vmatprep.subr.bf16.mxu0 %v525
  %886 = vmatpush1.bf16.msra.mxu0 %v524
  %887 = vmatprep.subr.bf16.mxu0 %v522
  %888 = vmatpush1.bf16.msra.mxu0 %v521
  %889 = vmatprep.subr.bf16.mxu0 %v519
  %890 = vmatpush1.bf16.msra.mxu0 %v518
  %891 = vmatprep.subr.bf16.mxu0 0
  %892 = vmatpush2.bf16.msra.mxu0 0
  %893 = vmatprep.subr.bf16.mxu0 0
  %894 = vmatpush2.bf16.msra.mxu0 0
  %895 = vmatprep.subr.bf16.mxu0 0
  %896 = vmatpush2.bf16.msra.mxu0 0
  %897 = vmatprep.subr.bf16.mxu0 0
  %898 = vmatpush2.bf16.msra.mxu0 0
  %899 = vmatprep.subr.bf16.mxu0 0
  %900 = vmatpush2.bf16.msra.mxu0 0
  %901 = vmatprep.subr.bf16.mxu0 0
  %902 = vmatpush2.bf16.msra.mxu0 0
  %903 = vmatprep.subr.bf16.mxu0 0
  %904 = vmatpush2.bf16.msra.mxu0 0
  %905 = vmatprep.subr.bf16.mxu0 0
  %906 = vmatpush2.bf16.msra.mxu0 0
  %907 = vmatprep.mubr.bf16.mxu0 0
  %908 = vmatmul.mubr.bf16.gmra.mxu0 %v870
  %v909 = vpop.f32.mrf.mxu0
  %v910 = vadd.f32 0.0, %v909
  %v911 = vpop.f32.mrf.mxu0
  %v912 = vadd.f32 0.0, %v911
  %v913 = vpop.f32.mrf.mxu0
  %v914 = vpop.f32.mrf.mxu0
  %915 = vdwg.mxu0
  %916 = vmatprep.subr.bf16.mxu0 0
  %917 = vmatpush1.bf16.msra.mxu0 %v541
  %918 = vmatprep.subr.bf16.mxu0 0
  %919 = vmatpush1.bf16.msra.mxu0 %v538
  %920 = vmatprep.subr.bf16.mxu0 0
  %921 = vmatpush1.bf16.msra.mxu0 %v535
  %922 = vmatprep.subr.bf16.mxu0 0
  %923 = vmatpush1.bf16.msra.mxu0 %v532
  %924 = vmatprep.subr.bf16.mxu0 0
  %925 = vmatpush1.bf16.msra.mxu0 %v529
  %926 = vmatprep.subr.bf16.mxu0 0
  %927 = vmatpush1.bf16.msra.mxu0 %v526
  %928 = vmatprep.subr.bf16.mxu0 0
  %929 = vmatpush1.bf16.msra.mxu0 %v523
  %930 = vmatprep.subr.bf16.mxu0 0
  %931 = vmatpush1.bf16.msra.mxu0 %v520
  %932 = vmatprep.subr.bf16.mxu0 0
  %933 = vmatpush2.bf16.msra.mxu0 0
  %934 = vmatprep.subr.bf16.mxu0 0
  %935 = vmatpush2.bf16.msra.mxu0 0
  %936 = vmatprep.subr.bf16.mxu0 0
  %937 = vmatpush2.bf16.msra.mxu0 0
  %938 = vmatprep.subr.bf16.mxu0 0
  %939 = vmatpush2.bf16.msra.mxu0 0
  %940 = vmatprep.subr.bf16.mxu0 0
  %941 = vmatpush2.bf16.msra.mxu0 0
  %942 = vmatprep.subr.bf16.mxu0 0
  %943 = vmatpush2.bf16.msra.mxu0 0
  %944 = vmatprep.subr.bf16.mxu0 0
  %945 = vmatpush2.bf16.msra.mxu0 0
  %946 = vmatprep.subr.bf16.mxu0 0
  %947 = vmatpush2.bf16.msra.mxu0 0
  %948 = vmatprep.mubr.bf16.mxu0 0
  %949 = vmatmul.mubr.bf16.gmra.mxu0 %v870
  %v950 = vpop.f32.mrf.mxu0
  %v951 = vadd.f32 0.0, %v950
  %v952 = vpop.f32.mrf.mxu0
  %v953 = vpop.f32.mrf.mxu0
  %v954 = vpop.f32.mrf.mxu0
  %955 = vdwg.mxu0
  %v956 = vadd.f32 %v872, %v910
  %v957 = vadd.f32 %v873, %v912
  %v958 = vmul.f32 %v956, 0.5
  %v959 = vmul.f32 %v957, 0.5
  %v960 = vtanh.pop %v958
  %v961 = vtanh.pop %v959
  %v962 = vmul.f32 %v960, 0.5
  %v963 = vmul.f32 %v961, 0.5
  %v964 = vadd.f32 %v962, 0.5
  %v965 = vadd.f32 %v963, 0.5
  %v966 = vadd.f32 %v951, %v434
  %v967 = vmul.f32 %v964, %v966
  %v968 = vadd.f32 %v874, %v967
  %v969 = vtanh.pop %v968
  %v970 = vsub.f32 %v869, %v969
  %v971 = vmul.f32 %v965, %v970
  %v972 = vadd.f32 %v969, %v971
  %v973 = vpack.c.bf16 %v972, %v972
  %974 = vst [vmem:[#allocation3 + $0xc] sm:$0xf] %v973
  %v975 = vld [vmem:[#allocation2 + $0x60] sm:$0xff]
  %v976 = vld [vmem:[#allocation2 + $0x68] sm:$0xff]
  %v977 = vld [vmem:[#allocation2 + $0x70] sm:$0xff]
  %978 = vmatprep.subr.bf16.mxu0 %v540
  %979 = vmatpush1.bf16.msra.mxu0 %v539
  %980 = vmatprep.subr.bf16.mxu0 %v537
  %981 = vmatpush1.bf16.msra.mxu0 %v536
  %982 = vmatprep.subr.bf16.mxu0 %v534
  %983 = vmatpush1.bf16.msra.mxu0 %v533
  %984 = vmatprep.subr.bf16.mxu0 %v531
  %985 = vmatpush1.bf16.msra.mxu0 %v530
  %986 = vmatprep.subr.bf16.mxu0 %v528
  %987 = vmatpush1.bf16.msra.mxu0 %v527
  %988 = vmatprep.subr.bf16.mxu0 %v525
  %989 = vmatpush1.bf16.msra.mxu0 %v524
  %990 = vmatprep.subr.bf16.mxu0 %v522
  %991 = vmatpush1.bf16.msra.mxu0 %v521
  %992 = vmatprep.subr.bf16.mxu0 %v519
  %993 = vmatpush1.bf16.msra.mxu0 %v518
  %994 = vmatprep.subr.bf16.mxu0 0
  %995 = vmatpush2.bf16.msra.mxu0 0
  %996 = vmatprep.subr.bf16.mxu0 0
  %997 = vmatpush2.bf16.msra.mxu0 0
  %998 = vmatprep.subr.bf16.mxu0 0
  %999 = vmatpush2.bf16.msra.mxu0 0
  %1000 = vmatprep.subr.bf16.mxu0 0
  %1001 = vmatpush2.bf16.msra.mxu0 0
  %1002 = vmatprep.subr.bf16.mxu0 0
  %1003 = vmatpush2.bf16.msra.mxu0 0
  %1004 = vmatprep.subr.bf16.mxu0 0
  %1005 = vmatpush2.bf16.msra.mxu0 0
  %1006 = vmatprep.subr.bf16.mxu0 0
  %1007 = vmatpush2.bf16.msra.mxu0 0
  %1008 = vmatprep.subr.bf16.mxu0 0
  %1009 = vmatpush2.bf16.msra.mxu0 0
  %1010 = vmatprep.mubr.bf16.mxu0 0
  %1011 = vmatmul.mubr.bf16.gmra.mxu0 %v973
  %v1012 = vpop.f32.mrf.mxu0
  %v1013 = vadd.f32 0.0, %v1012
  %v1014 = vpop.f32.mrf.mxu0
  %v1015 = vadd.f32 0.0, %v1014
  %v1016 = vpop.f32.mrf.mxu0
  %v1017 = vpop.f32.mrf.mxu0
  %1018 = vdwg.mxu0
  %1019 = vmatprep.subr.bf16.mxu0 0
  %1020 = vmatpush1.bf16.msra.mxu0 %v541
  %1021 = vmatprep.subr.bf16.mxu0 0
  %1022 = vmatpush1.bf16.msra.mxu0 %v538
  %1023 = vmatprep.subr.bf16.mxu0 0
  %1024 = vmatpush1.bf16.msra.mxu0 %v535
  %1025 = vmatprep.subr.bf16.mxu0 0
  %1026 = vmatpush1.bf16.msra.mxu0 %v532
  %1027 = vmatprep.subr.bf16.mxu0 0
  %1028 = vmatpush1.bf16.msra.mxu0 %v529
  %1029 = vmatprep.subr.bf16.mxu0 0
  %1030 = vmatpush1.bf16.msra.mxu0 %v526
  %1031 = vmatprep.subr.bf16.mxu0 0
  %1032 = vmatpush1.bf16.msra.mxu0 %v523
  %1033 = vmatprep.subr.bf16.mxu0 0
  %1034 = vmatpush1.bf16.msra.mxu0 %v520
  %1035 = vmatprep.subr.bf16.mxu0 0
  %1036 = vmatpush2.bf16.msra.mxu0 0
  %1037 = vmatprep.subr.bf16.mxu0 0
  %1038 = vmatpush2.bf16.msra.mxu0 0
  %1039 = vmatprep.subr.bf16.mxu0 0
  %1040 = vmatpush2.bf16.msra.mxu0 0
  %1041 = vmatprep.subr.bf16.mxu0 0
  %1042 = vmatpush2.bf16.msra.mxu0 0
  %1043 = vmatprep.subr.bf16.mxu0 0
  %1044 = vmatpush2.bf16.msra.mxu0 0
  %1045 = vmatprep.subr.bf16.mxu0 0
  %1046 = vmatpush2.bf16.msra.mxu0 0
  %1047 = vmatprep.subr.bf16.mxu0 0
  %1048 = vmatpush2.bf16.msra.mxu0 0
  %1049 = vmatprep.subr.bf16.mxu0 0
  %1050 = vmatpush2.bf16.msra.mxu0 0
  %1051 = vmatprep.mubr.bf16.mxu0 0
  %1052 = vmatmul.mubr.bf16.gmra.mxu0 %v973
  %v1053 = vpop.f32.mrf.mxu0
  %v1054 = vadd.f32 0.0, %v1053
  %v1055 = vpop.f32.mrf.mxu0
  %v1056 = vpop.f32.mrf.mxu0
  %v1057 = vpop.f32.mrf.mxu0
  %1058 = vdwg.mxu0
  %v1059 = vadd.f32 %v975, %v1013
  %v1060 = vadd.f32 %v976, %v1015
  %v1061 = vmul.f32 %v1059, 0.5
  %v1062 = vmul.f32 %v1060, 0.5
  %v1063 = vtanh.pop %v1061
  %v1064 = vtanh.pop %v1062
  %v1065 = vmul.f32 %v1063, 0.5
  %v1066 = vmul.f32 %v1064, 0.5
  %v1067 = vadd.f32 %v1065, 0.5
  %v1068 = vadd.f32 %v1066, 0.5
  %v1069 = vadd.f32 %v1054, %v434
  %v1070 = vmul.f32 %v1067, %v1069
  %v1071 = vadd.f32 %v977, %v1070
  %v1072 = vtanh.pop %v1071
  %v1073 = vsub.f32 %v972, %v1072
  %v1074 = vmul.f32 %v1068, %v1073
  %v1075 = vadd.f32 %v1072, %v1074
  %v1076 = vpack.c.bf16 %v1075, %v1075
  %1077 = vst [vmem:[#allocation3 + $0x10] sm:$0xf] %v1076
  %v1078 = vld [vmem:[#allocation2 + $0x78] sm:$0xff]
  %v1079 = vld [vmem:[#allocation2 + $0x80] sm:$0xff]
  %v1080 = vld [vmem:[#allocation2 + $0x88] sm:$0xff]
  %1081 = vmatprep.subr.bf16.mxu0 %v540
  %1082 = vmatpush1.bf16.msra.mxu0 %v539
  %1083 = vmatprep.subr.bf16.mxu0 %v537
  %1084 = vmatpush1.bf16.msra.mxu0 %v536
  %1085 = vmatprep.subr.bf16.mxu0 %v534
  %1086 = vmatpush1.bf16.msra.mxu0 %v533
  %1087 = vmatprep.subr.bf16.mxu0 %v531
  %1088 = vmatpush1.bf16.msra.mxu0 %v530
  %1089 = vmatprep.subr.bf16.mxu0 %v528
  %1090 = vmatpush1.bf16.msra.mxu0 %v527
  %1091 = vmatprep.subr.bf16.mxu0 %v525
  %1092 = vmatpush1.bf16.msra.mxu0 %v524
  %1093 = vmatprep.subr.bf16.mxu0 %v522
  %1094 = vmatpush1.bf16.msra.mxu0 %v521
  %1095 = vmatprep.subr.bf16.mxu0 %v519
  %1096 = vmatpush1.bf16.msra.mxu0 %v518
  %1097 = vmatprep.subr.bf16.mxu0 0
  %1098 = vmatpush2.bf16.msra.mxu0 0
  %1099 = vmatprep.subr.bf16.mxu0 0
  %1100 = vmatpush2.bf16.msra.mxu0 0
  %1101 = vmatprep.subr.bf16.mxu0 0
  %1102 = vmatpush2.bf16.msra.mxu0 0
  %1103 = vmatprep.subr.bf16.mxu0 0
  %1104 = vmatpush2.bf16.msra.mxu0 0
  %1105 = vmatprep.subr.bf16.mxu0 0
  %1106 = vmatpush2.bf16.msra.mxu0 0
  %1107 = vmatprep.subr.bf16.mxu0 0
  %1108 = vmatpush2.bf16.msra.mxu0 0
  %1109 = vmatprep.subr.bf16.mxu0 0
  %1110 = vmatpush2.bf16.msra.mxu0 0
  %1111 = vmatprep.subr.bf16.mxu0 0
  %1112 = vmatpush2.bf16.msra.mxu0 0
  %1113 = vmatprep.mubr.bf16.mxu0 0
  %1114 = vmatmul.mubr.bf16.gmra.mxu0 %v1076
  %v1115 = vpop.f32.mrf.mxu0
  %v1116 = vadd.f32 0.0, %v1115
  %v1117 = vpop.f32.mrf.mxu0
  %v1118 = vadd.f32 0.0, %v1117
  %v1119 = vpop.f32.mrf.mxu0
  %v1120 = vpop.f32.mrf.mxu0
  %1121 = vdwg.mxu0
  %1122 = vmatprep.subr.bf16.mxu0 0
  %1123 = vmatpush1.bf16.msra.mxu0 %v541
  %1124 = vmatprep.subr.bf16.mxu0 0
  %1125 = vmatpush1.bf16.msra.mxu0 %v538
  %1126 = vmatprep.subr.bf16.mxu0 0
  %1127 = vmatpush1.bf16.msra.mxu0 %v535
  %1128 = vmatprep.subr.bf16.mxu0 0
  %1129 = vmatpush1.bf16.msra.mxu0 %v532
  %1130 = vmatprep.subr.bf16.mxu0 0
  %1131 = vmatpush1.bf16.msra.mxu0 %v529
  %1132 = vmatprep.subr.bf16.mxu0 0
  %1133 = vmatpush1.bf16.msra.mxu0 %v526
  %1134 = vmatprep.subr.bf16.mxu0 0
  %1135 = vmatpush1.bf16.msra.mxu0 %v523
  %1136 = vmatprep.subr.bf16.mxu0 0
  %1137 = vmatpush1.bf16.msra.mxu0 %v520
  %1138 = vmatprep.subr.bf16.mxu0 0
  %1139 = vmatpush2.bf16.msra.mxu0 0
  %1140 = vmatprep.subr.bf16.mxu0 0
  %1141 = vmatpush2.bf16.msra.mxu0 0
  %1142 = vmatprep.subr.bf16.mxu0 0
  %1143 = vmatpush2.bf16.msra.mxu0 0
  %1144 = vmatprep.subr.bf16.mxu0 0
  %1145 = vmatpush2.bf16.msra.mxu0 0
  %1146 = vmatprep.subr.bf16.mxu0 0
  %1147 = vmatpush2.bf16.msra.mxu0 0
  %1148 = vmatprep.subr.bf16.mxu0 0
  %1149 = vmatpush2.bf16.msra.mxu0 0
  %1150 = vmatprep.subr.bf16.mxu0 0
  %1151 = vmatpush2.bf16.msra.mxu0 0
  %1152 = vmatprep.subr.bf16.mxu0 0
  %1153 = vmatpush2.bf16.msra.mxu0 0
  %1154 = vmatprep.mubr.bf16.mxu0 0
  %1155 = vmatmul.mubr.bf16.gmra.mxu0 %v1076
  %v1156 = vpop.f32.mrf.mxu0
  %v1157 = vadd.f32 0.0, %v1156
  %v1158 = vpop.f32.mrf.mxu0
  %v1159 = vpop.f32.mrf.mxu0
  %v1160 = vpop.f32.mrf.mxu0
  %1161 = vdwg.mxu0
  %v1162 = vadd.f32 %v1078, %v1116
  %v1163 = vadd.f32 %v1079, %v1118
  %v1164 = vmul.f32 %v1162, 0.5
  %v1165 = vmul.f32 %v1163, 0.5
  %v1166 = vtanh.pop %v1164
  %v1167 = vtanh.pop %v1165
  %v1168 = vmul.f32 %v1166, 0.5
  %v1169 = vmul.f32 %v1167, 0.5
  %v1170 = vadd.f32 %v1168, 0.5
  %v1171 = vadd.f32 %v1169, 0.5
  %v1172 = vadd.f32 %v1157, %v434
  %v1173 = vmul.f32 %v1170, %v1172
  %v1174 = vadd.f32 %v1080, %v1173
  %v1175 = vtanh.pop %v1174
  %v1176 = vsub.f32 %v1075, %v1175
  %v1177 = vmul.f32 %v1171, %v1176
  %v1178 = vadd.f32 %v1175, %v1177
  %v1179 = vpack.c.bf16 %v1178, %v1178
  %1180 = vst [vmem:[#allocation3 + $0x14] sm:$0xf] %v1179
  %v1181 = vld [vmem:[#allocation2 + $0x90] sm:$0xff]
  %v1182 = vld [vmem:[#allocation2 + $0x98] sm:$0xff]
  %v1183 = vld [vmem:[#allocation2 + $0xa0] sm:$0xff]
  %1184 = vmatprep.subr.bf16.mxu0 %v540
  %1185 = vmatpush1.bf16.msra.mxu0 %v539
  %1186 = vmatprep.subr.bf16.mxu0 %v537
  %1187 = vmatpush1.bf16.msra.mxu0 %v536
  %1188 = vmatprep.subr.bf16.mxu0 %v534
  %1189 = vmatpush1.bf16.msra.mxu0 %v533
  %1190 = vmatprep.subr.bf16.mxu0 %v531
  %1191 = vmatpush1.bf16.msra.mxu0 %v530
  %1192 = vmatprep.subr.bf16.mxu0 %v528
  %1193 = vmatpush1.bf16.msra.mxu0 %v527
  %1194 = vmatprep.subr.bf16.mxu0 %v525
  %1195 = vmatpush1.bf16.msra.mxu0 %v524
  %1196 = vmatprep.subr.bf16.mxu0 %v522
  %1197 = vmatpush1.bf16.msra.mxu0 %v521
  %1198 = vmatprep.subr.bf16.mxu0 %v519
  %1199 = vmatpush1.bf16.msra.mxu0 %v518
  %1200 = vmatprep.subr.bf16.mxu0 0
  %1201 = vmatpush2.bf16.msra.mxu0 0
  %1202 = vmatprep.subr.bf16.mxu0 0
  %1203 = vmatpush2.bf16.msra.mxu0 0
  %1204 = vmatprep.subr.bf16.mxu0 0
  %1205 = vmatpush2.bf16.msra.mxu0 0
  %1206 = vmatprep.subr.bf16.mxu0 0
  %1207 = vmatpush2.bf16.msra.mxu0 0
  %1208 = vmatprep.subr.bf16.mxu0 0
  %1209 = vmatpush2.bf16.msra.mxu0 0
  %1210 = vmatprep.subr.bf16.mxu0 0
  %1211 = vmatpush2.bf16.msra.mxu0 0
  %1212 = vmatprep.subr.bf16.mxu0 0
  %1213 = vmatpush2.bf16.msra.mxu0 0
  %1214 = vmatprep.subr.bf16.mxu0 0
  %1215 = vmatpush2.bf16.msra.mxu0 0
  %1216 = vmatprep.mubr.bf16.mxu0 0
  %1217 = vmatmul.mubr.bf16.gmra.mxu0 %v1179
  %v1218 = vpop.f32.mrf.mxu0
  %v1219 = vadd.f32 0.0, %v1218
  %v1220 = vpop.f32.mrf.mxu0
  %v1221 = vadd.f32 0.0, %v1220
  %v1222 = vpop.f32.mrf.mxu0
  %v1223 = vpop.f32.mrf.mxu0
  %1224 = vdwg.mxu0
  %1225 = vmatprep.subr.bf16.mxu0 0
  %1226 = vmatpush1.bf16.msra.mxu0 %v541
  %1227 = vmatprep.subr.bf16.mxu0 0
  %1228 = vmatpush1.bf16.msra.mxu0 %v538
  %1229 = vmatprep.subr.bf16.mxu0 0
  %1230 = vmatpush1.bf16.msra.mxu0 %v535
  %1231 = vmatprep.subr.bf16.mxu0 0
  %1232 = vmatpush1.bf16.msra.mxu0 %v532
  %1233 = vmatprep.subr.bf16.mxu0 0
  %1234 = vmatpush1.bf16.msra.mxu0 %v529
  %1235 = vmatprep.subr.bf16.mxu0 0
  %1236 = vmatpush1.bf16.msra.mxu0 %v526
  %1237 = vmatprep.subr.bf16.mxu0 0
  %1238 = vmatpush1.bf16.msra.mxu0 %v523
  %1239 = vmatprep.subr.bf16.mxu0 0
  %1240 = vmatpush1.bf16.msra.mxu0 %v520
  %1241 = vmatprep.subr.bf16.mxu0 0
  %1242 = vmatpush2.bf16.msra.mxu0 0
  %1243 = vmatprep.subr.bf16.mxu0 0
  %1244 = vmatpush2.bf16.msra.mxu0 0
  %1245 = vmatprep.subr.bf16.mxu0 0
  %1246 = vmatpush2.bf16.msra.mxu0 0
  %1247 = vmatprep.subr.bf16.mxu0 0
  %1248 = vmatpush2.bf16.msra.mxu0 0
  %1249 = vmatprep.subr.bf16.mxu0 0
  %1250 = vmatpush2.bf16.msra.mxu0 0
  %1251 = vmatprep.subr.bf16.mxu0 0
  %1252 = vmatpush2.bf16.msra.mxu0 0
  %1253 = vmatprep.subr.bf16.mxu0 0
  %1254 = vmatpush2.bf16.msra.mxu0 0
  %1255 = vmatprep.subr.bf16.mxu0 0
  %1256 = vmatpush2.bf16.msra.mxu0 0
  %1257 = vmatprep.mubr.bf16.mxu0 0
  %1258 = vmatmul.mubr.bf16.gmra.mxu0 %v1179
  %v1259 = vpop.f32.mrf.mxu0
  %v1260 = vadd.f32 0.0, %v1259
  %v1261 = vpop.f32.mrf.mxu0
  %v1262 = vpop.f32.mrf.mxu0
  %v1263 = vpop.f32.mrf.mxu0
  %1264 = vdwg.mxu0
  %v1265 = vadd.f32 %v1181, %v1219
  %v1266 = vadd.f32 %v1182, %v1221
  %v1267 = vmul.f32 %v1265, 0.5
  %v1268 = vmul.f32 %v1266, 0.5
  %v1269 = vtanh.pop %v1267
  %v1270 = vtanh.pop %v1268
  %v1271 = vmul.f32 %v1269, 0.5
  %v1272 = vmul.f32 %v1270, 0.5
  %v1273 = vadd.f32 %v1271, 0.5
  %v1274 = vadd.f32 %v1272, 0.5
  %v1275 = vadd.f32 %v1260, %v434
  %v1276 = vmul.f32 %v1273, %v1275
  %v1277 = vadd.f32 %v1183, %v1276
  %v1278 = vtanh.pop %v1277
  %v1279 = vsub.f32 %v1178, %v1278
  %v1280 = vmul.f32 %v1274, %v1279
  %v1281 = vadd.f32 %v1278, %v1280
  %v1282 = vpack.c.bf16 %v1281, %v1281
  %1283 = vst [vmem:[#allocation3 + $0x18] sm:$0xf] %v1282
  %v1284 = vld [vmem:[#allocation2 + $0xa8] sm:$0xff]
  %v1285 = vld [vmem:[#allocation2 + $0xb0] sm:$0xff]
  %v1286 = vld [vmem:[#allocation2 + $0xb8] sm:$0xff]
  %1287 = vmatprep.subr.bf16.mxu0 %v540
  %1288 = vmatpush1.bf16.msra.mxu0 %v539
  %1289 = vmatprep.subr.bf16.mxu0 %v537
  %1290 = vmatpush1.bf16.msra.mxu0 %v536
  %1291 = vmatprep.subr.bf16.mxu0 %v534
  %1292 = vmatpush1.bf16.msra.mxu0 %v533
  %1293 = vmatprep.subr.bf16.mxu0 %v531
  %1294 = vmatpush1.bf16.msra.mxu0 %v530
  %1295 = vmatprep.subr.bf16.mxu0 %v528
  %1296 = vmatpush1.bf16.msra.mxu0 %v527
  %1297 = vmatprep.subr.bf16.mxu0 %v525
  %1298 = vmatpush1.bf16.msra.mxu0 %v524
  %1299 = vmatprep.subr.bf16.mxu0 %v522
  %1300 = vmatpush1.bf16.msra.mxu0 %v521
  %1301 = vmatprep.subr.bf16.mxu0 %v519
  %1302 = vmatpush1.bf16.msra.mxu0 %v518
  %1303 = vmatprep.subr.bf16.mxu0 0
  %1304 = vmatpush2.bf16.msra.mxu0 0
  %1305 = vmatprep.subr.bf16.mxu0 0
  %1306 = vmatpush2.bf16.msra.mxu0 0
  %1307 = vmatprep.subr.bf16.mxu0 0
  %1308 = vmatpush2.bf16.msra.mxu0 0
  %1309 = vmatprep.subr.bf16.mxu0 0
  %1310 = vmatpush2.bf16.msra.mxu0 0
  %1311 = vmatprep.subr.bf16.mxu0 0
  %1312 = vmatpush2.bf16.msra.mxu0 0
  %1313 = vmatprep.subr.bf16.mxu0 0
  %1314 = vmatpush2.bf16.msra.mxu0 0
  %1315 = vmatprep.subr.bf16.mxu0 0
  %1316 = vmatpush2.bf16.msra.mxu0 0
  %1317 = vmatprep.subr.bf16.mxu0 0
  %1318 = vmatpush2.bf16.msra.mxu0 0
  %1319 = vmatprep.mubr.bf16.mxu0 0
  %1320 = vmatmul.mubr.bf16.gmra.mxu0 %v1282
  %v1321 = vpop.f32.mrf.mxu0
  %v1322 = vadd.f32 0.0, %v1321
  %v1323 = vpop.f32.mrf.mxu0
  %v1324 = vadd.f32 0.0, %v1323
  %v1325 = vpop.f32.mrf.mxu0
  %v1326 = vpop.f32.mrf.mxu0
  %1327 = vdwg.mxu0
  %1328 = vmatprep.subr.bf16.mxu0 0
  %1329 = vmatpush1.bf16.msra.mxu0 %v541
  %1330 = vmatprep.subr.bf16.mxu0 0
  %1331 = vmatpush1.bf16.msra.mxu0 %v538
  %1332 = vmatprep.subr.bf16.mxu0 0
  %1333 = vmatpush1.bf16.msra.mxu0 %v535
  %1334 = vmatprep.subr.bf16.mxu0 0
  %1335 = vmatpush1.bf16.msra.mxu0 %v532
  %1336 = vmatprep.subr.bf16.mxu0 0
  %1337 = vmatpush1.bf16.msra.mxu0 %v529
  %1338 = vmatprep.subr.bf16.mxu0 0
  %1339 = vmatpush1.bf16.msra.mxu0 %v526
  %1340 = vmatprep.subr.bf16.mxu0 0
  %1341 = vmatpush1.bf16.msra.mxu0 %v523
  %1342 = vmatprep.subr.bf16.mxu0 0
  %1343 = vmatpush1.bf16.msra.mxu0 %v520
  %1344 = vmatprep.subr.bf16.mxu0 0
  %1345 = vmatpush2.bf16.msra.mxu0 0
  %1346 = vmatprep.subr.bf16.mxu0 0
  %1347 = vmatpush2.bf16.msra.mxu0 0
  %1348 = vmatprep.subr.bf16.mxu0 0
  %1349 = vmatpush2.bf16.msra.mxu0 0
  %1350 = vmatprep.subr.bf16.mxu0 0
  %1351 = vmatpush2.bf16.msra.mxu0 0
  %1352 = vmatprep.subr.bf16.mxu0 0
  %1353 = vmatpush2.bf16.msra.mxu0 0
  %1354 = vmatprep.subr.bf16.mxu0 0
  %1355 = vmatpush2.bf16.msra.mxu0 0
  %1356 = vmatprep.subr.bf16.mxu0 0
  %1357 = vmatpush2.bf16.msra.mxu0 0
  %1358 = vmatprep.subr.bf16.mxu0 0
  %1359 = vmatpush2.bf16.msra.mxu0 0
  %1360 = vmatprep.mubr.bf16.mxu0 0
  %1361 = vmatmul.mubr.bf16.gmra.mxu0 %v1282
  %v1362 = vpop.f32.mrf.mxu0
  %v1363 = vadd.f32 0.0, %v1362
  %v1364 = vpop.f32.mrf.mxu0
  %v1365 = vpop.f32.mrf.mxu0
  %v1366 = vpop.f32.mrf.mxu0
  %1367 = vdwg.mxu0
  %v1368 = vadd.f32 %v1284, %v1322
  %v1369 = vadd.f32 %v1285, %v1324
  %v1370 = vmul.f32 %v1368, 0.5
  %v1371 = vmul.f32 %v1369, 0.5
  %v1372 = vtanh.pop %v1370
  %v1373 = vtanh.pop %v1371
  %v1374 = vmul.f32 %v1372, 0.5
  %v1375 = vmul.f32 %v1373, 0.5
  %v1376 = vadd.f32 %v1374, 0.5
  %v1377 = vadd.f32 %v1375, 0.5
  %v1378 = vadd.f32 %v1363, %v434
  %v1379 = vmul.f32 %v1376, %v1378
  %v1380 = vadd.f32 %v1286, %v1379
  %v1381 = vtanh.pop %v1380
  %v1382 = vsub.f32 %v1281, %v1381
  %v1383 = vmul.f32 %v1377, %v1382
  %v1384 = vadd.f32 %v1381, %v1383
  %v1385 = vpack.c.bf16 %v1384, %v1384
  %1386 = vst [vmem:[#allocation3 + $0x1c] sm:$0xf] %v1385
  %1387 = vst [vmem:[#allocation4] sm:$0xf] %v1385
  %v1388 = vld [vmem:[#allocation3] sm:$0xf]
  %v1389 = vld [vmem:[#allocation3 + $0x4] sm:$0xf]
  %v1390 = vld [vmem:[#allocation3 + $0x8] sm:$0xf]
  %v1391 = vld [vmem:[#allocation3 + $0xc] sm:$0xf]
  %v1392 = vld [vmem:[#allocation3 + $0x10] sm:$0xf]
  %v1393 = vld [vmem:[#allocation3 + $0x14] sm:$0xf]
  %v1394 = vld [vmem:[#allocation3 + $0x18] sm:$0xf]
  %v1395 = vld [vmem:[#allocation3 + $0x1c] sm:$0xf]
  %s1396 = scalar_lea.vmem %s1, 192
  %v1397 = vld [vmem:[%s1396] sm:$0xff]
  %v1398 = vld [vmem:[%s1396 + $0x8] sm:$0xf]
  %v1399 = vld [vmem:[%s1396 + $0xc] sm:$0xff]
  %v1400 = vld [vmem:[%s1396 + $0x14] sm:$0xf]
  %v1401 = vld [vmem:[%s1396 + $0x18] sm:$0xff]
  %v1402 = vld [vmem:[%s1396 + $0x20] sm:$0xf]
  %v1403 = vld [vmem:[%s1396 + $0x24] sm:$0xff]
  %v1404 = vld [vmem:[%s1396 + $0x2c] sm:$0xf]
  %v1405 = vld [vmem:[%s1396 + $0x30] sm:$0xff]
  %v1406 = vld [vmem:[%s1396 + $0x38] sm:$0xf]
  %v1407 = vld [vmem:[%s1396 + $0x3c] sm:$0xff]
  %v1408 = vld [vmem:[%s1396 + $0x44] sm:$0xf]
  %v1409 = vld [vmem:[%s1396 + $0x48] sm:$0xff]
  %v1410 = vld [vmem:[%s1396 + $0x50] sm:$0xf]
  %v1411 = vld [vmem:[%s1396 + $0x54] sm:$0xff]
  %v1412 = vld [vmem:[%s1396 + $0x5c] sm:$0xf]
  %v1413 = vld [vmem:[%s1396 + $0x60] sm:$0xff]
  %v1414 = vld [vmem:[%s1396 + $0x68] sm:$0xf]
  %v1415 = vld [vmem:[%s1396 + $0x6c] sm:$0xff]
  %v1416 = vld [vmem:[%s1396 + $0x74] sm:$0xf]
  %v1417 = vld [vmem:[%s1396 + $0x78] sm:$0xff]
  %v1418 = vld [vmem:[%s1396 + $0x80] sm:$0xf]
  %v1419 = vld [vmem:[%s1396 + $0x84] sm:$0xff]
  %v1420 = vld [vmem:[%s1396 + $0x8c] sm:$0xf]
  %v1421 = vld [vmem:[%s1396 + $0x90] sm:$0xff]
  %v1422 = vld [vmem:[%s1396 + $0x98] sm:$0xf]
  %v1423 = vld [vmem:[%s1396 + $0x9c] sm:$0xff]
  %v1424 = vld [vmem:[%s1396 + $0xa4] sm:$0xf]
  %v1425 = vld [vmem:[%s1396 + $0xa8] sm:$0xff]
  %v1426 = vld [vmem:[%s1396 + $0xb0] sm:$0xf]
  %v1427 = vld [vmem:[%s1396 + $0xb4] sm:$0xff]
  %v1428 = vld [vmem:[%s1396 + $0xbc] sm:$0xf]
  %s1429 = scalar_lea.vmem %s3, 192
  %v1430 = vld [vmem:[%s1429] sm:$0xff]
  %v1431 = vld [vmem:[%s1429 + $0x8] sm:$0xf]
  %v1432 = vld [vmem:[%s1429 + $0xc] sm:$0xff]
  %v1433 = vld [vmem:[%s1429 + $0x14] sm:$0xf]
  %v1434 = vld [vmem:[%s1429 + $0x18] sm:$0xff]
  %v1435 = vld [vmem:[%s1429 + $0x20] sm:$0xf]
  %v1436 = vld [vmem:[%s1429 + $0x24] sm:$0xff]
  %v1437 = vld [vmem:[%s1429 + $0x2c] sm:$0xf]
  %v1438 = vld [vmem:[%s1429 + $0x30] sm:$0xff]
  %v1439 = vld [vmem:[%s1429 + $0x38] sm:$0xf]
  %v1440 = vld [vmem:[%s1429 + $0x3c] sm:$0xff]
  %v1441 = vld [vmem:[%s1429 + $0x44] sm:$0xf]
  %v1442 = vld [vmem:[%s1429 + $0x48] sm:$0xff]
  %v1443 = vld [vmem:[%s1429 + $0x50] sm:$0xf]
  %v1444 = vld [vmem:[%s1429 + $0x54] sm:$0xff]
  %v1445 = vld [vmem:[%s1429 + $0x5c] sm:$0xf]
  %v1446 = vld [vmem:[%s1429 + $0x60] sm:$0xff]
  %v1447 = vld [vmem:[%s1429 + $0x68] sm:$0xf]
  %v1448 = vld [vmem:[%s1429 + $0x6c] sm:$0xff]
  %v1449 = vld [vmem:[%s1429 + $0x74] sm:$0xf]
  %v1450 = vld [vmem:[%s1429 + $0x78] sm:$0xff]
  %v1451 = vld [vmem:[%s1429 + $0x80] sm:$0xf]
  %v1452 = vld [vmem:[%s1429 + $0x84] sm:$0xff]
  %v1453 = vld [vmem:[%s1429 + $0x8c] sm:$0xf]
  %v1454 = vld [vmem:[%s1429 + $0x90] sm:$0xff]
  %v1455 = vld [vmem:[%s1429 + $0x98] sm:$0xf]
  %v1456 = vld [vmem:[%s1429 + $0x9c] sm:$0xff]
  %v1457 = vld [vmem:[%s1429 + $0xa4] sm:$0xf]
  %v1458 = vld [vmem:[%s1429 + $0xa8] sm:$0xff]
  %v1459 = vld [vmem:[%s1429 + $0xb0] sm:$0xf]
  %v1460 = vld [vmem:[%s1429 + $0xb4] sm:$0xff]
  %v1461 = vld [vmem:[%s1429 + $0xbc] sm:$0xf]
  %s1462 = scalar_lea.vmem %s2, 1
  %v1463 = vld [vmem:[%s1462] ss:$2 sm:$0x7]
  %v1465 = vlaneseq
  %v1466 = vshrl.u32 %v1465, 7
  %v1467 = vsub.s32 0, %v1466
  %v1468 = vrot.slane %v1463, %v1467
  %v1469 = vlaneseq
  %v1470 = vshrl.u32 %v1469, 7
  %v1471 = vsub.s32 1, %v1470
  %v1472 = vrot.slane %v1463, %v1471
  %v1473 = vlaneseq
  %v1474 = vshrl.u32 %v1473, 7
  %v1475 = vsub.s32 2, %v1474
  %v1476 = vrot.slane %v1463, %v1475
  %v1488 = vunpack.c.l.b16 %v1388
  %v1489 = vunpack.c.l.b16 %v1389
  %v1490 = vunpack.c.l.b16 %v1390
  %v1491 = vunpack.c.l.b16 %v1391
  %v1492 = vunpack.c.l.b16 %v1392
  %v1493 = vunpack.c.l.b16 %v1393
  %v1494 = vunpack.c.l.b16 %v1394
  %v1495 = vunpack.c.l.b16 %v1395
  %v1496 = vpack.c.b16 %v1489, %v1488
  %v1497 = vpack.c.b16 %v1491, %v1490
  %v1498 = vpack.c.b16 %v1493, %v1492
  %v1499 = vpack.c.b16 %v1495, %v1494
  %v1536 = vunpack.c.l.b16 %v1397
  %v1537 = vunpack.c.h.b16 %v1397
  %v1538 = vunpack.c.l.b16 %v1398
  %v1539 = vunpack.c.l.b16 %v1399
  %v1540 = vunpack.c.h.b16 %v1399
  %v1541 = vunpack.c.l.b16 %v1400
  %v1542 = vunpack.c.l.b16 %v1401
  %v1543 = vunpack.c.h.b16 %v1401
  %v1544 = vunpack.c.l.b16 %v1402
  %v1545 = vunpack.c.l.b16 %v1403
  %v1546 = vunpack.c.h.b16 %v1403
  %v1547 = vunpack.c.l.b16 %v1404
  %v1548 = vunpack.c.l.b16 %v1405
  %v1549 = vunpack.c.h.b16 %v1405
  %v1550 = vunpack.c.l.b16 %v1406
  %v1551 = vunpack.c.l.b16 %v1407
  %v1552 = vunpack.c.h.b16 %v1407
  %v1553 = vunpack.c.l.b16 %v1408
  %v1554 = vunpack.c.l.b16 %v1409
  %v1555 = vunpack.c.h.b16 %v1409
  %v1556 = vunpack.c.l.b16 %v1410
  %v1557 = vunpack.c.l.b16 %v1411
  %v1558 = vunpack.c.h.b16 %v1411
  %v1559 = vunpack.c.l.b16 %v1412
  %v1560 = vunpack.c.l.b16 %v1413
  %v1561 = vunpack.c.h.b16 %v1413
  %v1562 = vunpack.c.l.b16 %v1414
  %v1563 = vunpack.c.l.b16 %v1415
  %v1564 = vunpack.c.h.b16 %v1415
  %v1565 = vunpack.c.l.b16 %v1416
  %v1566 = vunpack.c.l.b16 %v1417
  %v1567 = vunpack.c.h.b16 %v1417
  %v1568 = vunpack.c.l.b16 %v1418
  %v1569 = vunpack.c.l.b16 %v1419
  %v1570 = vunpack.c.h.b16 %v1419
  %v1571 = vunpack.c.l.b16 %v1420
  %v1572 = vunpack.c.l.b16 %v1421
  %v1573 = vunpack.c.h.b16 %v1421
  %v1574 = vunpack.c.l.b16 %v1422
  %v1575 = vunpack.c.l.b16 %v1423
  %v1576 = vunpack.c.h.b16 %v1423
  %v1577 = vunpack.c.l.b16 %v1424
  %v1578 = vunpack.c.l.b16 %v1425
  %v1579 = vunpack.c.h.b16 %v1425
  %v1580 = vunpack.c.l.b16 %v1426
  %v1581 = vunpack.c.l.b16 %v1427
  %v1582 = vunpack.c.h.b16 %v1427
  %v1583 = vunpack.c.l.b16 %v1428
  %v1584 = vpack.c.b16 %v1539, %v1536
  %v1585 = vpack.c.b16 %v1540, %v1537
  %v1586 = vpack.c.b16 %v1541, %v1538
  %v1587 = vpack.c.b16 %v1545, %v1542
  %v1588 = vpack.c.b16 %v1546, %v1543
  %v1589 = vpack.c.b16 %v1547, %v1544
  %v1590 = vpack.c.b16 %v1551, %v1548
  %v1591 = vpack.c.b16 %v1552, %v1549
  %v1592 = vpack.c.b16 %v1553, %v1550
  %v1593 = vpack.c.b16 %v1557, %v1554
  %v1594 = vpack.c.b16 %v1558, %v1555
  %v1595 = vpack.c.b16 %v1559, %v1556
  %v1596 = vpack.c.b16 %v1563, %v1560
  %v1597 = vpack.c.b16 %v1564, %v1561
  %v1598 = vpack.c.b16 %v1565, %v1562
  %v1599 = vpack.c.b16 %v1569, %v1566
  %v1600 = vpack.c.b16 %v1570, %v1567
  %v1601 = vpack.c.b16 %v1571, %v1568
  %v1602 = vpack.c.b16 %v1575, %v1572
  %v1603 = vpack.c.b16 %v1576, %v1573
  %v1604 = vpack.c.b16 %v1577, %v1574
  %v1605 = vpack.c.b16 %v1581, %v1578
  %v1606 = vpack.c.b16 %v1582, %v1579
  %v1607 = vpack.c.b16 %v1583, %v1580
  %1632 = vmatprep.subr.bf16.mxu0 %v1606
  %1633 = vmatpush1.bf16.msra.mxu0 %v1605
  %1634 = vmatprep.subr.bf16.mxu0 %v1603
  %1635 = vmatpush1.bf16.msra.mxu0 %v1602
  %1636 = vmatprep.subr.bf16.mxu0 %v1600
  %1637 = vmatpush1.bf16.msra.mxu0 %v1599
  %1638 = vmatprep.subr.bf16.mxu0 %v1597
  %1639 = vmatpush1.bf16.msra.mxu0 %v1596
  %1640 = vmatprep.subr.bf16.mxu0 %v1594
  %1641 = vmatpush1.bf16.msra.mxu0 %v1593
  %1642 = vmatprep.subr.bf16.mxu0 %v1591
  %1643 = vmatpush1.bf16.msra.mxu0 %v1590
  %1644 = vmatprep.subr.bf16.mxu0 %v1588
  %1645 = vmatpush1.bf16.msra.mxu0 %v1587
  %1646 = vmatprep.subr.bf16.mxu0 %v1585
  %1647 = vmatpush1.bf16.msra.mxu0 %v1584
  %1648 = vmatprep.subr.bf16.mxu0 0
  %1649 = vmatpush2.bf16.msra.mxu0 0
  %1650 = vmatprep.subr.bf16.mxu0 0
  %1651 = vmatpush2.bf16.msra.mxu0 0
  %1652 = vmatprep.subr.bf16.mxu0 0
  %1653 = vmatpush2.bf16.msra.mxu0 0
  %1654 = vmatprep.subr.bf16.mxu0 0
  %1655 = vmatpush2.bf16.msra.mxu0 0
  %1656 = vmatprep.subr.bf16.mxu0 0
  %1657 = vmatpush2.bf16.msra.mxu0 0
  %1658 = vmatprep.subr.bf16.mxu0 0
  %1659 = vmatpush2.bf16.msra.mxu0 0
  %1660 = vmatprep.subr.bf16.mxu0 0
  %1661 = vmatpush2.bf16.msra.mxu0 0
  %1662 = vmatprep.subr.bf16.mxu0 0
  %1663 = vmatpush2.bf16.msra.mxu0 0
  %1664 = vmatprep.mubr.bf16.mxu0 0
  %1665 = vmatmul.mubr.bf16.gmra.mxu0 %v1496
  %v1666 = vpop.f32.mrf.mxu0
  %v1667 = vadd.f32 %v1468, %v1666
  %v1668 = vpop.f32.mrf.mxu0
  %v1669 = vadd.f32 %v1472, %v1668
  %v1670 = vpop.f32.mrf.mxu0
  %v1671 = vadd.f32 %v1468, %v1670
  %v1672 = vpop.f32.mrf.mxu0
  %v1673 = vadd.f32 %v1472, %v1672
  %1674 = vmatprep.mubr.bf16.mxu0 0
  %1675 = vmatmul.mubr.bf16.gmra.mxu0 %v1497
  %v1676 = vpop.f32.mrf.mxu0
  %v1677 = vadd.f32 %v1468, %v1676
  %v1678 = vpop.f32.mrf.mxu0
  %v1679 = vadd.f32 %v1472, %v1678
  %v1680 = vpop.f32.mrf.mxu0
  %v1681 = vadd.f32 %v1468, %v1680
  %v1682 = vpop.f32.mrf.mxu0
  %v1683 = vadd.f32 %v1472, %v1682
  %1684 = vmatprep.mubr.bf16.mxu0 0
  %1685 = vmatmul.mubr.bf16.gmra.mxu0 %v1498
  %v1686 = vpop.f32.mrf.mxu0
  %v1687 = vadd.f32 %v1468, %v1686
  %v1688 = vpop.f32.mrf.mxu0
  %v1689 = vadd.f32 %v1472, %v1688
  %v1690 = vpop.f32.mrf.mxu0
  %v1691 = vadd.f32 %v1468, %v1690
  %v1692 = vpop.f32.mrf.mxu0
  %v1693 = vadd.f32 %v1472, %v1692
  %1694 = vmatprep.mubr.bf16.mxu0 0
  %1695 = vmatmul.mubr.bf16.gmra.mxu0 %v1499
  %v1696 = vpop.f32.mrf.mxu0
  %v1697 = vadd.f32 %v1468, %v1696
  %v1698 = vpop.f32.mrf.mxu0
  %v1699 = vadd.f32 %v1472, %v1698
  %v1700 = vpop.f32.mrf.mxu0
  %v1701 = vadd.f32 %v1468, %v1700
  %v1702 = vpop.f32.mrf.mxu0
  %v1703 = vadd.f32 %v1472, %v1702
  %1704 = vdwg.mxu0
  %1705 = vmatprep.subr.bf16.mxu0 0
  %1706 = vmatpush1.bf16.msra.mxu0 %v1607
  %1707 = vmatprep.subr.bf16.mxu0 0
  %1708 = vmatpush1.bf16.msra.mxu0 %v1604
  %1709 = vmatprep.subr.bf16.mxu0 0
  %1710 = vmatpush1.bf16.msra.mxu0 %v1601
  %1711 = vmatprep.subr.bf16.mxu0 0
  %1712 = vmatpush1.bf16.msra.mxu0 %v1598
  %1713 = vmatprep.subr.bf16.mxu0 0
  %1714 = vmatpush1.bf16.msra.mxu0 %v1595
  %1715 = vmatprep.subr.bf16.mxu0 0
  %1716 = vmatpush1.bf16.msra.mxu0 %v1592
  %1717 = vmatprep.subr.bf16.mxu0 0
  %1718 = vmatpush1.bf16.msra.mxu0 %v1589
  %1719 = vmatprep.subr.bf16.mxu0 0
  %1720 = vmatpush1.bf16.msra.mxu0 %v1586
  %1721 = vmatprep.subr.bf16.mxu0 0
  %1722 = vmatpush2.bf16.msra.mxu0 0
  %1723 = vmatprep.subr.bf16.mxu0 0
  %1724 = vmatpush2.bf16.msra.mxu0 0
  %1725 = vmatprep.subr.bf16.mxu0 0
  %1726 = vmatpush2.bf16.msra.mxu0 0
  %1727 = vmatprep.subr.bf16.mxu0 0
  %1728 = vmatpush2.bf16.msra.mxu0 0
  %1729 = vmatprep.subr.bf16.mxu0 0
  %1730 = vmatpush2.bf16.msra.mxu0 0
  %1731 = vmatprep.subr.bf16.mxu0 0
  %1732 = vmatpush2.bf16.msra.mxu0 0
  %1733 = vmatprep.subr.bf16.mxu0 0
  %1734 = vmatpush2.bf16.msra.mxu0 0
  %1735 = vmatprep.subr.bf16.mxu0 0
  %1736 = vmatpush2.bf16.msra.mxu0 0
  %1737 = vmatprep.mubr.bf16.mxu0 0
  %1738 = vmatmul.mubr.bf16.gmra.mxu0 %v1496
  %v1739 = vpop.f32.mrf.mxu0
  %v1740 = vadd.f32 %v1476, %v1739
  %v1741 = vpop.f32.mrf.mxu0
  %v1742 = vpop.f32.mrf.mxu0
  %v1743 = vadd.f32 %v1476, %v1742
  %v1744 = vpop.f32.mrf.mxu0
  %1745 = vmatprep.mubr.bf16.mxu0 0
  %1746 = vmatmul.mubr.bf16.gmra.mxu0 %v1497
  %v1747 = vpop.f32.mrf.mxu0
  %v1748 = vadd.f32 %v1476, %v1747
  %v1749 = vpop.f32.mrf.mxu0
  %v1750 = vpop.f32.mrf.mxu0
  %v1751 = vadd.f32 %v1476, %v1750
  %v1752 = vpop.f32.mrf.mxu0
  %1753 = vmatprep.mubr.bf16.mxu0 0
  %1754 = vmatmul.mubr.bf16.gmra.mxu0 %v1498
  %v1755 = vpop.f32.mrf.mxu0
  %v1756 = vadd.f32 %v1476, %v1755
  %v1757 = vpop.f32.mrf.mxu0
  %v1758 = vpop.f32.mrf.mxu0
  %v1759 = vadd.f32 %v1476, %v1758
  %v1760 = vpop.f32.mrf.mxu0
  %1761 = vmatprep.mubr.bf16.mxu0 0
  %1762 = vmatmul.mubr.bf16.gmra.mxu0 %v1499
  %v1763 = vpop.f32.mrf.mxu0
  %v1764 = vadd.f32 %v1476, %v1763
  %v1765 = vpop.f32.mrf.mxu0
  %v1766 = vpop.f32.mrf.mxu0
  %v1767 = vadd.f32 %v1476, %v1766
  %v1768 = vpop.f32.mrf.mxu0
  %1769 = vdwg.mxu0
  %1770 = vst [vmem:[#allocation2] sm:$0xff] %v1667
  %1771 = vst [vmem:[#allocation2 + $0x8] sm:$0xff] %v1669
  %1772 = vst [vmem:[#allocation2 + $0x10] sm:$0xff] %v1740
  %1773 = vst [vmem:[#allocation2 + $0x18] sm:$0xff] %v1671
  %1774 = vst [vmem:[#allocation2 + $0x20] sm:$0xff] %v1673
  %1775 = vst [vmem:[#allocation2 + $0x28] sm:$0xff] %v1743
  %1776 = vst [vmem:[#allocation2 + $0x30] sm:$0xff] %v1677
  %1777 = vst [vmem:[#allocation2 + $0x38] sm:$0xff] %v1679
  %1778 = vst [vmem:[#allocation2 + $0x40] sm:$0xff] %v1748
  %1779 = vst [vmem:[#allocation2 + $0x48] sm:$0xff] %v1681
  %1780 = vst [vmem:[#allocation2 + $0x50] sm:$0xff] %v1683
  %1781 = vst [vmem:[#allocation2 + $0x58] sm:$0xff] %v1751
  %1782 = vst [vmem:[#allocation2 + $0x60] sm:$0xff] %v1687
  %1783 = vst [vmem:[#allocation2 + $0x68] sm:$0xff] %v1689
  %1784 = vst [vmem:[#allocation2 + $0x70] sm:$0xff] %v1756
  %1785 = vst [vmem:[#allocation2 + $0x78] sm:$0xff] %v1691
  %1786 = vst [vmem:[#allocation2 + $0x80] sm:$0xff] %v1693
  %1787 = vst [vmem:[#allocation2 + $0x88] sm:$0xff] %v1759
  %1788 = vst [vmem:[#allocation2 + $0x90] sm:$0xff] %v1697
  %1789 = vst [vmem:[#allocation2 + $0x98] sm:$0xff] %v1699
  %1790 = vst [vmem:[#allocation2 + $0xa0] sm:$0xff] %v1764
  %1791 = vst [vmem:[#allocation2 + $0xa8] sm:$0xff] %v1701
  %1792 = vst [vmem:[#allocation2 + $0xb0] sm:$0xff] %v1703
  %1793 = vst [vmem:[#allocation2 + $0xb8] sm:$0xff] %v1767
  %v1794 = vld [vmem:[%s4 + $0x1] sm:$0x1]
  %v1795 = vlaneseq
  %v1796 = vshrl.u32 %v1795, 7
  %v1797 = vsub.s32 0, %v1796
  %v1798 = vrot.slane %v1794, %v1797
  %v1799 = vld [vmem:[#allocation2] sm:$0xff]
  %v1800 = vld [vmem:[#allocation2 + $0x8] sm:$0xff]
  %v1801 = vld [vmem:[#allocation2 + $0x10] sm:$0xff]
  %v1834 = vunpack.c.l.b16 %v1430
  %v1835 = vunpack.c.h.b16 %v1430
  %v1836 = vunpack.c.l.b16 %v1431
  %v1837 = vunpack.c.l.b16 %v1432
  %v1838 = vunpack.c.h.b16 %v1432
  %v1839 = vunpack.c.l.b16 %v1433
  %v1840 = vunpack.c.l.b16 %v1434
  %v1841 = vunpack.c.h.b16 %v1434
  %v1842 = vunpack.c.l.b16 %v1435
  %v1843 = vunpack.c.l.b16 %v1436
  %v1844 = vunpack.c.h.b16 %v1436
  %v1845 = vunpack.c.l.b16 %v1437
  %v1846 = vunpack.c.l.b16 %v1438
  %v1847 = vunpack.c.h.b16 %v1438
  %v1848 = vunpack.c.l.b16 %v1439
  %v1849 = vunpack.c.l.b16 %v1440
  %v1850 = vunpack.c.h.b16 %v1440
  %v1851 = vunpack.c.l.b16 %v1441
  %v1852 = vunpack.c.l.b16 %v1442
  %v1853 = vunpack.c.h.b16 %v1442
  %v1854 = vunpack.c.l.b16 %v1443
  %v1855 = vunpack.c.l.b16 %v1444
  %v1856 = vunpack.c.h.b16 %v1444
  %v1857 = vunpack.c.l.b16 %v1445
  %v1858 = vunpack.c.l.b16 %v1446
  %v1859 = vunpack.c.h.b16 %v1446
  %v1860 = vunpack.c.l.b16 %v1447
  %v1861 = vunpack.c.l.b16 %v1448
  %v1862 = vunpack.c.h.b16 %v1448
  %v1863 = vunpack.c.l.b16 %v1449
  %v1864 = vunpack.c.l.b16 %v1450
  %v1865 = vunpack.c.h.b16 %v1450
  %v1866 = vunpack.c.l.b16 %v1451
  %v1867 = vunpack.c.l.b16 %v1452
  %v1868 = vunpack.c.h.b16 %v1452
  %v1869 = vunpack.c.l.b16 %v1453
  %v1870 = vunpack.c.l.b16 %v1454
  %v1871 = vunpack.c.h.b16 %v1454
  %v1872 = vunpack.c.l.b16 %v1455
  %v1873 = vunpack.c.l.b16 %v1456
  %v1874 = vunpack.c.h.b16 %v1456
  %v1875 = vunpack.c.l.b16 %v1457
  %v1876 = vunpack.c.l.b16 %v1458
  %v1877 = vunpack.c.h.b16 %v1458
  %v1878 = vunpack.c.l.b16 %v1459
  %v1879 = vunpack.c.l.b16 %v1460
  %v1880 = vunpack.c.h.b16 %v1460
  %v1881 = vunpack.c.l.b16 %v1461
  %v1882 = vpack.c.b16 %v1837, %v1834
  %v1883 = vpack.c.b16 %v1838, %v1835
  %v1884 = vpack.c.b16 %v1839, %v1836
  %v1885 = vpack.c.b16 %v1843, %v1840
  %v1886 = vpack.c.b16 %v1844, %v1841
  %v1887 = vpack.c.b16 %v1845, %v1842
  %v1888 = vpack.c.b16 %v1849, %v1846
  %v1889 = vpack.c.b16 %v1850, %v1847
  %v1890 = vpack.c.b16 %v1851, %v1848
  %v1891 = vpack.c.b16 %v1855, %v1852
  %v1892 = vpack.c.b16 %v1856, %v1853
  %v1893 = vpack.c.b16 %v1857, %v1854
  %v1894 = vpack.c.b16 %v1861, %v1858
  %v1895 = vpack.c.b16 %v1862, %v1859
  %v1896 = vpack.c.b16 %v1863, %v1860
  %v1897 = vpack.c.b16 %v1867, %v1864
  %v1898 = vpack.c.b16 %v1868, %v1865
  %v1899 = vpack.c.b16 %v1869, %v1866
  %v1900 = vpack.c.b16 %v1873, %v1870
  %v1901 = vpack.c.b16 %v1874, %v1871
  %v1902 = vpack.c.b16 %v1875, %v1872
  %v1903 = vpack.c.b16 %v1879, %v1876
  %v1904 = vpack.c.b16 %v1880, %v1877
  %v1905 = vpack.c.b16 %v1881, %v1878
  %1930 = vmatprep.subr.bf16.mxu0 %v1904
  %1931 = vmatpush1.bf16.msra.mxu0 %v1903
  %1932 = vmatprep.subr.bf16.mxu0 %v1901
  %1933 = vmatpush1.bf16.msra.mxu0 %v1900
  %1934 = vmatprep.subr.bf16.mxu0 %v1898
  %1935 = vmatpush1.bf16.msra.mxu0 %v1897
  %1936 = vmatprep.subr.bf16.mxu0 %v1895
  %1937 = vmatpush1.bf16.msra.mxu0 %v1894
  %1938 = vmatprep.subr.bf16.mxu0 %v1892
  %1939 = vmatpush1.bf16.msra.mxu0 %v1891
  %1940 = vmatprep.subr.bf16.mxu0 %v1889
  %1941 = vmatpush1.bf16.msra.mxu0 %v1888
  %1942 = vmatprep.subr.bf16.mxu0 %v1886
  %1943 = vmatpush1.bf16.msra.mxu0 %v1885
  %1944 = vmatprep.subr.bf16.mxu0 %v1883
  %1945 = vmatpush1.bf16.msra.mxu0 %v1882
  %1946 = vmatprep.subr.bf16.mxu0 0
  %1947 = vmatpush2.bf16.msra.mxu0 0
  %1948 = vmatprep.subr.bf16.mxu0 0
  %1949 = vmatpush2.bf16.msra.mxu0 0
  %1950 = vmatprep.subr.bf16.mxu0 0
  %1951 = vmatpush2.bf16.msra.mxu0 0
  %1952 = vmatprep.subr.bf16.mxu0 0
  %1953 = vmatpush2.bf16.msra.mxu0 0
  %1954 = vmatprep.subr.bf16.mxu0 0
  %1955 = vmatpush2.bf16.msra.mxu0 0
  %1956 = vmatprep.subr.bf16.mxu0 0
  %1957 = vmatpush2.bf16.msra.mxu0 0
  %1958 = vmatprep.subr.bf16.mxu0 0
  %1959 = vmatpush2.bf16.msra.mxu0 0
  %1960 = vmatprep.subr.bf16.mxu0 0
  %1961 = vmatpush2.bf16.msra.mxu0 0
  %1962 = vmatprep.mubr.bf16.mxu0 0
  %1963 = vmatmul.mubr.bf16.gmra.mxu0 0
  %v1964 = vpop.f32.mrf.mxu0
  %v1965 = vadd.f32 0.0, %v1964
  %v1966 = vpop.f32.mrf.mxu0
  %v1967 = vadd.f32 0.0, %v1966
  %v1968 = vpop.f32.mrf.mxu0
  %v1969 = vpop.f32.mrf.mxu0
  %1970 = vdwg.mxu0
  %1971 = vmatprep.subr.bf16.mxu0 0
  %1972 = vmatpush1.bf16.msra.mxu0 %v1905
  %1973 = vmatprep.subr.bf16.mxu0 0
  %1974 = vmatpush1.bf16.msra.mxu0 %v1902
  %1975 = vmatprep.subr.bf16.mxu0 0
  %1976 = vmatpush1.bf16.msra.mxu0 %v1899
  %1977 = vmatprep.subr.bf16.mxu0 0
  %1978 = vmatpush1.bf16.msra.mxu0 %v1896
  %1979 = vmatprep.subr.bf16.mxu0 0
  %1980 = vmatpush1.bf16.msra.mxu0 %v1893
  %1981 = vmatprep.subr.bf16.mxu0 0
  %1982 = vmatpush1.bf16.msra.mxu0 %v1890
  %1983 = vmatprep.subr.bf16.mxu0 0
  %1984 = vmatpush1.bf16.msra.mxu0 %v1887
  %1985 = vmatprep.subr.bf16.mxu0 0
  %1986 = vmatpush1.bf16.msra.mxu0 %v1884
  %1987 = vmatprep.subr.bf16.mxu0 0
  %1988 = vmatpush2.bf16.msra.mxu0 0
  %1989 = vmatprep.subr.bf16.mxu0 0
  %1990 = vmatpush2.bf16.msra.mxu0 0
  %1991 = vmatprep.subr.bf16.mxu0 0
  %1992 = vmatpush2.bf16.msra.mxu0 0
  %1993 = vmatprep.subr.bf16.mxu0 0
  %1994 = vmatpush2.bf16.msra.mxu0 0
  %1995 = vmatprep.subr.bf16.mxu0 0
  %1996 = vmatpush2.bf16.msra.mxu0 0
  %1997 = vmatprep.subr.bf16.mxu0 0
  %1998 = vmatpush2.bf16.msra.mxu0 0
  %1999 = vmatprep.subr.bf16.mxu0 0
  %2000 = vmatpush2.bf16.msra.mxu0 0
  %2001 = vmatprep.subr.bf16.mxu0 0
  %2002 = vmatpush2.bf16.msra.mxu0 0
  %2003 = vmatprep.mubr.bf16.mxu0 0
  %2004 = vmatmul.mubr.bf16.gmra.mxu0 0
  %v2005 = vpop.f32.mrf.mxu0
  %v2006 = vadd.f32 0.0, %v2005
  %v2007 = vpop.f32.mrf.mxu0
  %v2008 = vpop.f32.mrf.mxu0
  %v2009 = vpop.f32.mrf.mxu0
  %2010 = vdwg.mxu0
  %v2011 = vadd.f32 %v1799, %v1965
  %v2012 = vadd.f32 %v1800, %v1967
  %v2013 = vmul.f32 %v2011, 0.5
  %v2014 = vmul.f32 %v2012, 0.5
  %v2015 = vtanh.pop %v2013
  %v2016 = vtanh.pop %v2014
  %v2017 = vmul.f32 %v2015, 0.5
  %v2018 = vmul.f32 %v2016, 0.5
  %v2019 = vadd.f32 %v2017, 0.5
  %v2020 = vadd.f32 %v2018, 0.5
  %v2021 = vadd.f32 %v2006, %v1798
  %v2022 = vmul.f32 %v2019, %v2021
  %v2023 = vadd.f32 %v1801, %v2022
  %v2024 = vtanh.pop %v2023
  %v2025 = vsub.f32 0.0, %v2024
  %v2026 = vmul.f32 %v2020, %v2025
  %v2027 = vadd.f32 %v2024, %v2026
  %v2028 = vld [vmem:[#allocation2 + $0x18] sm:$0xff]
  %v2029 = vld [vmem:[#allocation2 + $0x20] sm:$0xff]
  %v2030 = vld [vmem:[#allocation2 + $0x28] sm:$0xff]
  %v2031 = vpack.c.bf16 %v2027, %v2027
  %2032 = vmatprep.subr.bf16.mxu0 %v1904
  %2033 = vmatpush1.bf16.msra.mxu0 %v1903
  %2034 = vmatprep.subr.bf16.mxu0 %v1901
  %2035 = vmatpush1.bf16.msra.mxu0 %v1900
  %2036 = vmatprep.subr.bf16.mxu0 %v1898
  %2037 = vmatpush1.bf16.msra.mxu0 %v1897
  %2038 = vmatprep.subr.bf16.mxu0 %v1895
  %2039 = vmatpush1.bf16.msra.mxu0 %v1894
  %2040 = vmatprep.subr.bf16.mxu0 %v1892
  %2041 = vmatpush1.bf16.msra.mxu0 %v1891
  %2042 = vmatprep.subr.bf16.mxu0 %v1889
  %2043 = vmatpush1.bf16.msra.mxu0 %v1888
  %2044 = vmatprep.subr.bf16.mxu0 %v1886
  %2045 = vmatpush1.bf16.msra.mxu0 %v1885
  %2046 = vmatprep.subr.bf16.mxu0 %v1883
  %2047 = vmatpush1.bf16.msra.mxu0 %v1882
  %2048 = vmatprep.subr.bf16.mxu0 0
  %2049 = vmatpush2.bf16.msra.mxu0 0
  %2050 = vmatprep.subr.bf16.mxu0 0
  %2051 = vmatpush2.bf16.msra.mxu0 0
  %2052 = vmatprep.subr.bf16.mxu0 0
  %2053 = vmatpush2.bf16.msra.mxu0 0
  %2054 = vmatprep.subr.bf16.mxu0 0
  %2055 = vmatpush2.bf16.msra.mxu0 0
  %2056 = vmatprep.subr.bf16.mxu0 0
  %2057 = vmatpush2.bf16.msra.mxu0 0
  %2058 = vmatprep.subr.bf16.mxu0 0
  %2059 = vmatpush2.bf16.msra.mxu0 0
  %2060 = vmatprep.subr.bf16.mxu0 0
  %2061 = vmatpush2.bf16.msra.mxu0 0
  %2062 = vmatprep.subr.bf16.mxu0 0
  %2063 = vmatpush2.bf16.msra.mxu0 0
  %2064 = vmatprep.mubr.bf16.mxu0 0
  %2065 = vmatmul.mubr.bf16.gmra.mxu0 %v2031
  %v2066 = vpop.f32.mrf.mxu0
  %v2067 = vadd.f32 0.0, %v2066
  %v2068 = vpop.f32.mrf.mxu0
  %v2069 = vadd.f32 0.0, %v2068
  %v2070 = vpop.f32.mrf.mxu0
  %v2071 = vpop.f32.mrf.mxu0
  %2072 = vdwg.mxu0
  %2073 = vmatprep.subr.bf16.mxu0 0
  %2074 = vmatpush1.bf16.msra.mxu0 %v1905
  %2075 = vmatprep.subr.bf16.mxu0 0
  %2076 = vmatpush1.bf16.msra.mxu0 %v1902
  %2077 = vmatprep.subr.bf16.mxu0 0
  %2078 = vmatpush1.bf16.msra.mxu0 %v1899
  %2079 = vmatprep.subr.bf16.mxu0 0
  %2080 = vmatpush1.bf16.msra.mxu0 %v1896
  %2081 = vmatprep.subr.bf16.mxu0 0
  %2082 = vmatpush1.bf16.msra.mxu0 %v1893
  %2083 = vmatprep.subr.bf16.mxu0 0
  %2084 = vmatpush1.bf16.msra.mxu0 %v1890
  %2085 = vmatprep.subr.bf16.mxu0 0
  %2086 = vmatpush1.bf16.msra.mxu0 %v1887
  %2087 = vmatprep.subr.bf16.mxu0 0
  %2088 = vmatpush1.bf16.msra.mxu0 %v1884
  %2089 = vmatprep.subr.bf16.mxu0 0
  %2090 = vmatpush2.bf16.msra.mxu0 0
  %2091 = vmatprep.subr.bf16.mxu0 0
  %2092 = vmatpush2.bf16.msra.mxu0 0
  %2093 = vmatprep.subr.bf16.mxu0 0
  %2094 = vmatpush2.bf16.msra.mxu0 0
  %2095 = vmatprep.subr.bf16.mxu0 0
  %2096 = vmatpush2.bf16.msra.mxu0 0
  %2097 = vmatprep.subr.bf16.mxu0 0
  %2098 = vmatpush2.bf16.msra.mxu0 0
  %2099 = vmatprep.subr.bf16.mxu0 0
  %2100 = vmatpush2.bf16.msra.mxu0 0
  %2101 = vmatprep.subr.bf16.mxu0 0
  %2102 = vmatpush2.bf16.msra.mxu0 0
  %2103 = vmatprep.subr.bf16.mxu0 0
  %2104 = vmatpush2.bf16.msra.mxu0 0
  %2105 = vmatprep.mubr.bf16.mxu0 0
  %2106 = vmatmul.mubr.bf16.gmra.mxu0 %v2031
  %v2107 = vpop.f32.mrf.mxu0
  %v2108 = vadd.f32 0.0, %v2107
  %v2109 = vpop.f32.mrf.mxu0
  %v2110 = vpop.f32.mrf.mxu0
  %v2111 = vpop.f32.mrf.mxu0
  %2112 = vdwg.mxu0
  %v2113 = vadd.f32 %v2028, %v2067
  %v2114 = vadd.f32 %v2029, %v2069
  %v2115 = vmul.f32 %v2113, 0.5
  %v2116 = vmul.f32 %v2114, 0.5
  %v2117 = vtanh.pop %v2115
  %v2118 = vtanh.pop %v2116
  %v2119 = vmul.f32 %v2117, 0.5
  %v2120 = vmul.f32 %v2118, 0.5
  %v2121 = vadd.f32 %v2119, 0.5
  %v2122 = vadd.f32 %v2120, 0.5
  %v2123 = vadd.f32 %v2108, %v1798
  %v2124 = vmul.f32 %v2121, %v2123
  %v2125 = vadd.f32 %v2030, %v2124
  %v2126 = vtanh.pop %v2125
  %v2127 = vsub.f32 %v2027, %v2126
  %v2128 = vmul.f32 %v2122, %v2127
  %v2129 = vadd.f32 %v2126, %v2128
  %v2130 = vld [vmem:[#allocation2 + $0x30] sm:$0xff]
  %v2131 = vld [vmem:[#allocation2 + $0x38] sm:$0xff]
  %v2132 = vld [vmem:[#allocation2 + $0x40] sm:$0xff]
  %v2133 = vpack.c.bf16 %v2129, %v2129
  %2134 = vmatprep.subr.bf16.mxu0 %v1904
  %2135 = vmatpush1.bf16.msra.mxu0 %v1903
  %2136 = vmatprep.subr.bf16.mxu0 %v1901
  %2137 = vmatpush1.bf16.msra.mxu0 %v1900
  %2138 = vmatprep.subr.bf16.mxu0 %v1898
  %2139 = vmatpush1.bf16.msra.mxu0 %v1897
  %2140 = vmatprep.subr.bf16.mxu0 %v1895
  %2141 = vmatpush1.bf16.msra.mxu0 %v1894
  %2142 = vmatprep.subr.bf16.mxu0 %v1892
  %2143 = vmatpush1.bf16.msra.mxu0 %v1891
  %2144 = vmatprep.subr.bf16.mxu0 %v1889
  %2145 = vmatpush1.bf16.msra.mxu0 %v1888
  %2146 = vmatprep.subr.bf16.mxu0 %v1886
  %2147 = vmatpush1.bf16.msra.mxu0 %v1885
  %2148 = vmatprep.subr.bf16.mxu0 %v1883
  %2149 = vmatpush1.bf16.msra.mxu0 %v1882
  %2150 = vmatprep.subr.bf16.mxu0 0
  %2151 = vmatpush2.bf16.msra.mxu0 0
  %2152 = vmatprep.subr.bf16.mxu0 0
  %2153 = vmatpush2.bf16.msra.mxu0 0
  %2154 = vmatprep.subr.bf16.mxu0 0
  %2155 = vmatpush2.bf16.msra.mxu0 0
  %2156 = vmatprep.subr.bf16.mxu0 0
  %2157 = vmatpush2.bf16.msra.mxu0 0
  %2158 = vmatprep.subr.bf16.mxu0 0
  %2159 = vmatpush2.bf16.msra.mxu0 0
  %2160 = vmatprep.subr.bf16.mxu0 0
  %2161 = vmatpush2.bf16.msra.mxu0 0
  %2162 = vmatprep.subr.bf16.mxu0 0
  %2163 = vmatpush2.bf16.msra.mxu0 0
  %2164 = vmatprep.subr.bf16.mxu0 0
  %2165 = vmatpush2.bf16.msra.mxu0 0
  %2166 = vmatprep.mubr.bf16.mxu0 0
  %2167 = vmatmul.mubr.bf16.gmra.mxu0 %v2133
  %v2168 = vpop.f32.mrf.mxu0
  %v2169 = vadd.f32 0.0, %v2168
  %v2170 = vpop.f32.mrf.mxu0
  %v2171 = vadd.f32 0.0, %v2170
  %v2172 = vpop.f32.mrf.mxu0
  %v2173 = vpop.f32.mrf.mxu0
  %2174 = vdwg.mxu0
  %2175 = vmatprep.subr.bf16.mxu0 0
  %2176 = vmatpush1.bf16.msra.mxu0 %v1905
  %2177 = vmatprep.subr.bf16.mxu0 0
  %2178 = vmatpush1.bf16.msra.mxu0 %v1902
  %2179 = vmatprep.subr.bf16.mxu0 0
  %2180 = vmatpush1.bf16.msra.mxu0 %v1899
  %2181 = vmatprep.subr.bf16.mxu0 0
  %2182 = vmatpush1.bf16.msra.mxu0 %v1896
  %2183 = vmatprep.subr.bf16.mxu0 0
  %2184 = vmatpush1.bf16.msra.mxu0 %v1893
  %2185 = vmatprep.subr.bf16.mxu0 0
  %2186 = vmatpush1.bf16.msra.mxu0 %v1890
  %2187 = vmatprep.subr.bf16.mxu0 0
  %2188 = vmatpush1.bf16.msra.mxu0 %v1887
  %2189 = vmatprep.subr.bf16.mxu0 0
  %2190 = vmatpush1.bf16.msra.mxu0 %v1884
  %2191 = vmatprep.subr.bf16.mxu0 0
  %2192 = vmatpush2.bf16.msra.mxu0 0
  %2193 = vmatprep.subr.bf16.mxu0 0
  %2194 = vmatpush2.bf16.msra.mxu0 0
  %2195 = vmatprep.subr.bf16.mxu0 0
  %2196 = vmatpush2.bf16.msra.mxu0 0
  %2197 = vmatprep.subr.bf16.mxu0 0
  %2198 = vmatpush2.bf16.msra.mxu0 0
  %2199 = vmatprep.subr.bf16.mxu0 0
  %2200 = vmatpush2.bf16.msra.mxu0 0
  %2201 = vmatprep.subr.bf16.mxu0 0
  %2202 = vmatpush2.bf16.msra.mxu0 0
  %2203 = vmatprep.subr.bf16.mxu0 0
  %2204 = vmatpush2.bf16.msra.mxu0 0
  %2205 = vmatprep.subr.bf16.mxu0 0
  %2206 = vmatpush2.bf16.msra.mxu0 0
  %2207 = vmatprep.mubr.bf16.mxu0 0
  %2208 = vmatmul.mubr.bf16.gmra.mxu0 %v2133
  %v2209 = vpop.f32.mrf.mxu0
  %v2210 = vadd.f32 0.0, %v2209
  %v2211 = vpop.f32.mrf.mxu0
  %v2212 = vpop.f32.mrf.mxu0
  %v2213 = vpop.f32.mrf.mxu0
  %2214 = vdwg.mxu0
  %v2215 = vadd.f32 %v2130, %v2169
  %v2216 = vadd.f32 %v2131, %v2171
  %v2217 = vmul.f32 %v2215, 0.5
  %v2218 = vmul.f32 %v2216, 0.5
  %v2219 = vtanh.pop %v2217
  %v2220 = vtanh.pop %v2218
  %v2221 = vmul.f32 %v2219, 0.5
  %v2222 = vmul.f32 %v2220, 0.5
  %v2223 = vadd.f32 %v2221, 0.5
  %v2224 = vadd.f32 %v2222, 0.5
  %v2225 = vadd.f32 %v2210, %v1798
  %v2226 = vmul.f32 %v2223, %v2225
  %v2227 = vadd.f32 %v2132, %v2226
  %v2228 = vtanh.pop %v2227
  %v2229 = vsub.f32 %v2129, %v2228
  %v2230 = vmul.f32 %v2224, %v2229
  %v2231 = vadd.f32 %v2228, %v2230
  %v2232 = vld [vmem:[#allocation2 + $0x48] sm:$0xff]
  %v2233 = vld [vmem:[#allocation2 + $0x50] sm:$0xff]
  %v2234 = vld [vmem:[#allocation2 + $0x58] sm:$0xff]
  %v2235 = vpack.c.bf16 %v2231, %v2231
  %2236 = vmatprep.subr.bf16.mxu0 %v1904
  %2237 = vmatpush1.bf16.msra.mxu0 %v1903
  %2238 = vmatprep.subr.bf16.mxu0 %v1901
  %2239 = vmatpush1.bf16.msra.mxu0 %v1900
  %2240 = vmatprep.subr.bf16.mxu0 %v1898
  %2241 = vmatpush1.bf16.msra.mxu0 %v1897
  %2242 = vmatprep.subr.bf16.mxu0 %v1895
  %2243 = vmatpush1.bf16.msra.mxu0 %v1894
  %2244 = vmatprep.subr.bf16.mxu0 %v1892
  %2245 = vmatpush1.bf16.msra.mxu0 %v1891
  %2246 = vmatprep.subr.bf16.mxu0 %v1889
  %2247 = vmatpush1.bf16.msra.mxu0 %v1888
  %2248 = vmatprep.subr.bf16.mxu0 %v1886
  %2249 = vmatpush1.bf16.msra.mxu0 %v1885
  %2250 = vmatprep.subr.bf16.mxu0 %v1883
  %2251 = vmatpush1.bf16.msra.mxu0 %v1882
  %2252 = vmatprep.subr.bf16.mxu0 0
  %2253 = vmatpush2.bf16.msra.mxu0 0
  %2254 = vmatprep.subr.bf16.mxu0 0
  %2255 = vmatpush2.bf16.msra.mxu0 0
  %2256 = vmatprep.subr.bf16.mxu0 0
  %2257 = vmatpush2.bf16.msra.mxu0 0
  %2258 = vmatprep.subr.bf16.mxu0 0
  %2259 = vmatpush2.bf16.msra.mxu0 0
  %2260 = vmatprep.subr.bf16.mxu0 0
  %2261 = vmatpush2.bf16.msra.mxu0 0
  %2262 = vmatprep.subr.bf16.mxu0 0
  %2263 = vmatpush2.bf16.msra.mxu0 0
  %2264 = vmatprep.subr.bf16.mxu0 0
  %2265 = vmatpush2.bf16.msra.mxu0 0
  %2266 = vmatprep.subr.bf16.mxu0 0
  %2267 = vmatpush2.bf16.msra.mxu0 0
  %2268 = vmatprep.mubr.bf16.mxu0 0
  %2269 = vmatmul.mubr.bf16.gmra.mxu0 %v2235
  %v2270 = vpop.f32.mrf.mxu0
  %v2271 = vadd.f32 0.0, %v2270
  %v2272 = vpop.f32.mrf.mxu0
  %v2273 = vadd.f32 0.0, %v2272
  %v2274 = vpop.f32.mrf.mxu0
  %v2275 = vpop.f32.mrf.mxu0
  %2276 = vdwg.mxu0
  %2277 = vmatprep.subr.bf16.mxu0 0
  %2278 = vmatpush1.bf16.msra.mxu0 %v1905
  %2279 = vmatprep.subr.bf16.mxu0 0
  %2280 = vmatpush1.bf16.msra.mxu0 %v1902
  %2281 = vmatprep.subr.bf16.mxu0 0
  %2282 = vmatpush1.bf16.msra.mxu0 %v1899
  %2283 = vmatprep.subr.bf16.mxu0 0
  %2284 = vmatpush1.bf16.msra.mxu0 %v1896
  %2285 = vmatprep.subr.bf16.mxu0 0
  %2286 = vmatpush1.bf16.msra.mxu0 %v1893
  %2287 = vmatprep.subr.bf16.mxu0 0
  %2288 = vmatpush1.bf16.msra.mxu0 %v1890
  %2289 = vmatprep.subr.bf16.mxu0 0
  %2290 = vmatpush1.bf16.msra.mxu0 %v1887
  %2291 = vmatprep.subr.bf16.mxu0 0
  %2292 = vmatpush1.bf16.msra.mxu0 %v1884
  %2293 = vmatprep.subr.bf16.mxu0 0
  %2294 = vmatpush2.bf16.msra.mxu0 0
  %2295 = vmatprep.subr.bf16.mxu0 0
  %2296 = vmatpush2.bf16.msra.mxu0 0
  %2297 = vmatprep.subr.bf16.mxu0 0
  %2298 = vmatpush2.bf16.msra.mxu0 0
  %2299 = vmatprep.subr.bf16.mxu0 0
  %2300 = vmatpush2.bf16.msra.mxu0 0
  %2301 = vmatprep.subr.bf16.mxu0 0
  %2302 = vmatpush2.bf16.msra.mxu0 0
  %2303 = vmatprep.subr.bf16.mxu0 0
  %2304 = vmatpush2.bf16.msra.mxu0 0
  %2305 = vmatprep.subr.bf16.mxu0 0
  %2306 = vmatpush2.bf16.msra.mxu0 0
  %2307 = vmatprep.subr.bf16.mxu0 0
  %2308 = vmatpush2.bf16.msra.mxu0 0
  %2309 = vmatprep.mubr.bf16.mxu0 0
  %2310 = vmatmul.mubr.bf16.gmra.mxu0 %v2235
  %v2311 = vpop.f32.mrf.mxu0
  %v2312 = vadd.f32 0.0, %v2311
  %v2313 = vpop.f32.mrf.mxu0
  %v2314 = vpop.f32.mrf.mxu0
  %v2315 = vpop.f32.mrf.mxu0
  %2316 = vdwg.mxu0
  %v2317 = vadd.f32 %v2232, %v2271
  %v2318 = vadd.f32 %v2233, %v2273
  %v2319 = vmul.f32 %v2317, 0.5
  %v2320 = vmul.f32 %v2318, 0.5
  %v2321 = vtanh.pop %v2319
  %v2322 = vtanh.pop %v2320
  %v2323 = vmul.f32 %v2321, 0.5
  %v2324 = vmul.f32 %v2322, 0.5
  %v2325 = vadd.f32 %v2323, 0.5
  %v2326 = vadd.f32 %v2324, 0.5
  %v2327 = vadd.f32 %v2312, %v1798
  %v2328 = vmul.f32 %v2325, %v2327
  %v2329 = vadd.f32 %v2234, %v2328
  %v2330 = vtanh.pop %v2329
  %v2331 = vsub.f32 %v2231, %v2330
  %v2332 = vmul.f32 %v2326, %v2331
  %v2333 = vadd.f32 %v2330, %v2332
  %v2334 = vld [vmem:[#allocation2 + $0x60] sm:$0xff]
  %v2335 = vld [vmem:[#allocation2 + $0x68] sm:$0xff]
  %v2336 = vld [vmem:[#allocation2 + $0x70] sm:$0xff]
  %v2337 = vpack.c.bf16 %v2333, %v2333
  %2338 = vmatprep.subr.bf16.mxu0 %v1904
  %2339 = vmatpush1.bf16.msra.mxu0 %v1903
  %2340 = vmatprep.subr.bf16.mxu0 %v1901
  %2341 = vmatpush1.bf16.msra.mxu0 %v1900
  %2342 = vmatprep.subr.bf16.mxu0 %v1898
  %2343 = vmatpush1.bf16.msra.mxu0 %v1897
  %2344 = vmatprep.subr.bf16.mxu0 %v1895
  %2345 = vmatpush1.bf16.msra.mxu0 %v1894
  %2346 = vmatprep.subr.bf16.mxu0 %v1892
  %2347 = vmatpush1.bf16.msra.mxu0 %v1891
  %2348 = vmatprep.subr.bf16.mxu0 %v1889
  %2349 = vmatpush1.bf16.msra.mxu0 %v1888
  %2350 = vmatprep.subr.bf16.mxu0 %v1886
  %2351 = vmatpush1.bf16.msra.mxu0 %v1885
  %2352 = vmatprep.subr.bf16.mxu0 %v1883
  %2353 = vmatpush1.bf16.msra.mxu0 %v1882
  %2354 = vmatprep.subr.bf16.mxu0 0
  %2355 = vmatpush2.bf16.msra.mxu0 0
  %2356 = vmatprep.subr.bf16.mxu0 0
  %2357 = vmatpush2.bf16.msra.mxu0 0
  %2358 = vmatprep.subr.bf16.mxu0 0
  %2359 = vmatpush2.bf16.msra.mxu0 0
  %2360 = vmatprep.subr.bf16.mxu0 0
  %2361 = vmatpush2.bf16.msra.mxu0 0
  %2362 = vmatprep.subr.bf16.mxu0 0
  %2363 = vmatpush2.bf16.msra.mxu0 0
  %2364 = vmatprep.subr.bf16.mxu0 0
  %2365 = vmatpush2.bf16.msra.mxu0 0
  %2366 = vmatprep.subr.bf16.mxu0 0
  %2367 = vmatpush2.bf16.msra.mxu0 0
  %2368 = vmatprep.subr.bf16.mxu0 0
  %2369 = vmatpush2.bf16.msra.mxu0 0
  %2370 = vmatprep.mubr.bf16.mxu0 0
  %2371 = vmatmul.mubr.bf16.gmra.mxu0 %v2337
  %v2372 = vpop.f32.mrf.mxu0
  %v2373 = vadd.f32 0.0, %v2372
  %v2374 = vpop.f32.mrf.mxu0
  %v2375 = vadd.f32 0.0, %v2374
  %v2376 = vpop.f32.mrf.mxu0
  %v2377 = vpop.f32.mrf.mxu0
  %2378 = vdwg.mxu0
  %2379 = vmatprep.subr.bf16.mxu0 0
  %2380 = vmatpush1.bf16.msra.mxu0 %v1905
  %2381 = vmatprep.subr.bf16.mxu0 0
  %2382 = vmatpush1.bf16.msra.mxu0 %v1902
  %2383 = vmatprep.subr.bf16.mxu0 0
  %2384 = vmatpush1.bf16.msra.mxu0 %v1899
  %2385 = vmatprep.subr.bf16.mxu0 0
  %2386 = vmatpush1.bf16.msra.mxu0 %v1896
  %2387 = vmatprep.subr.bf16.mxu0 0
  %2388 = vmatpush1.bf16.msra.mxu0 %v1893
  %2389 = vmatprep.subr.bf16.mxu0 0
  %2390 = vmatpush1.bf16.msra.mxu0 %v1890
  %2391 = vmatprep.subr.bf16.mxu0 0
  %2392 = vmatpush1.bf16.msra.mxu0 %v1887
  %2393 = vmatprep.subr.bf16.mxu0 0
  %2394 = vmatpush1.bf16.msra.mxu0 %v1884
  %2395 = vmatprep.subr.bf16.mxu0 0
  %2396 = vmatpush2.bf16.msra.mxu0 0
  %2397 = vmatprep.subr.bf16.mxu0 0
  %2398 = vmatpush2.bf16.msra.mxu0 0
  %2399 = vmatprep.subr.bf16.mxu0 0
  %2400 = vmatpush2.bf16.msra.mxu0 0
  %2401 = vmatprep.subr.bf16.mxu0 0
  %2402 = vmatpush2.bf16.msra.mxu0 0
  %2403 = vmatprep.subr.bf16.mxu0 0
  %2404 = vmatpush2.bf16.msra.mxu0 0
  %2405 = vmatprep.subr.bf16.mxu0 0
  %2406 = vmatpush2.bf16.msra.mxu0 0
  %2407 = vmatprep.subr.bf16.mxu0 0
  %2408 = vmatpush2.bf16.msra.mxu0 0
  %2409 = vmatprep.subr.bf16.mxu0 0
  %2410 = vmatpush2.bf16.msra.mxu0 0
  %2411 = vmatprep.mubr.bf16.mxu0 0
  %2412 = vmatmul.mubr.bf16.gmra.mxu0 %v2337
  %v2413 = vpop.f32.mrf.mxu0
  %v2414 = vadd.f32 0.0, %v2413
  %v2415 = vpop.f32.mrf.mxu0
  %v2416 = vpop.f32.mrf.mxu0
  %v2417 = vpop.f32.mrf.mxu0
  %2418 = vdwg.mxu0
  %v2419 = vadd.f32 %v2334, %v2373
  %v2420 = vadd.f32 %v2335, %v2375
  %v2421 = vmul.f32 %v2419, 0.5
  %v2422 = vmul.f32 %v2420, 0.5
  %v2423 = vtanh.pop %v2421
  %v2424 = vtanh.pop %v2422
  %v2425 = vmul.f32 %v2423, 0.5
  %v2426 = vmul.f32 %v2424, 0.5
  %v2427 = vadd.f32 %v2425, 0.5
  %v2428 = vadd.f32 %v2426, 0.5
  %v2429 = vadd.f32 %v2414, %v1798
  %v2430 = vmul.f32 %v2427, %v2429
  %v2431 = vadd.f32 %v2336, %v2430
  %v2432 = vtanh.pop %v2431
  %v2433 = vsub.f32 %v2333, %v2432
  %v2434 = vmul.f32 %v2428, %v2433
  %v2435 = vadd.f32 %v2432, %v2434
  %v2436 = vld [vmem:[#allocation2 + $0x78] sm:$0xff]
  %v2437 = vld [vmem:[#allocation2 + $0x80] sm:$0xff]
  %v2438 = vld [vmem:[#allocation2 + $0x88] sm:$0xff]
  %v2439 = vpack.c.bf16 %v2435, %v2435
  %2440 = vmatprep.subr.bf16.mxu0 %v1904
  %2441 = vmatpush1.bf16.msra.mxu0 %v1903
  %2442 = vmatprep.subr.bf16.mxu0 %v1901
  %2443 = vmatpush1.bf16.msra.mxu0 %v1900
  %2444 = vmatprep.subr.bf16.mxu0 %v1898
  %2445 = vmatpush1.bf16.msra.mxu0 %v1897
  %2446 = vmatprep.subr.bf16.mxu0 %v1895
  %2447 = vmatpush1.bf16.msra.mxu0 %v1894
  %2448 = vmatprep.subr.bf16.mxu0 %v1892
  %2449 = vmatpush1.bf16.msra.mxu0 %v1891
  %2450 = vmatprep.subr.bf16.mxu0 %v1889
  %2451 = vmatpush1.bf16.msra.mxu0 %v1888
  %2452 = vmatprep.subr.bf16.mxu0 %v1886
  %2453 = vmatpush1.bf16.msra.mxu0 %v1885
  %2454 = vmatprep.subr.bf16.mxu0 %v1883
  %2455 = vmatpush1.bf16.msra.mxu0 %v1882
  %2456 = vmatprep.subr.bf16.mxu0 0
  %2457 = vmatpush2.bf16.msra.mxu0 0
  %2458 = vmatprep.subr.bf16.mxu0 0
  %2459 = vmatpush2.bf16.msra.mxu0 0
  %2460 = vmatprep.subr.bf16.mxu0 0
  %2461 = vmatpush2.bf16.msra.mxu0 0
  %2462 = vmatprep.subr.bf16.mxu0 0
  %2463 = vmatpush2.bf16.msra.mxu0 0
  %2464 = vmatprep.subr.bf16.mxu0 0
  %2465 = vmatpush2.bf16.msra.mxu0 0
  %2466 = vmatprep.subr.bf16.mxu0 0
  %2467 = vmatpush2.bf16.msra.mxu0 0
  %2468 = vmatprep.subr.bf16.mxu0 0
  %2469 = vmatpush2.bf16.msra.mxu0 0
  %2470 = vmatprep.subr.bf16.mxu0 0
  %2471 = vmatpush2.bf16.msra.mxu0 0
  %2472 = vmatprep.mubr.bf16.mxu0 0
  %2473 = vmatmul.mubr.bf16.gmra.mxu0 %v2439
  %v2474 = vpop.f32.mrf.mxu0
  %v2475 = vadd.f32 0.0, %v2474
  %v2476 = vpop.f32.mrf.mxu0
  %v2477 = vadd.f32 0.0, %v2476
  %v2478 = vpop.f32.mrf.mxu0
  %v2479 = vpop.f32.mrf.mxu0
  %2480 = vdwg.mxu0
  %2481 = vmatprep.subr.bf16.mxu0 0
  %2482 = vmatpush1.bf16.msra.mxu0 %v1905
  %2483 = vmatprep.subr.bf16.mxu0 0
  %2484 = vmatpush1.bf16.msra.mxu0 %v1902
  %2485 = vmatprep.subr.bf16.mxu0 0
  %2486 = vmatpush1.bf16.msra.mxu0 %v1899
  %2487 = vmatprep.subr.bf16.mxu0 0
  %2488 = vmatpush1.bf16.msra.mxu0 %v1896
  %2489 = vmatprep.subr.bf16.mxu0 0
  %2490 = vmatpush1.bf16.msra.mxu0 %v1893
  %2491 = vmatprep.subr.bf16.mxu0 0
  %2492 = vmatpush1.bf16.msra.mxu0 %v1890
  %2493 = vmatprep.subr.bf16.mxu0 0
  %2494 = vmatpush1.bf16.msra.mxu0 %v1887
  %2495 = vmatprep.subr.bf16.mxu0 0
  %2496 = vmatpush1.bf16.msra.mxu0 %v1884
  %2497 = vmatprep.subr.bf16.mxu0 0
  %2498 = vmatpush2.bf16.msra.mxu0 0
  %2499 = vmatprep.subr.bf16.mxu0 0
  %2500 = vmatpush2.bf16.msra.mxu0 0
  %2501 = vmatprep.subr.bf16.mxu0 0
  %2502 = vmatpush2.bf16.msra.mxu0 0
  %2503 = vmatprep.subr.bf16.mxu0 0
  %2504 = vmatpush2.bf16.msra.mxu0 0
  %2505 = vmatprep.subr.bf16.mxu0 0
  %2506 = vmatpush2.bf16.msra.mxu0 0
  %2507 = vmatprep.subr.bf16.mxu0 0
  %2508 = vmatpush2.bf16.msra.mxu0 0
  %2509 = vmatprep.subr.bf16.mxu0 0
  %2510 = vmatpush2.bf16.msra.mxu0 0
  %2511 = vmatprep.subr.bf16.mxu0 0
  %2512 = vmatpush2.bf16.msra.mxu0 0
  %2513 = vmatprep.mubr.bf16.mxu0 0
  %2514 = vmatmul.mubr.bf16.gmra.mxu0 %v2439
  %v2515 = vpop.f32.mrf.mxu0
  %v2516 = vadd.f32 0.0, %v2515
  %v2517 = vpop.f32.mrf.mxu0
  %v2518 = vpop.f32.mrf.mxu0
  %v2519 = vpop.f32.mrf.mxu0
  %2520 = vdwg.mxu0
  %v2521 = vadd.f32 %v2436, %v2475
  %v2522 = vadd.f32 %v2437, %v2477
  %v2523 = vmul.f32 %v2521, 0.5
  %v2524 = vmul.f32 %v2522, 0.5
  %v2525 = vtanh.pop %v2523
  %v2526 = vtanh.pop %v2524
  %v2527 = vmul.f32 %v2525, 0.5
  %v2528 = vmul.f32 %v2526, 0.5
  %v2529 = vadd.f32 %v2527, 0.5
  %v2530 = vadd.f32 %v2528, 0.5
  %v2531 = vadd.f32 %v2516, %v1798
  %v2532 = vmul.f32 %v2529, %v2531
  %v2533 = vadd.f32 %v2438, %v2532
  %v2534 = vtanh.pop %v2533
  %v2535 = vsub.f32 %v2435, %v2534
  %v2536 = vmul.f32 %v2530, %v2535
  %v2537 = vadd.f32 %v2534, %v2536
  %v2538 = vld [vmem:[#allocation2 + $0x90] sm:$0xff]
  %v2539 = vld [vmem:[#allocation2 + $0x98] sm:$0xff]
  %v2540 = vld [vmem:[#allocation2 + $0xa0] sm:$0xff]
  %v2541 = vpack.c.bf16 %v2537, %v2537
  %2542 = vmatprep.subr.bf16.mxu0 %v1904
  %2543 = vmatpush1.bf16.msra.mxu0 %v1903
  %2544 = vmatprep.subr.bf16.mxu0 %v1901
  %2545 = vmatpush1.bf16.msra.mxu0 %v1900
  %2546 = vmatprep.subr.bf16.mxu0 %v1898
  %2547 = vmatpush1.bf16.msra.mxu0 %v1897
  %2548 = vmatprep.subr.bf16.mxu0 %v1895
  %2549 = vmatpush1.bf16.msra.mxu0 %v1894
  %2550 = vmatprep.subr.bf16.mxu0 %v1892
  %2551 = vmatpush1.bf16.msra.mxu0 %v1891
  %2552 = vmatprep.subr.bf16.mxu0 %v1889
  %2553 = vmatpush1.bf16.msra.mxu0 %v1888
  %2554 = vmatprep.subr.bf16.mxu0 %v1886
  %2555 = vmatpush1.bf16.msra.mxu0 %v1885
  %2556 = vmatprep.subr.bf16.mxu0 %v1883
  %2557 = vmatpush1.bf16.msra.mxu0 %v1882
  %2558 = vmatprep.subr.bf16.mxu0 0
  %2559 = vmatpush2.bf16.msra.mxu0 0
  %2560 = vmatprep.subr.bf16.mxu0 0
  %2561 = vmatpush2.bf16.msra.mxu0 0
  %2562 = vmatprep.subr.bf16.mxu0 0
  %2563 = vmatpush2.bf16.msra.mxu0 0
  %2564 = vmatprep.subr.bf16.mxu0 0
  %2565 = vmatpush2.bf16.msra.mxu0 0
  %2566 = vmatprep.subr.bf16.mxu0 0
  %2567 = vmatpush2.bf16.msra.mxu0 0
  %2568 = vmatprep.subr.bf16.mxu0 0
  %2569 = vmatpush2.bf16.msra.mxu0 0
  %2570 = vmatprep.subr.bf16.mxu0 0
  %2571 = vmatpush2.bf16.msra.mxu0 0
  %2572 = vmatprep.subr.bf16.mxu0 0
  %2573 = vmatpush2.bf16.msra.mxu0 0
  %2574 = vmatprep.mubr.bf16.mxu0 0
  %2575 = vmatmul.mubr.bf16.gmra.mxu0 %v2541
  %v2576 = vpop.f32.mrf.mxu0
  %v2577 = vadd.f32 0.0, %v2576
  %v2578 = vpop.f32.mrf.mxu0
  %v2579 = vadd.f32 0.0, %v2578
  %v2580 = vpop.f32.mrf.mxu0
  %v2581 = vpop.f32.mrf.mxu0
  %2582 = vdwg.mxu0
  %2583 = vmatprep.subr.bf16.mxu0 0
  %2584 = vmatpush1.bf16.msra.mxu0 %v1905
  %2585 = vmatprep.subr.bf16.mxu0 0
  %2586 = vmatpush1.bf16.msra.mxu0 %v1902
  %2587 = vmatprep.subr.bf16.mxu0 0
  %2588 = vmatpush1.bf16.msra.mxu0 %v1899
  %2589 = vmatprep.subr.bf16.mxu0 0
  %2590 = vmatpush1.bf16.msra.mxu0 %v1896
  %2591 = vmatprep.subr.bf16.mxu0 0
  %2592 = vmatpush1.bf16.msra.mxu0 %v1893
  %2593 = vmatprep.subr.bf16.mxu0 0
  %2594 = vmatpush1.bf16.msra.mxu0 %v1890
  %2595 = vmatprep.subr.bf16.mxu0 0
  %2596 = vmatpush1.bf16.msra.mxu0 %v1887
  %2597 = vmatprep.subr.bf16.mxu0 0
  %2598 = vmatpush1.bf16.msra.mxu0 %v1884
  %2599 = vmatprep.subr.bf16.mxu0 0
  %2600 = vmatpush2.bf16.msra.mxu0 0
  %2601 = vmatprep.subr.bf16.mxu0 0
  %2602 = vmatpush2.bf16.msra.mxu0 0
  %2603 = vmatprep.subr.bf16.mxu0 0
  %2604 = vmatpush2.bf16.msra.mxu0 0
  %2605 = vmatprep.subr.bf16.mxu0 0
  %2606 = vmatpush2.bf16.msra.mxu0 0
  %2607 = vmatprep.subr.bf16.mxu0 0
  %2608 = vmatpush2.bf16.msra.mxu0 0
  %2609 = vmatprep.subr.bf16.mxu0 0
  %2610 = vmatpush2.bf16.msra.mxu0 0
  %2611 = vmatprep.subr.bf16.mxu0 0
  %2612 = vmatpush2.bf16.msra.mxu0 0
  %2613 = vmatprep.subr.bf16.mxu0 0
  %2614 = vmatpush2.bf16.msra.mxu0 0
  %2615 = vmatprep.mubr.bf16.mxu0 0
  %2616 = vmatmul.mubr.bf16.gmra.mxu0 %v2541
  %v2617 = vpop.f32.mrf.mxu0
  %v2618 = vadd.f32 0.0, %v2617
  %v2619 = vpop.f32.mrf.mxu0
  %v2620 = vpop.f32.mrf.mxu0
  %v2621 = vpop.f32.mrf.mxu0
  %2622 = vdwg.mxu0
  %v2623 = vadd.f32 %v2538, %v2577
  %v2624 = vadd.f32 %v2539, %v2579
  %v2625 = vmul.f32 %v2623, 0.5
  %v2626 = vmul.f32 %v2624, 0.5
  %v2627 = vtanh.pop %v2625
  %v2628 = vtanh.pop %v2626
  %v2629 = vmul.f32 %v2627, 0.5
  %v2630 = vmul.f32 %v2628, 0.5
  %v2631 = vadd.f32 %v2629, 0.5
  %v2632 = vadd.f32 %v2630, 0.5
  %v2633 = vadd.f32 %v2618, %v1798
  %v2634 = vmul.f32 %v2631, %v2633
  %v2635 = vadd.f32 %v2540, %v2634
  %v2636 = vtanh.pop %v2635
  %v2637 = vsub.f32 %v2537, %v2636
  %v2638 = vmul.f32 %v2632, %v2637
  %v2639 = vadd.f32 %v2636, %v2638
  %v2640 = vld [vmem:[#allocation2 + $0xa8] sm:$0xff]
  %v2641 = vld [vmem:[#allocation2 + $0xb0] sm:$0xff]
  %v2642 = vld [vmem:[#allocation2 + $0xb8] sm:$0xff]
  %v2643 = vpack.c.bf16 %v2639, %v2639
  %2644 = vmatprep.subr.bf16.mxu0 %v1904
  %2645 = vmatpush1.bf16.msra.mxu0 %v1903
  %2646 = vmatprep.subr.bf16.mxu0 %v1901
  %2647 = vmatpush1.bf16.msra.mxu0 %v1900
  %2648 = vmatprep.subr.bf16.mxu0 %v1898
  %2649 = vmatpush1.bf16.msra.mxu0 %v1897
  %2650 = vmatprep.subr.bf16.mxu0 %v1895
  %2651 = vmatpush1.bf16.msra.mxu0 %v1894
  %2652 = vmatprep.subr.bf16.mxu0 %v1892
  %2653 = vmatpush1.bf16.msra.mxu0 %v1891
  %2654 = vmatprep.subr.bf16.mxu0 %v1889
  %2655 = vmatpush1.bf16.msra.mxu0 %v1888
  %2656 = vmatprep.subr.bf16.mxu0 %v1886
  %2657 = vmatpush1.bf16.msra.mxu0 %v1885
  %2658 = vmatprep.subr.bf16.mxu0 %v1883
  %2659 = vmatpush1.bf16.msra.mxu0 %v1882
  %2660 = vmatprep.subr.bf16.mxu0 0
  %2661 = vmatpush2.bf16.msra.mxu0 0
  %2662 = vmatprep.subr.bf16.mxu0 0
  %2663 = vmatpush2.bf16.msra.mxu0 0
  %2664 = vmatprep.subr.bf16.mxu0 0
  %2665 = vmatpush2.bf16.msra.mxu0 0
  %2666 = vmatprep.subr.bf16.mxu0 0
  %2667 = vmatpush2.bf16.msra.mxu0 0
  %2668 = vmatprep.subr.bf16.mxu0 0
  %2669 = vmatpush2.bf16.msra.mxu0 0
  %2670 = vmatprep.subr.bf16.mxu0 0
  %2671 = vmatpush2.bf16.msra.mxu0 0
  %2672 = vmatprep.subr.bf16.mxu0 0
  %2673 = vmatpush2.bf16.msra.mxu0 0
  %2674 = vmatprep.subr.bf16.mxu0 0
  %2675 = vmatpush2.bf16.msra.mxu0 0
  %2676 = vmatprep.mubr.bf16.mxu0 0
  %2677 = vmatmul.mubr.bf16.gmra.mxu0 %v2643
  %v2678 = vpop.f32.mrf.mxu0
  %v2679 = vadd.f32 0.0, %v2678
  %v2680 = vpop.f32.mrf.mxu0
  %v2681 = vadd.f32 0.0, %v2680
  %v2682 = vpop.f32.mrf.mxu0
  %v2683 = vpop.f32.mrf.mxu0
  %2684 = vdwg.mxu0
  %2685 = vmatprep.subr.bf16.mxu0 0
  %2686 = vmatpush1.bf16.msra.mxu0 %v1905
  %2687 = vmatprep.subr.bf16.mxu0 0
  %2688 = vmatpush1.bf16.msra.mxu0 %v1902
  %2689 = vmatprep.subr.bf16.mxu0 0
  %2690 = vmatpush1.bf16.msra.mxu0 %v1899
  %2691 = vmatprep.subr.bf16.mxu0 0
  %2692 = vmatpush1.bf16.msra.mxu0 %v1896
  %2693 = vmatprep.subr.bf16.mxu0 0
  %2694 = vmatpush1.bf16.msra.mxu0 %v1893
  %2695 = vmatprep.subr.bf16.mxu0 0
  %2696 = vmatpush1.bf16.msra.mxu0 %v1890
  %2697 = vmatprep.subr.bf16.mxu0 0
  %2698 = vmatpush1.bf16.msra.mxu0 %v1887
  %2699 = vmatprep.subr.bf16.mxu0 0
  %2700 = vmatpush1.bf16.msra.mxu0 %v1884
  %2701 = vmatprep.subr.bf16.mxu0 0
  %2702 = vmatpush2.bf16.msra.mxu0 0
  %2703 = vmatprep.subr.bf16.mxu0 0
  %2704 = vmatpush2.bf16.msra.mxu0 0
  %2705 = vmatprep.subr.bf16.mxu0 0
  %2706 = vmatpush2.bf16.msra.mxu0 0
  %2707 = vmatprep.subr.bf16.mxu0 0
  %2708 = vmatpush2.bf16.msra.mxu0 0
  %2709 = vmatprep.subr.bf16.mxu0 0
  %2710 = vmatpush2.bf16.msra.mxu0 0
  %2711 = vmatprep.subr.bf16.mxu0 0
  %2712 = vmatpush2.bf16.msra.mxu0 0
  %2713 = vmatprep.subr.bf16.mxu0 0
  %2714 = vmatpush2.bf16.msra.mxu0 0
  %2715 = vmatprep.subr.bf16.mxu0 0
  %2716 = vmatpush2.bf16.msra.mxu0 0
  %2717 = vmatprep.mubr.bf16.mxu0 0
  %2718 = vmatmul.mubr.bf16.gmra.mxu0 %v2643
  %v2719 = vpop.f32.mrf.mxu0
  %v2720 = vadd.f32 0.0, %v2719
  %v2721 = vpop.f32.mrf.mxu0
  %v2722 = vpop.f32.mrf.mxu0
  %v2723 = vpop.f32.mrf.mxu0
  %2724 = vdwg.mxu0
  %v2725 = vadd.f32 %v2640, %v2679
  %v2726 = vadd.f32 %v2641, %v2681
  %v2727 = vmul.f32 %v2725, 0.5
  %v2728 = vmul.f32 %v2726, 0.5
  %v2729 = vtanh.pop %v2727
  %v2730 = vtanh.pop %v2728
  %v2731 = vmul.f32 %v2729, 0.5
  %v2732 = vmul.f32 %v2730, 0.5
  %v2733 = vadd.f32 %v2731, 0.5
  %v2734 = vadd.f32 %v2732, 0.5
  %v2735 = vadd.f32 %v2720, %v1798
  %v2736 = vmul.f32 %v2733, %v2735
  %v2737 = vadd.f32 %v2642, %v2736
  %v2738 = vtanh.pop %v2737
  %v2739 = vsub.f32 %v2639, %v2738
  %v2740 = vmul.f32 %v2734, %v2739
  %v2741 = vadd.f32 %v2738, %v2740
  %v2742 = vpack.c.bf16 %v2741, %v2741
  %2743 = vst [vmem:[#allocation4 + $0x4] sm:$0xf] %v2742
  %v2744 = vld [vmem:[#allocation4] sm:$0xf]
  %v2745 = vld [vmem:[#allocation4 + $0x4] sm:$0xf]
  %v2746 = vld [vmem:[%s5] sm:$0xf]
  %v2747 = vld [vmem:[%s5 + $0x4] sm:$0xf]
  %v2748 = vld [vmem:[%s5 + $0x8] sm:$0xf]
  %v2749 = vld [vmem:[%s5 + $0xc] sm:$0xf]
  %v2750 = vld [vmem:[%s5 + $0x10] sm:$0xf]
  %v2751 = vld [vmem:[%s5 + $0x14] sm:$0xf]
  %v2752 = vld [vmem:[%s5 + $0x18] sm:$0xf]
  %v2753 = vld [vmem:[%s5 + $0x1c] sm:$0xf]
  %v2754 = vld [vmem:[%s5 + $0x20] sm:$0xf]
  %v2755 = vld [vmem:[%s5 + $0x24] sm:$0xf]
  %v2756 = vld [vmem:[%s5 + $0x28] sm:$0xf]
  %v2757 = vld [vmem:[%s5 + $0x2c] sm:$0xf]
  %v2758 = vld [vmem:[%s5 + $0x30] sm:$0xf]
  %v2759 = vld [vmem:[%s5 + $0x34] sm:$0xf]
  %v2760 = vld [vmem:[%s5 + $0x38] sm:$0xf]
  %v2761 = vld [vmem:[%s5 + $0x3c] sm:$0xf]
  %v2762 = vld [vmem:[%s6] sm:$0x1]
  %v2764 = vlaneseq
  %v2765 = vshrl.u32 %v2764, 7
  %v2766 = vsub.s32 0, %v2765
  %v2767 = vrot.slane %v2762, %v2766
  %v2771 = vunpack.c.l.b16 %v2744
  %v2772 = vunpack.c.l.b16 %v2745
  %v2773 = vpack.c.b16 %v2772, %v2771
  %v2791 = vunpack.c.l.b16 %v2746
  %v2792 = vunpack.c.l.b16 %v2747
  %v2793 = vunpack.c.l.b16 %v2748
  %v2794 = vunpack.c.l.b16 %v2749
  %v2795 = vunpack.c.l.b16 %v2750
  %v2796 = vunpack.c.l.b16 %v2751
  %v2797 = vunpack.c.l.b16 %v2752
  %v2798 = vunpack.c.l.b16 %v2753
  %v2799 = vunpack.c.l.b16 %v2754
  %v2800 = vunpack.c.l.b16 %v2755
  %v2801 = vunpack.c.l.b16 %v2756
  %v2802 = vunpack.c.l.b16 %v2757
  %v2803 = vunpack.c.l.b16 %v2758
  %v2804 = vunpack.c.l.b16 %v2759
  %v2805 = vunpack.c.l.b16 %v2760
  %v2806 = vunpack.c.l.b16 %v2761
  %v2807 = vpack.c.b16 %v2792, %v2791
  %v2808 = vpack.c.b16 %v2794, %v2793
  %v2809 = vpack.c.b16 %v2796, %v2795
  %v2810 = vpack.c.b16 %v2798, %v2797
  %v2811 = vpack.c.b16 %v2800, %v2799
  %v2812 = vpack.c.b16 %v2802, %v2801
  %v2813 = vpack.c.b16 %v2804, %v2803
  %v2814 = vpack.c.b16 %v2806, %v2805
  %2823 = vmatprep.subr.bf16.mxu0 0
  %2824 = vmatpush1.bf16.msra.mxu0 %v2814
  %2825 = vmatprep.subr.bf16.mxu0 0
  %2826 = vmatpush1.bf16.msra.mxu0 %v2813
  %2827 = vmatprep.subr.bf16.mxu0 0
  %2828 = vmatpush1.bf16.msra.mxu0 %v2812
  %2829 = vmatprep.subr.bf16.mxu0 0
  %2830 = vmatpush1.bf16.msra.mxu0 %v2811
  %2831 = vmatprep.subr.bf16.mxu0 0
  %2832 = vmatpush1.bf16.msra.mxu0 %v2810
  %2833 = vmatprep.subr.bf16.mxu0 0
  %2834 = vmatpush1.bf16.msra.mxu0 %v2809
  %2835 = vmatprep.subr.bf16.mxu0 0
  %2836 = vmatpush1.bf16.msra.mxu0 %v2808
  %2837 = vmatprep.subr.bf16.mxu0 0
  %2838 = vmatpush1.bf16.msra.mxu0 %v2807
  %2839 = vmatprep.subr.bf16.mxu0 0
  %2840 = vmatpush2.bf16.msra.mxu0 0
  %2841 = vmatprep.subr.bf16.mxu0 0
  %2842 = vmatpush2.bf16.msra.mxu0 0
  %2843 = vmatprep.subr.bf16.mxu0 0
  %2844 = vmatpush2.bf16.msra.mxu0 0
  %2845 = vmatprep.subr.bf16.mxu0 0
  %2846 = vmatpush2.bf16.msra.mxu0 0
  %2847 = vmatprep.subr.bf16.mxu0 0
  %2848 = vmatpush2.bf16.msra.mxu0 0
  %2849 = vmatprep.subr.bf16.mxu0 0
  %2850 = vmatpush2.bf16.msra.mxu0 0
  %2851 = vmatprep.subr.bf16.mxu0 0
  %2852 = vmatpush2.bf16.msra.mxu0 0
  %2853 = vmatprep.subr.bf16.mxu0 0
  %2854 = vmatpush2.bf16.msra.mxu0 0
  %2855 = vmatprep.mubr.bf16.mxu0 0
  %2856 = vmatmul.mubr.bf16.gmra.mxu0 %v2773
  %v2857 = vpop.f32.mrf.mxu0
  %v2858 = vadd.f32 %v2767, %v2857
  %v2859 = vpop.f32.mrf.mxu0
  %v2860 = vpop.f32.mrf.mxu0
  %v2861 = vadd.f32 %v2767, %v2860
  %v2862 = vpop.f32.mrf.mxu0
  %2863 = vdwg.mxu0
  %vm2864 = vcmask 64512
  %2865 = vst.msk [vmem:[%s7] sm:$0xff] %vm2864, %v2858
  %2866 = vst.msk [vmem:[%s7 + $0x8] sm:$0xff] %vm2864, %v2861
  // Predicated region
  $region30: #{gru_forward.1} parent=0 // pred_check
    _
  $region31: #{gru_forward.1} parent=0 // pred_check_branch
    %2868 = sbr.rel (0) target = $region33
  $region32: #{gru_forward.1} parent=0 // pred_region
    _
  $region33: #{gru_forward.1} parent=0 // pred_fallthru
    _
  // Predicated region
  $region34: #{gru_forward.1} parent=0 // pred_check
    _
  $region35: #{gru_forward.1} parent=0 // pred_check_branch
    %2870 = sbr.rel (0) target = $region37
  $region36: #{gru_forward.1} parent=0 // pred_region
    _
  $region37: #{gru_forward.1} parent=0 // pred_fallthru
    _

</llo_original>
